<compile_context>
chip_gen: v7x
topology: tpu7x:2x2x1
jax: 0.10.0
libtpu: 0.0.40
codegen_flags: <defaults>
</compile_context>

<pallas_src>
import functools

import jax
import jax.numpy as jnp
from jax import lax
from jax.experimental import pallas as pl
from jax.experimental.pallas import tpu as pltpu

EMBED_DIM = 64
HIDDEN_DIM = 128

_BF16_SUBLANE = 16  # bf16 packs 16 rows per vreg sublane group


def _round_up(x, m):
    return (x + m - 1) // m * m


def _pick_b_tile(B):
    """Batch tile: >=2 grid steps when possible (v7x megacore), divisor-aware for large B."""
    Bp16 = _round_up(B, _BF16_SUBLANE)
    if Bp16 <= 16:
        return Bp16
    if Bp16 <= 256:
        # Two tiles so both v7x TensorCores get work.
        return min(128, _round_up((Bp16 + 1) // 2, _BF16_SUBLANE))
    best_tile, best_pad = 128, _round_up(B, 128)
    for cand in (128, 112, 96, 80, 64):
        padded = _round_up(B, cand)
        if padded < best_pad:
            best_tile, best_pad = cand, padded
    return best_tile


def _vmem_budget(t_chunk, b_tile, E, H, O):
    """Rough VMEM need (with lane padding + double buffering) -> vmem_limit_bytes."""
    bf16, f32, lane = 2, 4, 128
    emb_blk = t_chunk * b_tile * max(E, lane) * bf16 * 2          # double-buffered input
    weights = (E * 4 * H + H * 4 * H + H * max(O, lane)) * bf16 * 2
    biases = (4 * H + lane) * f32 * 2
    state = 2 * b_tile * H * f32                                   # h, c scratch
    out_blk = b_tile * max(O, lane) * f32 * 2
    total = emb_blk + weights + biases + state + out_blk
    # 2x slack for compiler temps; clamp to [16 MiB, 64 MiB] (v7x per-TC ceiling).
    return int(min(max(2 * total + (4 << 20), 16 << 20), 64 << 20))


def make_lstm_kernel(t_chunk, num_t, seq_len, unroll):
    """Reverse-direction LSTM over one batch tile, streamed over reverse time chunks.

    Refs per grid step (i=batch tile, j=time chunk, time walked in reverse):
      emb_ref:   (t_chunk, Bt, E)  bf16   time chunk (natural time order within chunk)
      wih_t_ref: (E, 4H)           bf16   gate order i, f, g, o (PyTorch order)
      whh_t_ref: (H, 4H)           bf16
      b_ref:     (1, 4H)           f32    (b_ih + b_hh combined)
      wfc_t_ref: (H, O)            bf16
      bfc_ref:   (1, O)            f32
      out_ref:   (Bt, O)           f32    written only on the last time chunk
      h_ref/c_ref: (Bt, H)         f32    persistent state scratch across the time axis
    """
    mask_needed = (num_t * t_chunk != seq_len)

    def kernel(emb_ref, wih_t_ref, whh_t_ref, b_ref, wfc_t_ref, bfc_ref,
               out_ref, h_ref, c_ref):
        j = pl.program_id(1)
        H = whh_t_ref.shape[0]

        @pl.when(j == 0)
        def _():
            h_ref[...] = jnp.zeros_like(h_ref)
            c_ref[...] = jnp.zeros_like(c_ref)

        bias = b_ref[...]                                # (1, 4H) f32
        t_base = (num_t - 1 - j) * t_chunk               # global time of this chunk's start

        def sigm(x):                                     # single EUP push per gate
            return 0.5 * jnp.tanh(0.5 * x) + 0.5

        def step(s, carry):
            h, c = carry                                 # f32 state
            lt = t_chunk - 1 - s                         # reverse direction within the chunk
            # Two MXU dots per step (bf16 in, f32 accumulate); no gx materialization.
            gates = (jnp.dot(emb_ref[lt], wih_t_ref[...],
                             preferred_element_type=jnp.float32)
                     + jnp.dot(h.astype(jnp.bfloat16), whh_t_ref[...],
                               preferred_element_type=jnp.float32)
                     + bias)                             # (Bt, 4H) f32
            # H is a multiple of 128, so these slices stay on (8,128) tile boundaries.
            i_g = sigm(gates[:, 0:H])
            f_g = sigm(gates[:, H:2 * H])
            g_g = jnp.tanh(gates[:, 2 * H:3 * H])
            o_g = sigm(gates[:, 3 * H:4 * H])
            c_new = f_g * c + i_g * g_g
            h_new = o_g * jnp.tanh(c_new)
            if mask_needed:
                # Padded timesteps (global t >= seq_len) are identity on the state.
                valid = (t_base + lt) < seq_len
                h_new = jnp.where(valid, h_new, h)
                c_new = jnp.where(valid, c_new, c)
            return (h_new, c_new)

        h, c = lax.fori_loop(0, t_chunk, step, (h_ref[...], c_ref[...]),
                             unroll=unroll)
        h_ref[...] = h
        c_ref[...] = c

        @pl.when(j == num_t - 1)
        def _():
            # Final linear: fc(hidden[-1]); bf16 MXU inputs, f32 accumulate + f32 bias.
            out_ref[...] = (jnp.dot(h_ref[...].astype(jnp.bfloat16), wfc_t_ref[...],
                                    preferred_element_type=jnp.float32)
                            + bfc_ref[...]).astype(out_ref.dtype)

    return kernel


def prepare_kernel_params(params):
    """One-time layout/dtype prep (hoisted out of the per-forward path)."""
    return {
        "embedding": params["embedding"].astype(jnp.bfloat16),        # (V, E)
        "wih_t": params["w_ih_rev"].T.astype(jnp.bfloat16),           # (E, 4H)
        "whh_t": params["w_hh_rev"].T.astype(jnp.bfloat16),           # (H, 4H)
        "b": (params["b_ih_rev"] + params["b_hh_rev"])[None, :].astype(jnp.float32),
        "wfc_t": params["w_fc"].T.astype(jnp.bfloat16),               # (H, O)
        "bfc": params["b_fc"][None, :].astype(jnp.float32),           # (1, O)
    }


def language_lstm_forward(x_ids, kparams):
    """Embedding gather (time-major) + padding in plain JAX; recurrence in Pallas."""
    B, T = x_ids.shape
    emb_tab = kparams["embedding"]
    E = emb_tab.shape[1]
    H = kparams["whh_t"].shape[0]
    O = kparams["wfc_t"].shape[1]
    assert H % 128 == 0, "gate slices must stay on (8,128) tile boundaries"

    # Gather directly into time-major (T, B, E); avoids a separate transpose pass.
    emb = jnp.take(emb_tab, x_ids.T, axis=0)                  # (T, B, E) bf16

    b_tile = _pick_b_tile(B)
    Bp = _round_up(B, b_tile)

    t_chunk = min(T, 32)
    num_t = -(-T // t_chunk)
    Tp = num_t * t_chunk

    if Bp != B or Tp != T:
        emb = jnp.pad(emb, ((0, Tp - T), (0, Bp - B), (0, 0)))

    # Unroll tied to batch tile: large tiles spill the 64-vreg file if over-unrolled.
    if b_tile <= 32:
        unroll = True
    elif b_tile <= 64:
        unroll = 4
    else:
        unroll = 2

    kernel = make_lstm_kernel(t_chunk, num_t, T, unroll)
    vmem_limit = _vmem_budget(t_chunk, b_tile, E, H, O)

    out = pl.pallas_call(
        kernel,
        out_shape=jax.ShapeDtypeStruct((Bp, O), jnp.float32),
        grid=(Bp // b_tile, num_t),
        in_specs=[
            # Time chunks walk the sequence in reverse order; BlockSpec double-buffers them.
            pl.BlockSpec((t_chunk, b_tile, E), lambda i, j: (num_t - 1 - j, i, 0)),
            pl.BlockSpec((E, 4 * H), lambda i, j: (0, 0)),        # W_ih^T (resident)
            pl.BlockSpec((H, 4 * H), lambda i, j: (0, 0)),        # W_hh^T (resident)
            pl.BlockSpec((1, 4 * H), lambda i, j: (0, 0)),        # combined LSTM bias
            pl.BlockSpec((H, O), lambda i, j: (0, 0)),            # W_fc^T
            pl.BlockSpec((1, O), lambda i, j: (0, 0)),            # fc bias
        ],
        # Same block across the time axis -> resident; written on the last time chunk.
        out_specs=pl.BlockSpec((b_tile, O), lambda i, j: (i, 0)),
        scratch_shapes=[
            pltpu.VMEM((b_tile, H), jnp.float32),                 # h state
            pltpu.VMEM((b_tile, H), jnp.float32),                 # c state
        ],
        compiler_params=pltpu.CompilerParams(
            dimension_semantics=("parallel", "arbitrary"),
            vmem_limit_bytes=vmem_limit,
        ),
    )(emb, kparams["wih_t"], kparams["whh_t"], kparams["b"],
      kparams["wfc_t"], kparams["bfc"])
    return out[:B]


def init_params(key, vocab_size, embed_dim, hidden_dim, output_dim):
    """Deterministic synthetic init matching the PyTorch module's parameter shapes."""
    ks = jax.random.split(key, 7)
    k_lstm = 1.0 / jnp.sqrt(hidden_dim)
    k_fc = 1.0 / jnp.sqrt(hidden_dim)
    return {
        "embedding": jax.random.normal(ks[0], (vocab_size, embed_dim), jnp.float32),
        "w_ih_rev": jax.random.uniform(ks[1], (4 * hidden_dim, embed_dim),
                                       jnp.float32, -k_lstm, k_lstm),
        "w_hh_rev": jax.random.uniform(ks[2], (4 * hidden_dim, hidden_dim),
                                       jnp.float32, -k_lstm, k_lstm),
        "b_ih_rev": jax.random.uniform(ks[3], (4 * hidden_dim,),
                                       jnp.float32, -k_lstm, k_lstm),
        "b_hh_rev": jax.random.uniform(ks[4], (4 * hidden_dim,),
                                       jnp.float32, -k_lstm, k_lstm),
        "w_fc": jax.random.uniform(ks[5], (output_dim, hidden_dim),
                                   jnp.float32, -k_fc, k_fc),
        "b_fc": jax.random.uniform(ks[6], (output_dim,),
                                   jnp.float32, -k_fc, k_fc),
    }


def reference_forward_f32(x_ids, params):
    """Pure-f32 JAX reference (faithful to the PyTorch module's math)."""
    emb = params["embedding"][x_ids]                         # (B, T, E)
    B, T, _ = emb.shape
    H = params["w_hh_rev"].shape[1]
    wih_t = params["w_ih_rev"].T
    whh_t = params["w_hh_rev"].T
    b = params["b_ih_rev"] + params["b_hh_rev"]
    h = jnp.zeros((B, H), jnp.float32)
    c = jnp.zeros((B, H), jnp.float32)
    for t in range(T - 1, -1, -1):                           # reverse direction
        gates = emb[:, t, :] @ wih_t + h @ whh_t + b
        i = jax.nn.sigmoid(gates[:, 0:H])
        f = jax.nn.sigmoid(gates[:, H:2 * H])
        g = jnp.tanh(gates[:, 2 * H:3 * H])
        o = jax.nn.sigmoid(gates[:, 3 * H:4 * H])
        c = f * c + i * g
        h = o * jnp.tanh(c)
    return h @ params["w_fc"].T + params["b_fc"]


def reference_forward_mirrored(x_ids, kparams):
    """Reference mirroring the kernel's precision (bf16 MXU inputs, f32 accumulate,
    sigmoid via the tanh identity)."""
    emb = jnp.take(kparams["embedding"], x_ids, axis=0)      # (B, T, E) bf16
    B, T, _ = emb.shape
    H = kparams["whh_t"].shape[0]

    def sigm(x):
        return 0.5 * jnp.tanh(0.5 * x) + 0.5

    h = jnp.zeros((B, H), jnp.float32)
    c = jnp.zeros((B, H), jnp.float32)
    for t in range(T - 1, -1, -1):
        gates = (jnp.dot(emb[:, t, :], kparams["wih_t"],
                         preferred_element_type=jnp.float32)
                 + jnp.dot(h.astype(jnp.bfloat16), kparams["whh_t"],
                           preferred_element_type=jnp.float32)
                 + kparams["b"])
        i = sigm(gates[:, 0:H])
        f = sigm(gates[:, H:2 * H])
        g = jnp.tanh(gates[:, 2 * H:3 * H])
        o = sigm(gates[:, 3 * H:4 * H])
        c = f * c + i * g
        h = o * jnp.tanh(c)
    return (jnp.dot(h.astype(jnp.bfloat16), kparams["wfc_t"],
                    preferred_element_type=jnp.float32)
            + kparams["bfc"])


if __name__ == "__main__":
    B, T = 2, 8
    vocab_size = 28          # e.g. 27 vocab chars + 1 padding index
    output_dim = 5           # number of languages

    key = jax.random.PRNGKey(0)
    k_params, k_ids = jax.random.split(key)
    params = init_params(k_params, vocab_size, EMBED_DIM, HIDDEN_DIM, output_dim)
    kparams = prepare_kernel_params(params)   # one-time transpose / bias-combine / bf16 cast
    x_ids = jax.random.randint(k_ids, (B, T), 0, vocab_size, dtype=jnp.int32)

    forward = jax.jit(language_lstm_forward)
    out = jax.block_until_ready(forward(x_ids, kparams))

    ref_bf16 = reference_forward_mirrored(x_ids, kparams)   # same precision as kernel
    ref_f32 = reference_forward_f32(x_ids, params)          # full-f32 PyTorch-faithful math

    assert out.shape == (B, output_dim)
    # Tight check vs. a reference with identical (bf16-in, f32-accum) precision:
    assert jnp.allclose(out, ref_bf16, atol=5e-3, rtol=5e-3)
    # Loose check vs. pure f32: bf16 MXU inputs drift ~1e-2 over the T-step recurrence.
    assert jnp.allclose(out, ref_f32, atol=1e-1, rtol=5e-2)
    print("KERNEL_OK")
</pallas_src>

<mosaic_0001>
module attributes {stable_mosaic.version = 11 : i64} {
  func.func @kernel(%arg0: i32, %arg1: i32, %arg2: memref<8x16x64xbf16, #tpu.memory_space<vmem>>, %arg3: memref<64x512xbf16, #tpu.memory_space<vmem>>, %arg4: memref<128x512xbf16, #tpu.memory_space<vmem>>, %arg5: memref<1x512xf32, #tpu.memory_space<vmem>>, %arg6: memref<128x5xbf16, #tpu.memory_space<vmem>>, %arg7: memref<1x5xf32, #tpu.memory_space<vmem>>, %arg8: memref<16x5xf32, #tpu.memory_space<vmem>>, %arg9: memref<16x128xf32, #tpu.memory_space<vmem>>, %arg10: memref<16x128xf32, #tpu.memory_space<vmem>>) attributes {dimension_semantics = [#tpu.dimension_semantics<parallel>, #tpu.dimension_semantics<arbitrary>], iteration_bounds = array<i64: 1, 1>, scalar_prefetch = 0 : i64, scratch_operands = 2 : i64, tpu.core_type = #tpu.core_type<tc>, window_params = [{transform_indices = @transform_0, window_bounds = array<i64: 8, 16, 64>}, {pipeline_mode = #tpu.pipeline_mode<synchronous>, transform_indices = @transform_1, window_bounds = array<i64: 64, 512>}, {pipeline_mode = #tpu.pipeline_mode<synchronous>, transform_indices = @transform_2, window_bounds = array<i64: 128, 512>}, {pipeline_mode = #tpu.pipeline_mode<synchronous>, transform_indices = @transform_3, window_bounds = array<i64: 1, 512>}, {pipeline_mode = #tpu.pipeline_mode<synchronous>, transform_indices = @transform_4, window_bounds = array<i64: 128, 5>}, {pipeline_mode = #tpu.pipeline_mode<synchronous>, transform_indices = @transform_5, window_bounds = array<i64: 1, 5>}, {transform_indices = @transform_6, window_bounds = array<i64: 16, 5>}]} {
    %c0_i32 = arith.constant 0 : i32
    %0 = arith.cmpi eq, %arg1, %c0_i32 : i32
    %1 = arith.extui %0 : i1 to i32
    %c0_i32_0 = arith.constant 0 : i32
    %2 = arith.cmpi ne, %1, %c0_i32_0 : i32
    scf.if %2 {
      %cst_156 = arith.constant 0.000000e+00 : f32
      %355 = vector.broadcast %cst_156 : f32 to vector<16x128xf32>
      %c0_157 = arith.constant 0 : index
      %c0_158 = arith.constant 0 : index
      %356 = vector.load %arg9[%c0_157, %c0_158] : memref<16x128xf32, #tpu.memory_space<vmem>>, vector<16x128xf32>
      tpu.vector_store %arg9[%c0_157, %c0_158], %355 {strides = array<i32>} : memref<16x128xf32, #tpu.memory_space<vmem>>, vector<16x128xf32>,
      %cst_159 = arith.constant 0.000000e+00 : f32
      %357 = vector.broadcast %cst_159 : f32 to vector<16x128xf32>
      %c0_160 = arith.constant 0 : index
      %c0_161 = arith.constant 0 : index
      %358 = vector.load %arg10[%c0_160, %c0_161] : memref<16x128xf32, #tpu.memory_space<vmem>>, vector<16x128xf32>
      tpu.vector_store %arg10[%c0_160, %c0_161], %357 {strides = array<i32>} : memref<16x128xf32, #tpu.memory_space<vmem>>, vector<16x128xf32>,
    } else {
    }
    %c0 = arith.constant 0 : index
    %c0_1 = arith.constant 0 : index
    %3 = vector.load %arg5[%c0, %c0_1] : memref<1x512xf32, #tpu.memory_space<vmem>>, vector<1x512xf32>
    %c0_2 = arith.constant 0 : index
    %c0_3 = arith.constant 0 : index
    %4 = vector.load %arg9[%c0_2, %c0_3] : memref<16x128xf32, #tpu.memory_space<vmem>>, vector<16x128xf32>
    %c0_4 = arith.constant 0 : index
    %c0_5 = arith.constant 0 : index
    %5 = vector.load %arg10[%c0_4, %c0_5] : memref<16x128xf32, #tpu.memory_space<vmem>>, vector<16x128xf32>
    %c0_i32_6 = arith.constant 0 : i32
    %c7_i32 = arith.constant 7 : i32
    %6 = arith.subi %c7_i32, %c0_i32_6 : i32
    %7 = arith.index_cast %6 : i32 to index
    %c0_7 = arith.constant 0 : index
    %c0_8 = arith.constant 0 : index
    %8 = vector.load %arg2[%7, %c0_7, %c0_8] : memref<8x16x64xbf16, #tpu.memory_space<vmem>>, vector<1x16x64xbf16>
    %9 = vector.shape_cast %8 : vector<1x16x64xbf16> to vector<16x64xbf16>
    %c0_9 = arith.constant 0 : index
    %c0_10 = arith.constant 0 : index
    %10 = vector.load %arg3[%c0_9, %c0_10] : memref<64x512xbf16, #tpu.memory_space<vmem>>, vector<64x512xbf16>
    %cst = arith.constant dense<0.000000e+00> : vector<16x512xf32>
    %11 = tpu.matmul %9, %10, %cst {dimension_numbers = #tpu.dot_dimension_numbers<[1], [0], [0], [1], [0, 0, 1, 1], [], []>} : vector<16x64xbf16>, vector<64x512xbf16>, vector<16x512xf32> -> vector<16x512xf32>
    %12 = arith.truncf %4 : vector<16x128xf32> to vector<16x128xbf16>
    %c0_11 = arith.constant 0 : index
    %c0_12 = arith.constant 0 : index
    %13 = vector.load %arg4[%c0_11, %c0_12] : memref<128x512xbf16, #tpu.memory_space<vmem>>, vector<128x512xbf16>
    %cst_13 = arith.constant dense<0.000000e+00> : vector<16x512xf32>
    %14 = tpu.matmul %12, %13, %cst_13 {dimension_numbers = #tpu.dot_dimension_numbers<[1], [0], [0], [1], [0, 0, 1, 1], [], []>} : vector<16x128xbf16>, vector<128x512xbf16>, vector<16x512xf32> -> vector<16x512xf32>
    %15 = arith.addf %11, %14 : vector<16x512xf32>
    %16 = vector.broadcast %3 : vector<1x512xf32> to vector<16x512xf32>
    %17 = arith.addf %15, %16 : vector<16x512xf32>
    %18 = vector.extract_strided_slice %17 {offsets = [0, 0], sizes = [16, 128], strides = [1, 1]} : vector<16x512xf32> to vector<16x128xf32>
    %cst_14 = arith.constant 5.000000e-01 : f32
    %19 = vector.broadcast %cst_14 : f32 to vector<16x128xf32>
    %20 = arith.mulf %19, %18 : vector<16x128xf32>
    %21 = math.tanh %20 : vector<16x128xf32>
    %cst_15 = arith.constant 5.000000e-01 : f32
    %22 = vector.broadcast %cst_15 : f32 to vector<16x128xf32>
    %23 = arith.mulf %22, %21 : vector<16x128xf32>
    %cst_16 = arith.constant 5.000000e-01 : f32
    %24 = vector.broadcast %cst_16 : f32 to vector<16x128xf32>
    %25 = arith.addf %23, %24 : vector<16x128xf32>
    %26 = vector.extract_strided_slice %17 {offsets = [0, 128], sizes = [16, 128], strides = [1, 1]} : vector<16x512xf32> to vector<16x128xf32>
    %cst_17 = arith.constant 5.000000e-01 : f32
    %27 = vector.broadcast %cst_17 : f32 to vector<16x128xf32>
    %28 = arith.mulf %27, %26 : vector<16x128xf32>
    %29 = math.tanh %28 : vector<16x128xf32>
    %cst_18 = arith.constant 5.000000e-01 : f32
    %30 = vector.broadcast %cst_18 : f32 to vector<16x128xf32>
    %31 = arith.mulf %30, %29 : vector<16x128xf32>
    %cst_19 = arith.constant 5.000000e-01 : f32
    %32 = vector.broadcast %cst_19 : f32 to vector<16x128xf32>
    %33 = arith.addf %31, %32 : vector<16x128xf32>
    %34 = vector.extract_strided_slice %17 {offsets = [0, 256], sizes = [16, 128], strides = [1, 1]} : vector<16x512xf32> to vector<16x128xf32>
    %35 = math.tanh %34 : vector<16x128xf32>
    %36 = vector.extract_strided_slice %17 {offsets = [0, 384], sizes = [16, 128], strides = [1, 1]} : vector<16x512xf32> to vector<16x128xf32>
    %cst_20 = arith.constant 5.000000e-01 : f32
    %37 = vector.broadcast %cst_20 : f32 to vector<16x128xf32>
    %38 = arith.mulf %37, %36 : vector<16x128xf32>
    %39 = math.tanh %38 : vector<16x128xf32>
    %cst_21 = arith.constant 5.000000e-01 : f32
    %40 = vector.broadcast %cst_21 : f32 to vector<16x128xf32>
    %41 = arith.mulf %40, %39 : vector<16x128xf32>
    %cst_22 = arith.constant 5.000000e-01 : f32
    %42 = vector.broadcast %cst_22 : f32 to vector<16x128xf32>
    %43 = arith.addf %41, %42 : vector<16x128xf32>
    %44 = arith.mulf %33, %5 : vector<16x128xf32>
    %45 = arith.mulf %25, %35 : vector<16x128xf32>
    %46 = arith.addf %44, %45 : vector<16x128xf32>
    %47 = math.tanh %46 : vector<16x128xf32>
    %48 = arith.mulf %43, %47 : vector<16x128xf32>
    %c1_i32 = arith.constant 1 : i32
    %c7_i32_23 = arith.constant 7 : i32
    %49 = arith.subi %c7_i32_23, %c1_i32 : i32
    %50 = arith.index_cast %49 : i32 to index
    %c0_24 = arith.constant 0 : index
    %c0_25 = arith.constant 0 : index
    %51 = vector.load %arg2[%50, %c0_24, %c0_25] : memref<8x16x64xbf16, #tpu.memory_space<vmem>>, vector<1x16x64xbf16>
    %52 = vector.shape_cast %51 : vector<1x16x64xbf16> to vector<16x64xbf16>
    %c0_26 = arith.constant 0 : index
    %c0_27 = arith.constant 0 : index
    %53 = vector.load %arg3[%c0_26, %c0_27] : memref<64x512xbf16, #tpu.memory_space<vmem>>, vector<64x512xbf16>
    %cst_28 = arith.constant dense<0.000000e+00> : vector<16x512xf32>
    %54 = tpu.matmul %52, %53, %cst_28 {dimension_numbers = #tpu.dot_dimension_numbers<[1], [0], [0], [1], [0, 0, 1, 1], [], []>} : vector<16x64xbf16>, vector<64x512xbf16>, vector<16x512xf32> -> vector<16x512xf32>
    %55 = arith.truncf %48 : vector<16x128xf32> to vector<16x128xbf16>
    %c0_29 = arith.constant 0 : index
    %c0_30 = arith.constant 0 : index
    %56 = vector.load %arg4[%c0_29, %c0_30] : memref<128x512xbf16, #tpu.memory_space<vmem>>, vector<128x512xbf16>
    %cst_31 = arith.constant dense<0.000000e+00> : vector<16x512xf32>
    %57 = tpu.matmul %55, %56, %cst_31 {dimension_numbers = #tpu.dot_dimension_numbers<[1], [0], [0], [1], [0, 0, 1, 1], [], []>} : vector<16x128xbf16>, vector<128x512xbf16>, vector<16x512xf32> -> vector<16x512xf32>
    %58 = arith.addf %54, %57 : vector<16x512xf32>
    %59 = vector.broadcast %3 : vector<1x512xf32> to vector<16x512xf32>
    %60 = arith.addf %58, %59 : vector<16x512xf32>
    %61 = vector.extract_strided_slice %60 {offsets = [0, 0], sizes = [16, 128], strides = [1, 1]} : vector<16x512xf32> to vector<16x128xf32>
    %cst_32 = arith.constant 5.000000e-01 : f32
    %62 = vector.broadcast %cst_32 : f32 to vector<16x128xf32>
    %63 = arith.mulf %62, %61 : vector<16x128xf32>
    %64 = math.tanh %63 : vector<16x128xf32>
    %cst_33 = arith.constant 5.000000e-01 : f32
    %65 = vector.broadcast %cst_33 : f32 to vector<16x128xf32>
    %66 = arith.mulf %65, %64 : vector<16x128xf32>
    %cst_34 = arith.constant 5.000000e-01 : f32
    %67 = vector.broadcast %cst_34 : f32 to vector<16x128xf32>
    %68 = arith.addf %66, %67 : vector<16x128xf32>
    %69 = vector.extract_strided_slice %60 {offsets = [0, 128], sizes = [16, 128], strides = [1, 1]} : vector<16x512xf32> to vector<16x128xf32>
    %cst_35 = arith.constant 5.000000e-01 : f32
    %70 = vector.broadcast %cst_35 : f32 to vector<16x128xf32>
    %71 = arith.mulf %70, %69 : vector<16x128xf32>
    %72 = math.tanh %71 : vector<16x128xf32>
    %cst_36 = arith.constant 5.000000e-01 : f32
    %73 = vector.broadcast %cst_36 : f32 to vector<16x128xf32>
    %74 = arith.mulf %73, %72 : vector<16x128xf32>
    %cst_37 = arith.constant 5.000000e-01 : f32
    %75 = vector.broadcast %cst_37 : f32 to vector<16x128xf32>
    %76 = arith.addf %74, %75 : vector<16x128xf32>
    %77 = vector.extract_strided_slice %60 {offsets = [0, 256], sizes = [16, 128], strides = [1, 1]} : vector<16x512xf32> to vector<16x128xf32>
    %78 = math.tanh %77 : vector<16x128xf32>
    %79 = vector.extract_strided_slice %60 {offsets = [0, 384], sizes = [16, 128], strides = [1, 1]} : vector<16x512xf32> to vector<16x128xf32>
    %cst_38 = arith.constant 5.000000e-01 : f32
    %80 = vector.broadcast %cst_38 : f32 to vector<16x128xf32>
    %81 = arith.mulf %80, %79 : vector<16x128xf32>
    %82 = math.tanh %81 : vector<16x128xf32>
    %cst_39 = arith.constant 5.000000e-01 : f32
    %83 = vector.broadcast %cst_39 : f32 to vector<16x128xf32>
    %84 = arith.mulf %83, %82 : vector<16x128xf32>
    %cst_40 = arith.constant 5.000000e-01 : f32
    %85 = vector.broadcast %cst_40 : f32 to vector<16x128xf32>
    %86 = arith.addf %84, %85 : vector<16x128xf32>
    %87 = arith.mulf %76, %46 : vector<16x128xf32>
    %88 = arith.mulf %68, %78 : vector<16x128xf32>
    %89 = arith.addf %87, %88 : vector<16x128xf32>
    %90 = math.tanh %89 : vector<16x128xf32>
    %91 = arith.mulf %86, %90 : vector<16x128xf32>
    %c2_i32 = arith.constant 2 : i32
    %c7_i32_41 = arith.constant 7 : i32
    %92 = arith.subi %c7_i32_41, %c2_i32 : i32
    %93 = arith.index_cast %92 : i32 to index
    %c0_42 = arith.constant 0 : index
    %c0_43 = arith.constant 0 : index
    %94 = vector.load %arg2[%93, %c0_42, %c0_43] : memref<8x16x64xbf16, #tpu.memory_space<vmem>>, vector<1x16x64xbf16>
    %95 = vector.shape_cast %94 : vector<1x16x64xbf16> to vector<16x64xbf16>
    %c0_44 = arith.constant 0 : index
    %c0_45 = arith.constant 0 : index
    %96 = vector.load %arg3[%c0_44, %c0_45] : memref<64x512xbf16, #tpu.memory_space<vmem>>, vector<64x512xbf16>
    %cst_46 = arith.constant dense<0.000000e+00> : vector<16x512xf32>
    %97 = tpu.matmul %95, %96, %cst_46 {dimension_numbers = #tpu.dot_dimension_numbers<[1], [0], [0], [1], [0, 0, 1, 1], [], []>} : vector<16x64xbf16>, vector<64x512xbf16>, vector<16x512xf32> -> vector<16x512xf32>
    %98 = arith.truncf %91 : vector<16x128xf32> to vector<16x128xbf16>
    %c0_47 = arith.constant 0 : index
    %c0_48 = arith.constant 0 : index
    %99 = vector.load %arg4[%c0_47, %c0_48] : memref<128x512xbf16, #tpu.memory_space<vmem>>, vector<128x512xbf16>
    %cst_49 = arith.constant dense<0.000000e+00> : vector<16x512xf32>
    %100 = tpu.matmul %98, %99, %cst_49 {dimension_numbers = #tpu.dot_dimension_numbers<[1], [0], [0], [1], [0, 0, 1, 1], [], []>} : vector<16x128xbf16>, vector<128x512xbf16>, vector<16x512xf32> -> vector<16x512xf32>
    %101 = arith.addf %97, %100 : vector<16x512xf32>
    %102 = vector.broadcast %3 : vector<1x512xf32> to vector<16x512xf32>
    %103 = arith.addf %101, %102 : vector<16x512xf32>
    %104 = vector.extract_strided_slice %103 {offsets = [0, 0], sizes = [16, 128], strides = [1, 1]} : vector<16x512xf32> to vector<16x128xf32>
    %cst_50 = arith.constant 5.000000e-01 : f32
    %105 = vector.broadcast %cst_50 : f32 to vector<16x128xf32>
    %106 = arith.mulf %105, %104 : vector<16x128xf32>
    %107 = math.tanh %106 : vector<16x128xf32>
    %cst_51 = arith.constant 5.000000e-01 : f32
    %108 = vector.broadcast %cst_51 : f32 to vector<16x128xf32>
    %109 = arith.mulf %108, %107 : vector<16x128xf32>
    %cst_52 = arith.constant 5.000000e-01 : f32
    %110 = vector.broadcast %cst_52 : f32 to vector<16x128xf32>
    %111 = arith.addf %109, %110 : vector<16x128xf32>
    %112 = vector.extract_strided_slice %103 {offsets = [0, 128], sizes = [16, 128], strides = [1, 1]} : vector<16x512xf32> to vector<16x128xf32>
    %cst_53 = arith.constant 5.000000e-01 : f32
    %113 = vector.broadcast %cst_53 : f32 to vector<16x128xf32>
    %114 = arith.mulf %113, %112 : vector<16x128xf32>
    %115 = math.tanh %114 : vector<16x128xf32>
    %cst_54 = arith.constant 5.000000e-01 : f32
    %116 = vector.broadcast %cst_54 : f32 to vector<16x128xf32>
    %117 = arith.mulf %116, %115 : vector<16x128xf32>
    %cst_55 = arith.constant 5.000000e-01 : f32
    %118 = vector.broadcast %cst_55 : f32 to vector<16x128xf32>
    %119 = arith.addf %117, %118 : vector<16x128xf32>
    %120 = vector.extract_strided_slice %103 {offsets = [0, 256], sizes = [16, 128], strides = [1, 1]} : vector<16x512xf32> to vector<16x128xf32>
    %121 = math.tanh %120 : vector<16x128xf32>
    %122 = vector.extract_strided_slice %103 {offsets = [0, 384], sizes = [16, 128], strides = [1, 1]} : vector<16x512xf32> to vector<16x128xf32>
    %cst_56 = arith.constant 5.000000e-01 : f32
    %123 = vector.broadcast %cst_56 : f32 to vector<16x128xf32>
    %124 = arith.mulf %123, %122 : vector<16x128xf32>
    %125 = math.tanh %124 : vector<16x128xf32>
    %cst_57 = arith.constant 5.000000e-01 : f32
    %126 = vector.broadcast %cst_57 : f32 to vector<16x128xf32>
    %127 = arith.mulf %126, %125 : vector<16x128xf32>
    %cst_58 = arith.constant 5.000000e-01 : f32
    %128 = vector.broadcast %cst_58 : f32 to vector<16x128xf32>
    %129 = arith.addf %127, %128 : vector<16x128xf32>
    %130 = arith.mulf %119, %89 : vector<16x128xf32>
    %131 = arith.mulf %111, %121 : vector<16x128xf32>
    %132 = arith.addf %130, %131 : vector<16x128xf32>
    %133 = math.tanh %132 : vector<16x128xf32>
    %134 = arith.mulf %129, %133 : vector<16x128xf32>
    %c3_i32 = arith.constant 3 : i32
    %c7_i32_59 = arith.constant 7 : i32
    %135 = arith.subi %c7_i32_59, %c3_i32 : i32
    %136 = arith.index_cast %135 : i32 to index
    %c0_60 = arith.constant 0 : index
    %c0_61 = arith.constant 0 : index
    %137 = vector.load %arg2[%136, %c0_60, %c0_61] : memref<8x16x64xbf16, #tpu.memory_space<vmem>>, vector<1x16x64xbf16>
    %138 = vector.shape_cast %137 : vector<1x16x64xbf16> to vector<16x64xbf16>
    %c0_62 = arith.constant 0 : index
    %c0_63 = arith.constant 0 : index
    %139 = vector.load %arg3[%c0_62, %c0_63] : memref<64x512xbf16, #tpu.memory_space<vmem>>, vector<64x512xbf16>
    %cst_64 = arith.constant dense<0.000000e+00> : vector<16x512xf32>
    %140 = tpu.matmul %138, %139, %cst_64 {dimension_numbers = #tpu.dot_dimension_numbers<[1], [0], [0], [1], [0, 0, 1, 1], [], []>} : vector<16x64xbf16>, vector<64x512xbf16>, vector<16x512xf32> -> vector<16x512xf32>
    %141 = arith.truncf %134 : vector<16x128xf32> to vector<16x128xbf16>
    %c0_65 = arith.constant 0 : index
    %c0_66 = arith.constant 0 : index
    %142 = vector.load %arg4[%c0_65, %c0_66] : memref<128x512xbf16, #tpu.memory_space<vmem>>, vector<128x512xbf16>
    %cst_67 = arith.constant dense<0.000000e+00> : vector<16x512xf32>
    %143 = tpu.matmul %141, %142, %cst_67 {dimension_numbers = #tpu.dot_dimension_numbers<[1], [0], [0], [1], [0, 0, 1, 1], [], []>} : vector<16x128xbf16>, vector<128x512xbf16>, vector<16x512xf32> -> vector<16x512xf32>
    %144 = arith.addf %140, %143 : vector<16x512xf32>
    %145 = vector.broadcast %3 : vector<1x512xf32> to vector<16x512xf32>
    %146 = arith.addf %144, %145 : vector<16x512xf32>
    %147 = vector.extract_strided_slice %146 {offsets = [0, 0], sizes = [16, 128], strides = [1, 1]} : vector<16x512xf32> to vector<16x128xf32>
    %cst_68 = arith.constant 5.000000e-01 : f32
    %148 = vector.broadcast %cst_68 : f32 to vector<16x128xf32>
    %149 = arith.mulf %148, %147 : vector<16x128xf32>
    %150 = math.tanh %149 : vector<16x128xf32>
    %cst_69 = arith.constant 5.000000e-01 : f32
    %151 = vector.broadcast %cst_69 : f32 to vector<16x128xf32>
    %152 = arith.mulf %151, %150 : vector<16x128xf32>
    %cst_70 = arith.constant 5.000000e-01 : f32
    %153 = vector.broadcast %cst_70 : f32 to vector<16x128xf32>
    %154 = arith.addf %152, %153 : vector<16x128xf32>
    %155 = vector.extract_strided_slice %146 {offsets = [0, 128], sizes = [16, 128], strides = [1, 1]} : vector<16x512xf32> to vector<16x128xf32>
    %cst_71 = arith.constant 5.000000e-01 : f32
    %156 = vector.broadcast %cst_71 : f32 to vector<16x128xf32>
    %157 = arith.mulf %156, %155 : vector<16x128xf32>
    %158 = math.tanh %157 : vector<16x128xf32>
    %cst_72 = arith.constant 5.000000e-01 : f32
    %159 = vector.broadcast %cst_72 : f32 to vector<16x128xf32>
    %160 = arith.mulf %159, %158 : vector<16x128xf32>
    %cst_73 = arith.constant 5.000000e-01 : f32
    %161 = vector.broadcast %cst_73 : f32 to vector<16x128xf32>
    %162 = arith.addf %160, %161 : vector<16x128xf32>
    %163 = vector.extract_strided_slice %146 {offsets = [0, 256], sizes = [16, 128], strides = [1, 1]} : vector<16x512xf32> to vector<16x128xf32>
    %164 = math.tanh %163 : vector<16x128xf32>
    %165 = vector.extract_strided_slice %146 {offsets = [0, 384], sizes = [16, 128], strides = [1, 1]} : vector<16x512xf32> to vector<16x128xf32>
    %cst_74 = arith.constant 5.000000e-01 : f32
    %166 = vector.broadcast %cst_74 : f32 to vector<16x128xf32>
    %167 = arith.mulf %166, %165 : vector<16x128xf32>
    %168 = math.tanh %167 : vector<16x128xf32>
    %cst_75 = arith.constant 5.000000e-01 : f32
    %169 = vector.broadcast %cst_75 : f32 to vector<16x128xf32>
    %170 = arith.mulf %169, %168 : vector<16x128xf32>
    %cst_76 = arith.constant 5.000000e-01 : f32
    %171 = vector.broadcast %cst_76 : f32 to vector<16x128xf32>
    %172 = arith.addf %170, %171 : vector<16x128xf32>
    %173 = arith.mulf %162, %132 : vector<16x128xf32>
    %174 = arith.mulf %154, %164 : vector<16x128xf32>
    %175 = arith.addf %173, %174 : vector<16x128xf32>
    %176 = math.tanh %175 : vector<16x128xf32>
    %177 = arith.mulf %172, %176 : vector<16x128xf32>
    %c4_i32 = arith.constant 4 : i32
    %c7_i32_77 = arith.constant 7 : i32
    %178 = arith.subi %c7_i32_77, %c4_i32 : i32
    %179 = arith.index_cast %178 : i32 to index
    %c0_78 = arith.constant 0 : index
    %c0_79 = arith.constant 0 : index
    %180 = vector.load %arg2[%179, %c0_78, %c0_79] : memref<8x16x64xbf16, #tpu.memory_space<vmem>>, vector<1x16x64xbf16>
    %181 = vector.shape_cast %180 : vector<1x16x64xbf16> to vector<16x64xbf16>
    %c0_80 = arith.constant 0 : index
    %c0_81 = arith.constant 0 : index
    %182 = vector.load %arg3[%c0_80, %c0_81] : memref<64x512xbf16, #tpu.memory_space<vmem>>, vector<64x512xbf16>
    %cst_82 = arith.constant dense<0.000000e+00> : vector<16x512xf32>
    %183 = tpu.matmul %181, %182, %cst_82 {dimension_numbers = #tpu.dot_dimension_numbers<[1], [0], [0], [1], [0, 0, 1, 1], [], []>} : vector<16x64xbf16>, vector<64x512xbf16>, vector<16x512xf32> -> vector<16x512xf32>
    %184 = arith.truncf %177 : vector<16x128xf32> to vector<16x128xbf16>
    %c0_83 = arith.constant 0 : index
    %c0_84 = arith.constant 0 : index
    %185 = vector.load %arg4[%c0_83, %c0_84] : memref<128x512xbf16, #tpu.memory_space<vmem>>, vector<128x512xbf16>
    %cst_85 = arith.constant dense<0.000000e+00> : vector<16x512xf32>
    %186 = tpu.matmul %184, %185, %cst_85 {dimension_numbers = #tpu.dot_dimension_numbers<[1], [0], [0], [1], [0, 0, 1, 1], [], []>} : vector<16x128xbf16>, vector<128x512xbf16>, vector<16x512xf32> -> vector<16x512xf32>
    %187 = arith.addf %183, %186 : vector<16x512xf32>
    %188 = vector.broadcast %3 : vector<1x512xf32> to vector<16x512xf32>
    %189 = arith.addf %187, %188 : vector<16x512xf32>
    %190 = vector.extract_strided_slice %189 {offsets = [0, 0], sizes = [16, 128], strides = [1, 1]} : vector<16x512xf32> to vector<16x128xf32>
    %cst_86 = arith.constant 5.000000e-01 : f32
    %191 = vector.broadcast %cst_86 : f32 to vector<16x128xf32>
    %192 = arith.mulf %191, %190 : vector<16x128xf32>
    %193 = math.tanh %192 : vector<16x128xf32>
    %cst_87 = arith.constant 5.000000e-01 : f32
    %194 = vector.broadcast %cst_87 : f32 to vector<16x128xf32>
    %195 = arith.mulf %194, %193 : vector<16x128xf32>
    %cst_88 = arith.constant 5.000000e-01 : f32
    %196 = vector.broadcast %cst_88 : f32 to vector<16x128xf32>
    %197 = arith.addf %195, %196 : vector<16x128xf32>
    %198 = vector.extract_strided_slice %189 {offsets = [0, 128], sizes = [16, 128], strides = [1, 1]} : vector<16x512xf32> to vector<16x128xf32>
    %cst_89 = arith.constant 5.000000e-01 : f32
    %199 = vector.broadcast %cst_89 : f32 to vector<16x128xf32>
    %200 = arith.mulf %199, %198 : vector<16x128xf32>
    %201 = math.tanh %200 : vector<16x128xf32>
    %cst_90 = arith.constant 5.000000e-01 : f32
    %202 = vector.broadcast %cst_90 : f32 to vector<16x128xf32>
    %203 = arith.mulf %202, %201 : vector<16x128xf32>
    %cst_91 = arith.constant 5.000000e-01 : f32
    %204 = vector.broadcast %cst_91 : f32 to vector<16x128xf32>
    %205 = arith.addf %203, %204 : vector<16x128xf32>
    %206 = vector.extract_strided_slice %189 {offsets = [0, 256], sizes = [16, 128], strides = [1, 1]} : vector<16x512xf32> to vector<16x128xf32>
    %207 = math.tanh %206 : vector<16x128xf32>
    %208 = vector.extract_strided_slice %189 {offsets = [0, 384], sizes = [16, 128], strides = [1, 1]} : vector<16x512xf32> to vector<16x128xf32>
    %cst_92 = arith.constant 5.000000e-01 : f32
    %209 = vector.broadcast %cst_92 : f32 to vector<16x128xf32>
    %210 = arith.mulf %209, %208 : vector<16x128xf32>
    %211 = math.tanh %210 : vector<16x128xf32>
    %cst_93 = arith.constant 5.000000e-01 : f32
    %212 = vector.broadcast %cst_93 : f32 to vector<16x128xf32>
    %213 = arith.mulf %212, %211 : vector<16x128xf32>
    %cst_94 = arith.constant 5.000000e-01 : f32
    %214 = vector.broadcast %cst_94 : f32 to vector<16x128xf32>
    %215 = arith.addf %213, %214 : vector<16x128xf32>
    %216 = arith.mulf %205, %175 : vector<16x128xf32>
    %217 = arith.mulf %197, %207 : vector<16x128xf32>
    %218 = arith.addf %216, %217 : vector<16x128xf32>
    %219 = math.tanh %218 : vector<16x128xf32>
    %220 = arith.mulf %215, %219 : vector<16x128xf32>
    %c5_i32 = arith.constant 5 : i32
    %c7_i32_95 = arith.constant 7 : i32
    %221 = arith.subi %c7_i32_95, %c5_i32 : i32
    %222 = arith.index_cast %221 : i32 to index
    %c0_96 = arith.constant 0 : index
    %c0_97 = arith.constant 0 : index
    %223 = vector.load %arg2[%222, %c0_96, %c0_97] : memref<8x16x64xbf16, #tpu.memory_space<vmem>>, vector<1x16x64xbf16>
    %224 = vector.shape_cast %223 : vector<1x16x64xbf16> to vector<16x64xbf16>
    %c0_98 = arith.constant 0 : index
    %c0_99 = arith.constant 0 : index
    %225 = vector.load %arg3[%c0_98, %c0_99] : memref<64x512xbf16, #tpu.memory_space<vmem>>, vector<64x512xbf16>
    %cst_100 = arith.constant dense<0.000000e+00> : vector<16x512xf32>
    %226 = tpu.matmul %224, %225, %cst_100 {dimension_numbers = #tpu.dot_dimension_numbers<[1], [0], [0], [1], [0, 0, 1, 1], [], []>} : vector<16x64xbf16>, vector<64x512xbf16>, vector<16x512xf32> -> vector<16x512xf32>
    %227 = arith.truncf %220 : vector<16x128xf32> to vector<16x128xbf16>
    %c0_101 = arith.constant 0 : index
    %c0_102 = arith.constant 0 : index
    %228 = vector.load %arg4[%c0_101, %c0_102] : memref<128x512xbf16, #tpu.memory_space<vmem>>, vector<128x512xbf16>
    %cst_103 = arith.constant dense<0.000000e+00> : vector<16x512xf32>
    %229 = tpu.matmul %227, %228, %cst_103 {dimension_numbers = #tpu.dot_dimension_numbers<[1], [0], [0], [1], [0, 0, 1, 1], [], []>} : vector<16x128xbf16>, vector<128x512xbf16>, vector<16x512xf32> -> vector<16x512xf32>
    %230 = arith.addf %226, %229 : vector<16x512xf32>
    %231 = vector.broadcast %3 : vector<1x512xf32> to vector<16x512xf32>
    %232 = arith.addf %230, %231 : vector<16x512xf32>
    %233 = vector.extract_strided_slice %232 {offsets = [0, 0], sizes = [16, 128], strides = [1, 1]} : vector<16x512xf32> to vector<16x128xf32>
    %cst_104 = arith.constant 5.000000e-01 : f32
    %234 = vector.broadcast %cst_104 : f32 to vector<16x128xf32>
    %235 = arith.mulf %234, %233 : vector<16x128xf32>
    %236 = math.tanh %235 : vector<16x128xf32>
    %cst_105 = arith.constant 5.000000e-01 : f32
    %237 = vector.broadcast %cst_105 : f32 to vector<16x128xf32>
    %238 = arith.mulf %237, %236 : vector<16x128xf32>
    %cst_106 = arith.constant 5.000000e-01 : f32
    %239 = vector.broadcast %cst_106 : f32 to vector<16x128xf32>
    %240 = arith.addf %238, %239 : vector<16x128xf32>
    %241 = vector.extract_strided_slice %232 {offsets = [0, 128], sizes = [16, 128], strides = [1, 1]} : vector<16x512xf32> to vector<16x128xf32>
    %cst_107 = arith.constant 5.000000e-01 : f32
    %242 = vector.broadcast %cst_107 : f32 to vector<16x128xf32>
    %243 = arith.mulf %242, %241 : vector<16x128xf32>
    %244 = math.tanh %243 : vector<16x128xf32>
    %cst_108 = arith.constant 5.000000e-01 : f32
    %245 = vector.broadcast %cst_108 : f32 to vector<16x128xf32>
    %246 = arith.mulf %245, %244 : vector<16x128xf32>
    %cst_109 = arith.constant 5.000000e-01 : f32
    %247 = vector.broadcast %cst_109 : f32 to vector<16x128xf32>
    %248 = arith.addf %246, %247 : vector<16x128xf32>
    %249 = vector.extract_strided_slice %232 {offsets = [0, 256], sizes = [16, 128], strides = [1, 1]} : vector<16x512xf32> to vector<16x128xf32>
    %250 = math.tanh %249 : vector<16x128xf32>
    %251 = vector.extract_strided_slice %232 {offsets = [0, 384], sizes = [16, 128], strides = [1, 1]} : vector<16x512xf32> to vector<16x128xf32>
    %cst_110 = arith.constant 5.000000e-01 : f32
    %252 = vector.broadcast %cst_110 : f32 to vector<16x128xf32>
    %253 = arith.mulf %252, %251 : vector<16x128xf32>
    %254 = math.tanh %253 : vector<16x128xf32>
    %cst_111 = arith.constant 5.000000e-01 : f32
    %255 = vector.broadcast %cst_111 : f32 to vector<16x128xf32>
    %256 = arith.mulf %255, %254 : vector<16x128xf32>
    %cst_112 = arith.constant 5.000000e-01 : f32
    %257 = vector.broadcast %cst_112 : f32 to vector<16x128xf32>
    %258 = arith.addf %256, %257 : vector<16x128xf32>
    %259 = arith.mulf %248, %218 : vector<16x128xf32>
    %260 = arith.mulf %240, %250 : vector<16x128xf32>
    %261 = arith.addf %259, %260 : vector<16x128xf32>
    %262 = math.tanh %261 : vector<16x128xf32>
    %263 = arith.mulf %258, %262 : vector<16x128xf32>
    %c6_i32 = arith.constant 6 : i32
    %c7_i32_113 = arith.constant 7 : i32
    %264 = arith.subi %c7_i32_113, %c6_i32 : i32
    %265 = arith.index_cast %264 : i32 to index
    %c0_114 = arith.constant 0 : index
    %c0_115 = arith.constant 0 : index
    %266 = vector.load %arg2[%265, %c0_114, %c0_115] : memref<8x16x64xbf16, #tpu.memory_space<vmem>>, vector<1x16x64xbf16>
    %267 = vector.shape_cast %266 : vector<1x16x64xbf16> to vector<16x64xbf16>
    %c0_116 = arith.constant 0 : index
    %c0_117 = arith.constant 0 : index
    %268 = vector.load %arg3[%c0_116, %c0_117] : memref<64x512xbf16, #tpu.memory_space<vmem>>, vector<64x512xbf16>
    %cst_118 = arith.constant dense<0.000000e+00> : vector<16x512xf32>
    %269 = tpu.matmul %267, %268, %cst_118 {dimension_numbers = #tpu.dot_dimension_numbers<[1], [0], [0], [1], [0, 0, 1, 1], [], []>} : vector<16x64xbf16>, vector<64x512xbf16>, vector<16x512xf32> -> vector<16x512xf32>
    %270 = arith.truncf %263 : vector<16x128xf32> to vector<16x128xbf16>
    %c0_119 = arith.constant 0 : index
    %c0_120 = arith.constant 0 : index
    %271 = vector.load %arg4[%c0_119, %c0_120] : memref<128x512xbf16, #tpu.memory_space<vmem>>, vector<128x512xbf16>
    %cst_121 = arith.constant dense<0.000000e+00> : vector<16x512xf32>
    %272 = tpu.matmul %270, %271, %cst_121 {dimension_numbers = #tpu.dot_dimension_numbers<[1], [0], [0], [1], [0, 0, 1, 1], [], []>} : vector<16x128xbf16>, vector<128x512xbf16>, vector<16x512xf32> -> vector<16x512xf32>
    %273 = arith.addf %269, %272 : vector<16x512xf32>
    %274 = vector.broadcast %3 : vector<1x512xf32> to vector<16x512xf32>
    %275 = arith.addf %273, %274 : vector<16x512xf32>
    %276 = vector.extract_strided_slice %275 {offsets = [0, 0], sizes = [16, 128], strides = [1, 1]} : vector<16x512xf32> to vector<16x128xf32>
    %cst_122 = arith.constant 5.000000e-01 : f32
    %277 = vector.broadcast %cst_122 : f32 to vector<16x128xf32>
    %278 = arith.mulf %277, %276 : vector<16x128xf32>
    %279 = math.tanh %278 : vector<16x128xf32>
    %cst_123 = arith.constant 5.000000e-01 : f32
    %280 = vector.broadcast %cst_123 : f32 to vector<16x128xf32>
    %281 = arith.mulf %280, %279 : vector<16x128xf32>
    %cst_124 = arith.constant 5.000000e-01 : f32
    %282 = vector.broadcast %cst_124 : f32 to vector<16x128xf32>
    %283 = arith.addf %281, %282 : vector<16x128xf32>
    %284 = vector.extract_strided_slice %275 {offsets = [0, 128], sizes = [16, 128], strides = [1, 1]} : vector<16x512xf32> to vector<16x128xf32>
    %cst_125 = arith.constant 5.000000e-01 : f32
    %285 = vector.broadcast %cst_125 : f32 to vector<16x128xf32>
    %286 = arith.mulf %285, %284 : vector<16x128xf32>
    %287 = math.tanh %286 : vector<16x128xf32>
    %cst_126 = arith.constant 5.000000e-01 : f32
    %288 = vector.broadcast %cst_126 : f32 to vector<16x128xf32>
    %289 = arith.mulf %288, %287 : vector<16x128xf32>
    %cst_127 = arith.constant 5.000000e-01 : f32
    %290 = vector.broadcast %cst_127 : f32 to vector<16x128xf32>
    %291 = arith.addf %289, %290 : vector<16x128xf32>
    %292 = vector.extract_strided_slice %275 {offsets = [0, 256], sizes = [16, 128], strides = [1, 1]} : vector<16x512xf32> to vector<16x128xf32>
    %293 = math.tanh %292 : vector<16x128xf32>
    %294 = vector.extract_strided_slice %275 {offsets = [0, 384], sizes = [16, 128], strides = [1, 1]} : vector<16x512xf32> to vector<16x128xf32>
    %cst_128 = arith.constant 5.000000e-01 : f32
    %295 = vector.broadcast %cst_128 : f32 to vector<16x128xf32>
    %296 = arith.mulf %295, %294 : vector<16x128xf32>
    %297 = math.tanh %296 : vector<16x128xf32>
    %cst_129 = arith.constant 5.000000e-01 : f32
    %298 = vector.broadcast %cst_129 : f32 to vector<16x128xf32>
    %299 = arith.mulf %298, %297 : vector<16x128xf32>
    %cst_130 = arith.constant 5.000000e-01 : f32
    %300 = vector.broadcast %cst_130 : f32 to vector<16x128xf32>
    %301 = arith.addf %299, %300 : vector<16x128xf32>
    %302 = arith.mulf %291, %261 : vector<16x128xf32>
    %303 = arith.mulf %283, %293 : vector<16x128xf32>
    %304 = arith.addf %302, %303 : vector<16x128xf32>
    %305 = math.tanh %304 : vector<16x128xf32>
    %306 = arith.mulf %301, %305 : vector<16x128xf32>
    %c7_i32_131 = arith.constant 7 : i32
    %c7_i32_132 = arith.constant 7 : i32
    %307 = arith.subi %c7_i32_132, %c7_i32_131 : i32
    %308 = arith.index_cast %307 : i32 to index
    %c0_133 = arith.constant 0 : index
    %c0_134 = arith.constant 0 : index
    %309 = vector.load %arg2[%308, %c0_133, %c0_134] : memref<8x16x64xbf16, #tpu.memory_space<vmem>>, vector<1x16x64xbf16>
    %310 = vector.shape_cast %309 : vector<1x16x64xbf16> to vector<16x64xbf16>
    %c0_135 = arith.constant 0 : index
    %c0_136 = arith.constant 0 : index
    %311 = vector.load %arg3[%c0_135, %c0_136] : memref<64x512xbf16, #tpu.memory_space<vmem>>, vector<64x512xbf16>
    %cst_137 = arith.constant dense<0.000000e+00> : vector<16x512xf32>
    %312 = tpu.matmul %310, %311, %cst_137 {dimension_numbers = #tpu.dot_dimension_numbers<[1], [0], [0], [1], [0, 0, 1, 1], [], []>} : vector<16x64xbf16>, vector<64x512xbf16>, vector<16x512xf32> -> vector<16x512xf32>
    %313 = arith.truncf %306 : vector<16x128xf32> to vector<16x128xbf16>
    %c0_138 = arith.constant 0 : index
    %c0_139 = arith.constant 0 : index
    %314 = vector.load %arg4[%c0_138, %c0_139] : memref<128x512xbf16, #tpu.memory_space<vmem>>, vector<128x512xbf16>
    %cst_140 = arith.constant dense<0.000000e+00> : vector<16x512xf32>
    %315 = tpu.matmul %313, %314, %cst_140 {dimension_numbers = #tpu.dot_dimension_numbers<[1], [0], [0], [1], [0, 0, 1, 1], [], []>} : vector<16x128xbf16>, vector<128x512xbf16>, vector<16x512xf32> -> vector<16x512xf32>
    %316 = arith.addf %312, %315 : vector<16x512xf32>
    %317 = vector.broadcast %3 : vector<1x512xf32> to vector<16x512xf32>
    %318 = arith.addf %316, %317 : vector<16x512xf32>
    %319 = vector.extract_strided_slice %318 {offsets = [0, 0], sizes = [16, 128], strides = [1, 1]} : vector<16x512xf32> to vector<16x128xf32>
    %cst_141 = arith.constant 5.000000e-01 : f32
    %320 = vector.broadcast %cst_141 : f32 to vector<16x128xf32>
    %321 = arith.mulf %320, %319 : vector<16x128xf32>
    %322 = math.tanh %321 : vector<16x128xf32>
    %cst_142 = arith.constant 5.000000e-01 : f32
    %323 = vector.broadcast %cst_142 : f32 to vector<16x128xf32>
    %324 = arith.mulf %323, %322 : vector<16x128xf32>
    %cst_143 = arith.constant 5.000000e-01 : f32
    %325 = vector.broadcast %cst_143 : f32 to vector<16x128xf32>
    %326 = arith.addf %324, %325 : vector<16x128xf32>
    %327 = vector.extract_strided_slice %318 {offsets = [0, 128], sizes = [16, 128], strides = [1, 1]} : vector<16x512xf32> to vector<16x128xf32>
    %cst_144 = arith.constant 5.000000e-01 : f32
    %328 = vector.broadcast %cst_144 : f32 to vector<16x128xf32>
    %329 = arith.mulf %328, %327 : vector<16x128xf32>
    %330 = math.tanh %329 : vector<16x128xf32>
    %cst_145 = arith.constant 5.000000e-01 : f32
    %331 = vector.broadcast %cst_145 : f32 to vector<16x128xf32>
    %332 = arith.mulf %331, %330 : vector<16x128xf32>
    %cst_146 = arith.constant 5.000000e-01 : f32
    %333 = vector.broadcast %cst_146 : f32 to vector<16x128xf32>
    %334 = arith.addf %332, %333 : vector<16x128xf32>
    %335 = vector.extract_strided_slice %318 {offsets = [0, 256], sizes = [16, 128], strides = [1, 1]} : vector<16x512xf32> to vector<16x128xf32>
    %336 = math.tanh %335 : vector<16x128xf32>
    %337 = vector.extract_strided_slice %318 {offsets = [0, 384], sizes = [16, 128], strides = [1, 1]} : vector<16x512xf32> to vector<16x128xf32>
    %cst_147 = arith.constant 5.000000e-01 : f32
    %338 = vector.broadcast %cst_147 : f32 to vector<16x128xf32>
    %339 = arith.mulf %338, %337 : vector<16x128xf32>
    %340 = math.tanh %339 : vector<16x128xf32>
    %cst_148 = arith.constant 5.000000e-01 : f32
    %341 = vector.broadcast %cst_148 : f32 to vector<16x128xf32>
    %342 = arith.mulf %341, %340 : vector<16x128xf32>
    %cst_149 = arith.constant 5.000000e-01 : f32
    %343 = vector.broadcast %cst_149 : f32 to vector<16x128xf32>
    %344 = arith.addf %342, %343 : vector<16x128xf32>
    %345 = arith.mulf %334, %304 : vector<16x128xf32>
    %346 = arith.mulf %326, %336 : vector<16x128xf32>
    %347 = arith.addf %345, %346 : vector<16x128xf32>
    %348 = math.tanh %347 : vector<16x128xf32>
    %349 = arith.mulf %344, %348 : vector<16x128xf32>
    %c8_i32 = arith.constant 8 : i32
    %c0_150 = arith.constant 0 : index
    %c0_151 = arith.constant 0 : index
    %350 = vector.load %arg9[%c0_150, %c0_151] : memref<16x128xf32, #tpu.memory_space<vmem>>, vector<16x128xf32>
    tpu.vector_store %arg9[%c0_150, %c0_151], %349 {strides = array<i32>} : memref<16x128xf32, #tpu.memory_space<vmem>>, vector<16x128xf32>,
    %c0_152 = arith.constant 0 : index
    %c0_153 = arith.constant 0 : index
    %351 = vector.load %arg10[%c0_152, %c0_153] : memref<16x128xf32, #tpu.memory_space<vmem>>, vector<16x128xf32>
    tpu.vector_store %arg10[%c0_152, %c0_153], %347 {strides = array<i32>} : memref<16x128xf32, #tpu.memory_space<vmem>>, vector<16x128xf32>,
    %c0_i32_154 = arith.constant 0 : i32
    %352 = arith.cmpi eq, %arg1, %c0_i32_154 : i32
    %353 = arith.extui %352 : i1 to i32
    %c0_i32_155 = arith.constant 0 : i32
    %354 = arith.cmpi ne, %353, %c0_i32_155 : i32
    scf.if %354 {
      %c0_156 = arith.constant 0 : index
      %c0_157 = arith.constant 0 : index
      %355 = vector.load %arg9[%c0_156, %c0_157] : memref<16x128xf32, #tpu.memory_space<vmem>>, vector<16x128xf32>
      %356 = arith.truncf %355 : vector<16x128xf32> to vector<16x128xbf16>
      %c0_158 = arith.constant 0 : index
      %c0_159 = arith.constant 0 : index
      %357 = vector.load %arg6[%c0_158, %c0_159] : memref<128x5xbf16, #tpu.memory_space<vmem>>, vector<128x5xbf16>
      %cst_160 = arith.constant dense<0.000000e+00> : vector<16x5xf32>
      %358 = tpu.matmul %356, %357, %cst_160 {dimension_numbers = #tpu.dot_dimension_numbers<[1], [0], [0], [1], [0, 0, 1, 1], [], []>} : vector<16x128xbf16>, vector<128x5xbf16>, vector<16x5xf32> -> vector<16x5xf32>
      %c0_161 = arith.constant 0 : index
      %c0_162 = arith.constant 0 : index
      %359 = vector.load %arg7[%c0_161, %c0_162] : memref<1x5xf32, #tpu.memory_space<vmem>>, vector<1x5xf32>
      %360 = vector.broadcast %359 : vector<1x5xf32> to vector<16x5xf32>
      %361 = arith.addf %358, %360 : vector<16x5xf32>
      %c0_163 = arith.constant 0 : index
      %c0_164 = arith.constant 0 : index
      %362 = vector.load %arg8[%c0_163, %c0_164] : memref<16x5xf32, #tpu.memory_space<vmem>>, vector<16x5xf32>
      tpu.vector_store %arg8[%c0_163, %c0_164], %361 {strides = array<i32>} : memref<16x5xf32, #tpu.memory_space<vmem>>, vector<16x5xf32>,
    } else {
    }
    return
  }
  func.func @transform_0(%arg0: i32, %arg1: i32) -> (i32, i32, i32) {
    %c0_i32 = arith.constant 0 : i32
    %0 = arith.subi %c0_i32, %arg1 : i32
    %c0_i32_0 = arith.constant 0 : i32
    %c0_i32_1 = arith.constant 0 : i32
    return %0, %arg0, %c0_i32_0 : i32, i32, i32
  }
  func.func @transform_1(%arg0: i32, %arg1: i32) -> (i32, i32) {
    %c0_i32 = arith.constant 0 : i32
    %c0_i32_0 = arith.constant 0 : i32
    %c0_i32_1 = arith.constant 0 : i32
    return %c0_i32, %c0_i32_0 : i32, i32
  }
  func.func @transform_2(%arg0: i32, %arg1: i32) -> (i32, i32) {
    %c0_i32 = arith.constant 0 : i32
    %c0_i32_0 = arith.constant 0 : i32
    %c0_i32_1 = arith.constant 0 : i32
    return %c0_i32, %c0_i32_0 : i32, i32
  }
  func.func @transform_3(%arg0: i32, %arg1: i32) -> (i32, i32) {
    %c0_i32 = arith.constant 0 : i32
    %c0_i32_0 = arith.constant 0 : i32
    %c0_i32_1 = arith.constant 0 : i32
    return %c0_i32, %c0_i32_0 : i32, i32
  }
  func.func @transform_4(%arg0: i32, %arg1: i32) -> (i32, i32) {
    %c0_i32 = arith.constant 0 : i32
    %c0_i32_0 = arith.constant 0 : i32
    %c0_i32_1 = arith.constant 0 : i32
    return %c0_i32, %c0_i32_0 : i32, i32
  }
  func.func @transform_5(%arg0: i32, %arg1: i32) -> (i32, i32) {
    %c0_i32 = arith.constant 0 : i32
    %c0_i32_0 = arith.constant 0 : i32
    %c0_i32_1 = arith.constant 0 : i32
    return %c0_i32, %c0_i32_0 : i32, i32
  }
  func.func @transform_6(%arg0: i32, %arg1: i32) -> (i32, i32) {
    %c0_i32 = arith.constant 0 : i32
    %c0_i32_0 = arith.constant 0 : i32
    return %arg0, %c0_i32 : i32, i32
  }
}

</mosaic_0001>

<llo_original>
// kernel: language_lstm_forward.1
$region0: #{language_lstm_forward.1}
  #allocation0 [shape = 'u32[]', space=smem, size = 0x4, offset = 0x4, fixed_abs, tag = 'smem constant byte address 0x4 - core index']
  #allocation1 [shape = 'u32[144,128]{1,0:T(1,128)}', space=vmem, size = 0x12000, scoped, tag = 'internal scratch']
  #allocation2 [shape = 'f32[16,128]{1,0:T(8,128)}', space=vmem, size = 0x2000, scoped, tag = 'scratch operand']
  #allocation3 [shape = 'f32[16,128]{1,0:T(8,128)}', space=vmem, size = 0x2000, scoped, tag = 'scratch operand']
  %s0 = inlined_call_operand.vmem [shape: bf16[8,16,64], index: 0, kind: input, shape index: {}]
  %s1 = inlined_call_operand.hbm [shape: bf16[64,512], index: 1, kind: input, shape index: {}]
  %s2 = inlined_call_operand.vmem [shape: bf16[128,512], index: 2, kind: input, shape index: {}]
  %s3 = inlined_call_operand.vmem [shape: f32[1,512], index: 3, kind: input, shape index: {}]
  %s4 = inlined_call_operand.vmem [shape: bf16[128,5], index: 4, kind: input, shape index: {}]
  %s5 = inlined_call_operand.vmem [shape: f32[1,5], index: 5, kind: input, shape index: {}]
  %s6 = inlined_call_operand.vmem [shape: f32[16,5], index: 6, kind: output, shape index: {}]
  %s7 = sld [smem:[#allocation0]]
  $region46: #{language_lstm_forward.1} parent=0
    _
  %s9 = ssub.s32 1, %s7
  %s10 = scalar_select 0, %s9, %s7
  $region1: #{language_lstm_forward.1} parent=0
    #allocation4 [shape = 'u8[65536]{0}', space=vmem, size = 0x10000, scoped, tag = 'input window, operand 1, single buffered']
    #allocation5 [shape = 's32[1]{0}', space=sflag, size = 0x4, scoped, tag = 'scoped memory for language_lstm_forward.1']
    %11 = vsyncpa [#allocation5], 0
    // Predicated region
    $region2: #{language_lstm_forward.1} parent=1 // pred_check
      _
    $region3: #{language_lstm_forward.1} parent=1 // pred_check_branch
      %13 = sbr.rel (0) target = $region5
    $region4: #{language_lstm_forward.1} parent=1 // pred_region
      %s14 = ssub.s32 0, 0
      %s15 = smul.u32 8, %s14
      %p16 = scmp.lt.s32.totalorder %s15, 7
      %s17 = scalar_select %p16, %s15, 7
      %s18 = smul.addr %s17, 2
      %s19 = smul.addr %s18, 4
      %s20 = scalar_lea.vmem %s0, %s19
      %s21 = ssub.s32 0, 0
      %s22 = smul.u32 8, %s21
    $region5: #{language_lstm_forward.1} parent=1 // pred_fallthru
      _
    // Predicated region
    $region6: #{language_lstm_forward.1} parent=1 // pred_check
      _
    $region7: #{language_lstm_forward.1} parent=1 // pred_check_branch
      %24 = sbr.rel (0) target = $region9
    $region8: #{language_lstm_forward.1} parent=1 // pred_region
      %s26 = ssub.s32 2048, 2048
      %27 = vsyncadd [#allocation5], %s26
      %s28 = sshll.u32 [#allocation4], 4
      %s29 = int_to_ptr.vmem [resolvable:$true] %s28
      %34 = dma.hbm_to_vmem [thread:$0]  %s1, 2048, %s29, [#allocation5], 256, 256, 16
    $region9: #{language_lstm_forward.1} parent=1 // pred_fallthru
      _
    // Predicated region
    $region10: #{language_lstm_forward.1} parent=1 // pred_check
      _
    $region11: #{language_lstm_forward.1} parent=1 // pred_check_branch
      %36 = sbr.rel (0) target = $region13
    $region12: #{language_lstm_forward.1} parent=1 // pred_region
      _
    $region13: #{language_lstm_forward.1} parent=1 // pred_fallthru
      _
    // Predicated region
    $region14: #{language_lstm_forward.1} parent=1 // pred_check
      _
    $region15: #{language_lstm_forward.1} parent=1 // pred_check_branch
      %38 = sbr.rel (0) target = $region17
    $region16: #{language_lstm_forward.1} parent=1 // pred_region
      _
    $region17: #{language_lstm_forward.1} parent=1 // pred_fallthru
      _
    // Predicated region
    $region18: #{language_lstm_forward.1} parent=1 // pred_check
      _
    $region19: #{language_lstm_forward.1} parent=1 // pred_check_branch
      %40 = sbr.rel (0) target = $region21
    $region20: #{language_lstm_forward.1} parent=1 // pred_region
      _
    $region21: #{language_lstm_forward.1} parent=1 // pred_fallthru
      _
    // Predicated region
    $region22: #{language_lstm_forward.1} parent=1 // pred_check
      _
    $region23: #{language_lstm_forward.1} parent=1 // pred_check_branch
      %42 = sbr.rel (0) target = $region25
    $region24: #{language_lstm_forward.1} parent=1 // pred_region
      _
    $region25: #{language_lstm_forward.1} parent=1 // pred_fallthru
      _
    // Predicated region
    $region26: #{language_lstm_forward.1} parent=1 // pred_check
      _
    $region27: #{language_lstm_forward.1} parent=1 // pred_check_branch
      %44 = sbr.rel (0) target = $region29
    $region28: #{language_lstm_forward.1} parent=1 // pred_region
      %45 = dma.done [#allocation5], 2048
    $region29: #{language_lstm_forward.1} parent=1 // pred_fallthru
      _
    %s46 = ssub.s32 0, 0
    %s47 = smul.u32 8, %s46
    %p48 = scmp.lt.s32.totalorder %s47, 7
    %s49 = scalar_select %p48, %s47, 7
    %s50 = smul.addr %s49, 2
    %s51 = smul.addr %s50, 4
    %s52 = scalar_lea.vmem %s0, %s51
    %s53 = ssub.s32 0, 0
    %s54 = smul.u32 8, %s53
    %p55 = scmp.lt.s32.totalorder %s54, 7
    %s56 = scalar_select %p55, %s54, 7
    %s57 = smul.addr %s56, 2
    %s58 = smul.addr %s57, 4
    %s59 = scalar_lea.vmem %s0, %s58
    %s60 = ssub.s32 0, 0
    %s61 = smul.u32 8, %s60
    %p63 = scmp.eq.s32.totalorder 0, 0
    // Predicated region
    $region30: #{language_lstm_forward.1} parent=1 // pred_check
      %p64 = pneg %p63
    $region31: #{language_lstm_forward.1} parent=1 // pred_check_branch
      %66 = sbr.rel (%p64) target = $region33
    $region32: #{language_lstm_forward.1} parent=1 // pred_region
      %67 = vst [vmem:[#allocation2] sm:$0xff] 0.0
      %68 = vst [vmem:[#allocation2 + $0x8] sm:$0xff] 0.0
      %69 = vst [vmem:[#allocation3] sm:$0xff] 0.0
      %70 = vst [vmem:[#allocation3 + $0x8] sm:$0xff] 0.0
    $region33: #{language_lstm_forward.1} parent=1 // pred_fallthru
      _
    %v71 = vld [vmem:[%s3] sm:$0xf]
    %v72 = vld [vmem:[#allocation2] sm:$0xff]
    %v73 = vld [vmem:[#allocation2 + $0x8] sm:$0xff]
    %v74 = vld [vmem:[#allocation3] sm:$0xff]
    %v75 = vld [vmem:[#allocation3 + $0x8] sm:$0xff]
    %s76 = scalar_lea.vmem %s59, 56
    %v77 = vld [vmem:[%s76] sm:$0xf]
    %v78 = vld [vmem:[%s76 + $0x4] sm:$0xf]
    %v79 = vld [vmem:[#allocation4] sm:$0xff]
    %v80 = vld [vmem:[#allocation4 + $0x8] sm:$0xff]
    %v81 = vld [vmem:[#allocation4 + $0x10] sm:$0xff]
    %v82 = vld [vmem:[#allocation4 + $0x18] sm:$0xff]
    %v83 = vld [vmem:[#allocation4 + $0x20] sm:$0xff]
    %v84 = vld [vmem:[#allocation4 + $0x28] sm:$0xff]
    %v85 = vld [vmem:[#allocation4 + $0x30] sm:$0xff]
    %v86 = vld [vmem:[#allocation4 + $0x38] sm:$0xff]
    %v87 = vld [vmem:[#allocation4 + $0x40] sm:$0xff]
    %v88 = vld [vmem:[#allocation4 + $0x48] sm:$0xff]
    %v89 = vld [vmem:[#allocation4 + $0x50] sm:$0xff]
    %v90 = vld [vmem:[#allocation4 + $0x58] sm:$0xff]
    %v91 = vld [vmem:[#allocation4 + $0x60] sm:$0xff]
    %v92 = vld [vmem:[#allocation4 + $0x68] sm:$0xff]
    %v93 = vld [vmem:[#allocation4 + $0x70] sm:$0xff]
    %v94 = vld [vmem:[#allocation4 + $0x78] sm:$0xff]
    %v95 = vpack.c.bf16 %v73, %v72
    %v96 = vld [vmem:[%s2] sm:$0xff]
    %v97 = vld [vmem:[%s2 + $0x8] sm:$0xff]
    %v98 = vld [vmem:[%s2 + $0x10] sm:$0xff]
    %v99 = vld [vmem:[%s2 + $0x18] sm:$0xff]
    %v100 = vld [vmem:[%s2 + $0x20] sm:$0xff]
    %v101 = vld [vmem:[%s2 + $0x28] sm:$0xff]
    %v102 = vld [vmem:[%s2 + $0x30] sm:$0xff]
    %v103 = vld [vmem:[%s2 + $0x38] sm:$0xff]
    %v104 = vld [vmem:[%s2 + $0x40] sm:$0xff]
    %v105 = vld [vmem:[%s2 + $0x48] sm:$0xff]
    %v106 = vld [vmem:[%s2 + $0x50] sm:$0xff]
    %v107 = vld [vmem:[%s2 + $0x58] sm:$0xff]
    %v108 = vld [vmem:[%s2 + $0x60] sm:$0xff]
    %v109 = vld [vmem:[%s2 + $0x68] sm:$0xff]
    %v110 = vld [vmem:[%s2 + $0x70] sm:$0xff]
    %v111 = vld [vmem:[%s2 + $0x78] sm:$0xff]
    %v112 = vld [vmem:[%s2 + $0x80] sm:$0xff]
    %v113 = vld [vmem:[%s2 + $0x88] sm:$0xff]
    %v114 = vld [vmem:[%s2 + $0x90] sm:$0xff]
    %v115 = vld [vmem:[%s2 + $0x98] sm:$0xff]
    %v116 = vld [vmem:[%s2 + $0xa0] sm:$0xff]
    %v117 = vld [vmem:[%s2 + $0xa8] sm:$0xff]
    %v118 = vld [vmem:[%s2 + $0xb0] sm:$0xff]
    %v119 = vld [vmem:[%s2 + $0xb8] sm:$0xff]
    %v120 = vld [vmem:[%s2 + $0xc0] sm:$0xff]
    %v121 = vld [vmem:[%s2 + $0xc8] sm:$0xff]
    %v122 = vld [vmem:[%s2 + $0xd0] sm:$0xff]
    %v123 = vld [vmem:[%s2 + $0xd8] sm:$0xff]
    %v124 = vld [vmem:[%s2 + $0xe0] sm:$0xff]
    %v125 = vld [vmem:[%s2 + $0xe8] sm:$0xff]
    %v126 = vld [vmem:[%s2 + $0xf0] sm:$0xff]
    %v127 = vld [vmem:[%s2 + $0xf8] sm:$0xff]
    %v160 = vunpack.c.l.b16 %v96
    %v161 = vunpack.c.h.b16 %v96
    %v162 = vunpack.c.l.b16 %v97
    %v163 = vunpack.c.h.b16 %v97
    %v164 = vunpack.c.l.b16 %v98
    %v165 = vunpack.c.h.b16 %v98
    %v166 = vunpack.c.l.b16 %v99
    %v167 = vunpack.c.h.b16 %v99
    %v168 = vunpack.c.l.b16 %v100
    %v169 = vunpack.c.h.b16 %v100
    %v170 = vunpack.c.l.b16 %v101
    %v171 = vunpack.c.h.b16 %v101
    %v172 = vunpack.c.l.b16 %v102
    %v173 = vunpack.c.h.b16 %v102
    %v174 = vunpack.c.l.b16 %v103
    %v175 = vunpack.c.h.b16 %v103
    %v176 = vunpack.c.l.b16 %v104
    %v177 = vunpack.c.h.b16 %v104
    %v178 = vunpack.c.l.b16 %v105
    %v179 = vunpack.c.h.b16 %v105
    %v180 = vunpack.c.l.b16 %v106
    %v181 = vunpack.c.h.b16 %v106
    %v182 = vunpack.c.l.b16 %v107
    %v183 = vunpack.c.h.b16 %v107
    %v184 = vunpack.c.l.b16 %v108
    %v185 = vunpack.c.h.b16 %v108
    %v186 = vunpack.c.l.b16 %v109
    %v187 = vunpack.c.h.b16 %v109
    %v188 = vunpack.c.l.b16 %v110
    %v189 = vunpack.c.h.b16 %v110
    %v190 = vunpack.c.l.b16 %v111
    %v191 = vunpack.c.h.b16 %v111
    %v192 = vunpack.c.l.b16 %v112
    %v193 = vunpack.c.h.b16 %v112
    %v194 = vunpack.c.l.b16 %v113
    %v195 = vunpack.c.h.b16 %v113
    %v196 = vunpack.c.l.b16 %v114
    %v197 = vunpack.c.h.b16 %v114
    %v198 = vunpack.c.l.b16 %v115
    %v199 = vunpack.c.h.b16 %v115
    %v200 = vunpack.c.l.b16 %v116
    %v201 = vunpack.c.h.b16 %v116
    %v202 = vunpack.c.l.b16 %v117
    %v203 = vunpack.c.h.b16 %v117
    %v204 = vunpack.c.l.b16 %v118
    %v205 = vunpack.c.h.b16 %v118
    %v206 = vunpack.c.l.b16 %v119
    %v207 = vunpack.c.h.b16 %v119
    %v208 = vunpack.c.l.b16 %v120
    %v209 = vunpack.c.h.b16 %v120
    %v210 = vunpack.c.l.b16 %v121
    %v211 = vunpack.c.h.b16 %v121
    %v212 = vunpack.c.l.b16 %v122
    %v213 = vunpack.c.h.b16 %v122
    %v214 = vunpack.c.l.b16 %v123
    %v215 = vunpack.c.h.b16 %v123
    %v216 = vunpack.c.l.b16 %v124
    %v217 = vunpack.c.h.b16 %v124
    %v218 = vunpack.c.l.b16 %v125
    %v219 = vunpack.c.h.b16 %v125
    %v220 = vunpack.c.l.b16 %v126
    %v221 = vunpack.c.h.b16 %v126
    %v222 = vunpack.c.l.b16 %v127
    %v223 = vunpack.c.h.b16 %v127
    %v224 = vpack.c.b16 %v164, %v160
    %v225 = vpack.c.b16 %v165, %v161
    %v226 = vpack.c.b16 %v166, %v162
    %v227 = vpack.c.b16 %v167, %v163
    %v228 = vpack.c.b16 %v172, %v168
    %v229 = vpack.c.b16 %v173, %v169
    %v230 = vpack.c.b16 %v174, %v170
    %v231 = vpack.c.b16 %v175, %v171
    %v232 = vpack.c.b16 %v180, %v176
    %v233 = vpack.c.b16 %v181, %v177
    %v234 = vpack.c.b16 %v182, %v178
    %v235 = vpack.c.b16 %v183, %v179
    %v236 = vpack.c.b16 %v188, %v184
    %v237 = vpack.c.b16 %v189, %v185
    %v238 = vpack.c.b16 %v190, %v186
    %v239 = vpack.c.b16 %v191, %v187
    %v240 = vpack.c.b16 %v196, %v192
    %v241 = vpack.c.b16 %v197, %v193
    %v242 = vpack.c.b16 %v198, %v194
    %v243 = vpack.c.b16 %v199, %v195
    %v244 = vpack.c.b16 %v204, %v200
    %v245 = vpack.c.b16 %v205, %v201
    %v246 = vpack.c.b16 %v206, %v202
    %v247 = vpack.c.b16 %v207, %v203
    %v248 = vpack.c.b16 %v212, %v208
    %v249 = vpack.c.b16 %v213, %v209
    %v250 = vpack.c.b16 %v214, %v210
    %v251 = vpack.c.b16 %v215, %v211
    %v252 = vpack.c.b16 %v220, %v216
    %v253 = vpack.c.b16 %v221, %v217
    %v254 = vpack.c.b16 %v222, %v218
    %v255 = vpack.c.b16 %v223, %v219
    %288 = vmatprep.subr.bf16.mxu0 %v225
    %289 = vmatpush1.bf16.msra.mxu0 %v224
    %290 = vmatprep.subr.bf16.mxu0 %v229
    %291 = vmatpush1.bf16.msra.mxu0 %v228
    %292 = vmatprep.subr.bf16.mxu0 %v233
    %293 = vmatpush1.bf16.msra.mxu0 %v232
    %294 = vmatprep.subr.bf16.mxu0 %v237
    %295 = vmatpush1.bf16.msra.mxu0 %v236
    %296 = vmatprep.subr.bf16.mxu0 %v241
    %297 = vmatpush1.bf16.msra.mxu0 %v240
    %298 = vmatprep.subr.bf16.mxu0 %v245
    %299 = vmatpush1.bf16.msra.mxu0 %v244
    %300 = vmatprep.subr.bf16.mxu0 %v249
    %301 = vmatpush1.bf16.msra.mxu0 %v248
    %302 = vmatprep.subr.bf16.mxu0 %v253
    %303 = vmatpush1.bf16.msra.mxu0 %v252
    %304 = vmatprep.subr.bf16.mxu0 0
    %305 = vmatpush1.bf16.msra.mxu0 0
    %306 = vmatprep.subr.bf16.mxu0 0
    %307 = vmatpush1.bf16.msra.mxu0 0
    %308 = vmatprep.subr.bf16.mxu0 0
    %309 = vmatpush1.bf16.msra.mxu0 0
    %310 = vmatprep.subr.bf16.mxu0 0
    %311 = vmatpush1.bf16.msra.mxu0 0
    %312 = vmatprep.subr.bf16.mxu0 0
    %313 = vmatpush1.bf16.msra.mxu0 0
    %314 = vmatprep.subr.bf16.mxu0 0
    %315 = vmatpush1.bf16.msra.mxu0 0
    %316 = vmatprep.subr.bf16.mxu0 0
    %317 = vmatpush1.bf16.msra.mxu0 0
    %318 = vmatprep.subr.bf16.mxu0 0
    %319 = vmatpush1.bf16.msra.mxu0 0
    %320 = vmatprep.mubr.bf16.mxu0 0
    %321 = vmatmul.mubr.bf16.gmra.mrb[0].mxu0 %v95
    %v322 = vpop.f32.mrb[0].mxu0
    %v323 = vadd.f32 0.0, %v322
    %v324 = vpop.f32.mrb[0].mxu0
    %v325 = vadd.f32 0.0, %v324
    %v326 = vpop.f32.mrb[0].mxu0
    %v327 = vadd.f32 0.0, %v326
    %v328 = vpop.f32.mrb[0].mxu0
    %v329 = vadd.f32 0.0, %v328
    %330 = vdwg.mxu0
    %331 = vmatprep.subr.bf16.mxu0 %v227
    %332 = vmatpush1.bf16.msra.mxu0 %v226
    %333 = vmatprep.subr.bf16.mxu0 %v231
    %334 = vmatpush1.bf16.msra.mxu0 %v230
    %335 = vmatprep.subr.bf16.mxu0 %v235
    %336 = vmatpush1.bf16.msra.mxu0 %v234
    %337 = vmatprep.subr.bf16.mxu0 %v239
    %338 = vmatpush1.bf16.msra.mxu0 %v238
    %339 = vmatprep.subr.bf16.mxu0 %v243
    %340 = vmatpush1.bf16.msra.mxu0 %v242
    %341 = vmatprep.subr.bf16.mxu0 %v247
    %342 = vmatpush1.bf16.msra.mxu0 %v246
    %343 = vmatprep.subr.bf16.mxu0 %v251
    %344 = vmatpush1.bf16.msra.mxu0 %v250
    %345 = vmatprep.subr.bf16.mxu0 %v255
    %346 = vmatpush1.bf16.msra.mxu0 %v254
    %347 = vmatprep.subr.bf16.mxu0 0
    %348 = vmatpush1.bf16.msra.mxu0 0
    %349 = vmatprep.subr.bf16.mxu0 0
    %350 = vmatpush1.bf16.msra.mxu0 0
    %351 = vmatprep.subr.bf16.mxu0 0
    %352 = vmatpush1.bf16.msra.mxu0 0
    %353 = vmatprep.subr.bf16.mxu0 0
    %354 = vmatpush1.bf16.msra.mxu0 0
    %355 = vmatprep.subr.bf16.mxu0 0
    %356 = vmatpush1.bf16.msra.mxu0 0
    %357 = vmatprep.subr.bf16.mxu0 0
    %358 = vmatpush1.bf16.msra.mxu0 0
    %359 = vmatprep.subr.bf16.mxu0 0
    %360 = vmatpush1.bf16.msra.mxu0 0
    %361 = vmatprep.subr.bf16.mxu0 0
    %362 = vmatpush1.bf16.msra.mxu0 0
    %363 = vmatprep.mubr.bf16.mxu0 0
    %364 = vmatmul.mubr.bf16.gmra.mrb[0].mxu0 %v95
    %v365 = vpop.f32.mrb[0].mxu0
    %v366 = vadd.f32 0.0, %v365
    %v367 = vpop.f32.mrb[0].mxu0
    %v368 = vadd.f32 0.0, %v367
    %v369 = vpop.f32.mrb[0].mxu0
    %v370 = vadd.f32 0.0, %v369
    %v371 = vpop.f32.mrb[0].mxu0
    %v372 = vadd.f32 0.0, %v371
    %373 = vdwg.mxu0
    %v376 = vunpack.c.l.b16 %v77
    %v377 = vunpack.c.l.b16 %v78
    %v378 = vpack.c.b16 %v377, %v376
    %v395 = vunpack.c.l.b16 %v79
    %v396 = vunpack.c.h.b16 %v79
    %v397 = vunpack.c.l.b16 %v80
    %v398 = vunpack.c.h.b16 %v80
    %v399 = vunpack.c.l.b16 %v81
    %v400 = vunpack.c.h.b16 %v81
    %v401 = vunpack.c.l.b16 %v82
    %v402 = vunpack.c.h.b16 %v82
    %v403 = vunpack.c.l.b16 %v83
    %v404 = vunpack.c.h.b16 %v83
    %v405 = vunpack.c.l.b16 %v84
    %v406 = vunpack.c.h.b16 %v84
    %v407 = vunpack.c.l.b16 %v85
    %v408 = vunpack.c.h.b16 %v85
    %v409 = vunpack.c.l.b16 %v86
    %v410 = vunpack.c.h.b16 %v86
    %v411 = vunpack.c.l.b16 %v87
    %v412 = vunpack.c.h.b16 %v87
    %v413 = vunpack.c.l.b16 %v88
    %v414 = vunpack.c.h.b16 %v88
    %v415 = vunpack.c.l.b16 %v89
    %v416 = vunpack.c.h.b16 %v89
    %v417 = vunpack.c.l.b16 %v90
    %v418 = vunpack.c.h.b16 %v90
    %v419 = vunpack.c.l.b16 %v91
    %v420 = vunpack.c.h.b16 %v91
    %v421 = vunpack.c.l.b16 %v92
    %v422 = vunpack.c.h.b16 %v92
    %v423 = vunpack.c.l.b16 %v93
    %v424 = vunpack.c.h.b16 %v93
    %v425 = vunpack.c.l.b16 %v94
    %v426 = vunpack.c.h.b16 %v94
    %v427 = vpack.c.b16 %v399, %v395
    %v428 = vpack.c.b16 %v400, %v396
    %v429 = vpack.c.b16 %v401, %v397
    %v430 = vpack.c.b16 %v402, %v398
    %v431 = vpack.c.b16 %v407, %v403
    %v432 = vpack.c.b16 %v408, %v404
    %v433 = vpack.c.b16 %v409, %v405
    %v434 = vpack.c.b16 %v410, %v406
    %v435 = vpack.c.b16 %v415, %v411
    %v436 = vpack.c.b16 %v416, %v412
    %v437 = vpack.c.b16 %v417, %v413
    %v438 = vpack.c.b16 %v418, %v414
    %v439 = vpack.c.b16 %v423, %v419
    %v440 = vpack.c.b16 %v424, %v420
    %v441 = vpack.c.b16 %v425, %v421
    %v442 = vpack.c.b16 %v426, %v422
    %vm459 = vcmask 523264
    %v461 = vsel %vm459, %v378, 0
    %463 = vmatprep.subr.bf16.mxu0 %v428
    %464 = vmatpush1.bf16.msra.mxu0 %v427
    %465 = vmatprep.subr.bf16.mxu0 %v432
    %466 = vmatpush1.bf16.msra.mxu0 %v431
    %467 = vmatprep.subr.bf16.mxu0 %v436
    %468 = vmatpush1.bf16.msra.mxu0 %v435
    %469 = vmatprep.subr.bf16.mxu0 %v440
    %470 = vmatpush1.bf16.msra.mxu0 %v439
    %471 = vmatprep.subr.bf16.mxu0 0
    %472 = vmatpush1.bf16.msra.mxu0 0
    %473 = vmatprep.subr.bf16.mxu0 0
    %474 = vmatpush1.bf16.msra.mxu0 0
    %475 = vmatprep.subr.bf16.mxu0 0
    %476 = vmatpush1.bf16.msra.mxu0 0
    %477 = vmatprep.subr.bf16.mxu0 0
    %478 = vmatpush1.bf16.msra.mxu0 0
    %479 = vmatprep.subr.bf16.mxu0 0
    %480 = vmatpush1.bf16.msra.mxu0 0
    %481 = vmatprep.subr.bf16.mxu0 0
    %482 = vmatpush1.bf16.msra.mxu0 0
    %483 = vmatprep.subr.bf16.mxu0 0
    %484 = vmatpush1.bf16.msra.mxu0 0
    %485 = vmatprep.subr.bf16.mxu0 0
    %486 = vmatpush1.bf16.msra.mxu0 0
    %487 = vmatprep.subr.bf16.mxu0 0
    %488 = vmatpush1.bf16.msra.mxu0 0
    %489 = vmatprep.subr.bf16.mxu0 0
    %490 = vmatpush1.bf16.msra.mxu0 0
    %491 = vmatprep.subr.bf16.mxu0 0
    %492 = vmatpush1.bf16.msra.mxu0 0
    %493 = vmatprep.subr.bf16.mxu0 0
    %494 = vmatpush1.bf16.msra.mxu0 0
    %495 = vmatprep.mubr.bf16.mxu0 0
    %496 = vmatmul.mubr.bf16.gmra.mrb[0].mxu0 %v461
    %v497 = vpop.f32.mrb[0].mxu0
    %v498 = vadd.f32 %v323, %v497
    %v499 = vpop.f32.mrb[0].mxu0
    %v500 = vadd.f32 %v325, %v499
    %v501 = vpop.f32.mrb[0].mxu0
    %v502 = vadd.f32 %v327, %v501
    %v503 = vpop.f32.mrb[0].mxu0
    %v504 = vadd.f32 %v329, %v503
    %505 = vdwg.mxu0
    %506 = vmatprep.subr.bf16.mxu0 %v430
    %507 = vmatpush1.bf16.msra.mxu0 %v429
    %508 = vmatprep.subr.bf16.mxu0 %v434
    %509 = vmatpush1.bf16.msra.mxu0 %v433
    %510 = vmatprep.subr.bf16.mxu0 %v438
    %511 = vmatpush1.bf16.msra.mxu0 %v437
    %512 = vmatprep.subr.bf16.mxu0 %v442
    %513 = vmatpush1.bf16.msra.mxu0 %v441
    %514 = vmatprep.subr.bf16.mxu0 0
    %515 = vmatpush1.bf16.msra.mxu0 0
    %516 = vmatprep.subr.bf16.mxu0 0
    %517 = vmatpush1.bf16.msra.mxu0 0
    %518 = vmatprep.subr.bf16.mxu0 0
    %519 = vmatpush1.bf16.msra.mxu0 0
    %520 = vmatprep.subr.bf16.mxu0 0
    %521 = vmatpush1.bf16.msra.mxu0 0
    %522 = vmatprep.subr.bf16.mxu0 0
    %523 = vmatpush1.bf16.msra.mxu0 0
    %524 = vmatprep.subr.bf16.mxu0 0
    %525 = vmatpush1.bf16.msra.mxu0 0
    %526 = vmatprep.subr.bf16.mxu0 0
    %527 = vmatpush1.bf16.msra.mxu0 0
    %528 = vmatprep.subr.bf16.mxu0 0
    %529 = vmatpush1.bf16.msra.mxu0 0
    %530 = vmatprep.subr.bf16.mxu0 0
    %531 = vmatpush1.bf16.msra.mxu0 0
    %532 = vmatprep.subr.bf16.mxu0 0
    %533 = vmatpush1.bf16.msra.mxu0 0
    %534 = vmatprep.subr.bf16.mxu0 0
    %535 = vmatpush1.bf16.msra.mxu0 0
    %536 = vmatprep.subr.bf16.mxu0 0
    %537 = vmatpush1.bf16.msra.mxu0 0
    %538 = vmatprep.mubr.bf16.mxu0 0
    %539 = vmatmul.mubr.bf16.gmra.mrb[0].mxu0 %v461
    %v540 = vpop.f32.mrb[0].mxu0
    %v541 = vadd.f32 %v366, %v540
    %v542 = vpop.f32.mrb[0].mxu0
    %v543 = vadd.f32 %v368, %v542
    %v544 = vpop.f32.mrb[0].mxu0
    %v545 = vadd.f32 %v370, %v544
    %v546 = vpop.f32.mrb[0].mxu0
    %v547 = vadd.f32 %v372, %v546
    %548 = vdwg.mxu0
    %v550 = vlaneseq
    %v551 = vshrl.u32 %v550, 7
    %v552 = vsub.s32 0, %v551
    %v553 = vrot.slane %v71, %v552
    %v554 = vlaneseq
    %v555 = vshrl.u32 %v554, 7
    %v556 = vsub.s32 1, %v555
    %v557 = vrot.slane %v71, %v556
    %v558 = vlaneseq
    %v559 = vshrl.u32 %v558, 7
    %v560 = vsub.s32 2, %v559
    %v561 = vrot.slane %v71, %v560
    %v562 = vlaneseq
    %v563 = vshrl.u32 %v562, 7
    %v564 = vsub.s32 3, %v563
    %v565 = vrot.slane %v71, %v564
    %v570 = vadd.f32 %v498, %v553
    %v571 = vadd.f32 %v500, %v557
    %v572 = vadd.f32 %v541, %v561
    %v573 = vadd.f32 %v543, %v565
    %v574 = vadd.f32 %v502, %v553
    %v575 = vadd.f32 %v504, %v557
    %v576 = vadd.f32 %v545, %v561
    %v577 = vadd.f32 %v547, %v565
    %v578 = vmul.f32 %v570, 0.5
    %v579 = vmul.f32 %v574, 0.5
    %v580 = vtanh.pop %v578
    %v581 = vtanh.pop %v579
    %v582 = vmul.f32 %v580, 0.5
    %v583 = vmul.f32 %v581, 0.5
    %v584 = vadd.f32 %v582, 0.5
    %v585 = vadd.f32 %v583, 0.5
    %v586 = vmul.f32 %v571, 0.5
    %v587 = vmul.f32 %v575, 0.5
    %v588 = vtanh.pop %v586
    %v589 = vtanh.pop %v587
    %v590 = vmul.f32 %v588, 0.5
    %v591 = vmul.f32 %v589, 0.5
    %v592 = vadd.f32 %v590, 0.5
    %v593 = vadd.f32 %v591, 0.5
    %v594 = vtanh.pop %v572
    %v595 = vtanh.pop %v576
    %v596 = vmul.f32 %v573, 0.5
    %v597 = vmul.f32 %v577, 0.5
    %v598 = vtanh.pop %v596
    %v599 = vtanh.pop %v597
    %v600 = vmul.f32 %v598, 0.5
    %v601 = vmul.f32 %v599, 0.5
    %v602 = vadd.f32 %v600, 0.5
    %v603 = vadd.f32 %v601, 0.5
    %v604 = vmul.f32 %v592, %v74
    %v605 = vmul.f32 %v593, %v75
    %v606 = vmul.f32 %v584, %v594
    %v607 = vmul.f32 %v585, %v595
    %v608 = vadd.f32 %v604, %v606
    %v609 = vadd.f32 %v605, %v607
    %v610 = vtanh.pop %v608
    %v611 = vtanh.pop %v609
    %v612 = vmul.f32 %v602, %v610
    %v613 = vmul.f32 %v603, %v611
    %s614 = scalar_lea.vmem %s59, 48
    %v615 = vld [vmem:[%s614] sm:$0xf]
    %v616 = vld [vmem:[%s614 + $0x4] sm:$0xf]
    %v617 = vpack.c.bf16 %v613, %v612
    %618 = vmatprep.subr.bf16.mxu0 %v225
    %619 = vmatpush1.bf16.msra.mxu0 %v224
    %620 = vmatprep.subr.bf16.mxu0 %v229
    %621 = vmatpush1.bf16.msra.mxu0 %v228
    %622 = vmatprep.subr.bf16.mxu0 %v233
    %623 = vmatpush1.bf16.msra.mxu0 %v232
    %624 = vmatprep.subr.bf16.mxu0 %v237
    %625 = vmatpush1.bf16.msra.mxu0 %v236
    %626 = vmatprep.subr.bf16.mxu0 %v241
    %627 = vmatpush1.bf16.msra.mxu0 %v240
    %628 = vmatprep.subr.bf16.mxu0 %v245
    %629 = vmatpush1.bf16.msra.mxu0 %v244
    %630 = vmatprep.subr.bf16.mxu0 %v249
    %631 = vmatpush1.bf16.msra.mxu0 %v248
    %632 = vmatprep.subr.bf16.mxu0 %v253
    %633 = vmatpush1.bf16.msra.mxu0 %v252
    %634 = vmatprep.subr.bf16.mxu0 0
    %635 = vmatpush1.bf16.msra.mxu0 0
    %636 = vmatprep.subr.bf16.mxu0 0
    %637 = vmatpush1.bf16.msra.mxu0 0
    %638 = vmatprep.subr.bf16.mxu0 0
    %639 = vmatpush1.bf16.msra.mxu0 0
    %640 = vmatprep.subr.bf16.mxu0 0
    %641 = vmatpush1.bf16.msra.mxu0 0
    %642 = vmatprep.subr.bf16.mxu0 0
    %643 = vmatpush1.bf16.msra.mxu0 0
    %644 = vmatprep.subr.bf16.mxu0 0
    %645 = vmatpush1.bf16.msra.mxu0 0
    %646 = vmatprep.subr.bf16.mxu0 0
    %647 = vmatpush1.bf16.msra.mxu0 0
    %648 = vmatprep.subr.bf16.mxu0 0
    %649 = vmatpush1.bf16.msra.mxu0 0
    %650 = vmatprep.mubr.bf16.mxu0 0
    %651 = vmatmul.mubr.bf16.gmra.mrb[0].mxu0 %v617
    %v652 = vpop.f32.mrb[0].mxu0
    %v653 = vadd.f32 0.0, %v652
    %v654 = vpop.f32.mrb[0].mxu0
    %v655 = vadd.f32 0.0, %v654
    %v656 = vpop.f32.mrb[0].mxu0
    %v657 = vadd.f32 0.0, %v656
    %v658 = vpop.f32.mrb[0].mxu0
    %v659 = vadd.f32 0.0, %v658
    %660 = vdwg.mxu0
    %661 = vmatprep.subr.bf16.mxu0 %v227
    %662 = vmatpush1.bf16.msra.mxu0 %v226
    %663 = vmatprep.subr.bf16.mxu0 %v231
    %664 = vmatpush1.bf16.msra.mxu0 %v230
    %665 = vmatprep.subr.bf16.mxu0 %v235
    %666 = vmatpush1.bf16.msra.mxu0 %v234
    %667 = vmatprep.subr.bf16.mxu0 %v239
    %668 = vmatpush1.bf16.msra.mxu0 %v238
    %669 = vmatprep.subr.bf16.mxu0 %v243
    %670 = vmatpush1.bf16.msra.mxu0 %v242
    %671 = vmatprep.subr.bf16.mxu0 %v247
    %672 = vmatpush1.bf16.msra.mxu0 %v246
    %673 = vmatprep.subr.bf16.mxu0 %v251
    %674 = vmatpush1.bf16.msra.mxu0 %v250
    %675 = vmatprep.subr.bf16.mxu0 %v255
    %676 = vmatpush1.bf16.msra.mxu0 %v254
    %677 = vmatprep.subr.bf16.mxu0 0
    %678 = vmatpush1.bf16.msra.mxu0 0
    %679 = vmatprep.subr.bf16.mxu0 0
    %680 = vmatpush1.bf16.msra.mxu0 0
    %681 = vmatprep.subr.bf16.mxu0 0
    %682 = vmatpush1.bf16.msra.mxu0 0
    %683 = vmatprep.subr.bf16.mxu0 0
    %684 = vmatpush1.bf16.msra.mxu0 0
    %685 = vmatprep.subr.bf16.mxu0 0
    %686 = vmatpush1.bf16.msra.mxu0 0
    %687 = vmatprep.subr.bf16.mxu0 0
    %688 = vmatpush1.bf16.msra.mxu0 0
    %689 = vmatprep.subr.bf16.mxu0 0
    %690 = vmatpush1.bf16.msra.mxu0 0
    %691 = vmatprep.subr.bf16.mxu0 0
    %692 = vmatpush1.bf16.msra.mxu0 0
    %693 = vmatprep.mubr.bf16.mxu0 0
    %694 = vmatmul.mubr.bf16.gmra.mrb[0].mxu0 %v617
    %v695 = vpop.f32.mrb[0].mxu0
    %v696 = vadd.f32 0.0, %v695
    %v697 = vpop.f32.mrb[0].mxu0
    %v698 = vadd.f32 0.0, %v697
    %v699 = vpop.f32.mrb[0].mxu0
    %v700 = vadd.f32 0.0, %v699
    %v701 = vpop.f32.mrb[0].mxu0
    %v702 = vadd.f32 0.0, %v701
    %703 = vdwg.mxu0
    %v706 = vunpack.c.l.b16 %v615
    %v707 = vunpack.c.l.b16 %v616
    %v708 = vpack.c.b16 %v707, %v706
    %v710 = vsel %vm459, %v708, 0
    %712 = vmatprep.subr.bf16.mxu0 %v428
    %713 = vmatpush1.bf16.msra.mxu0 %v427
    %714 = vmatprep.subr.bf16.mxu0 %v432
    %715 = vmatpush1.bf16.msra.mxu0 %v431
    %716 = vmatprep.subr.bf16.mxu0 %v436
    %717 = vmatpush1.bf16.msra.mxu0 %v435
    %718 = vmatprep.subr.bf16.mxu0 %v440
    %719 = vmatpush1.bf16.msra.mxu0 %v439
    %720 = vmatprep.subr.bf16.mxu0 0
    %721 = vmatpush1.bf16.msra.mxu0 0
    %722 = vmatprep.subr.bf16.mxu0 0
    %723 = vmatpush1.bf16.msra.mxu0 0
    %724 = vmatprep.subr.bf16.mxu0 0
    %725 = vmatpush1.bf16.msra.mxu0 0
    %726 = vmatprep.subr.bf16.mxu0 0
    %727 = vmatpush1.bf16.msra.mxu0 0
    %728 = vmatprep.subr.bf16.mxu0 0
    %729 = vmatpush1.bf16.msra.mxu0 0
    %730 = vmatprep.subr.bf16.mxu0 0
    %731 = vmatpush1.bf16.msra.mxu0 0
    %732 = vmatprep.subr.bf16.mxu0 0
    %733 = vmatpush1.bf16.msra.mxu0 0
    %734 = vmatprep.subr.bf16.mxu0 0
    %735 = vmatpush1.bf16.msra.mxu0 0
    %736 = vmatprep.subr.bf16.mxu0 0
    %737 = vmatpush1.bf16.msra.mxu0 0
    %738 = vmatprep.subr.bf16.mxu0 0
    %739 = vmatpush1.bf16.msra.mxu0 0
    %740 = vmatprep.subr.bf16.mxu0 0
    %741 = vmatpush1.bf16.msra.mxu0 0
    %742 = vmatprep.subr.bf16.mxu0 0
    %743 = vmatpush1.bf16.msra.mxu0 0
    %744 = vmatprep.mubr.bf16.mxu0 0
    %745 = vmatmul.mubr.bf16.gmra.mrb[0].mxu0 %v710
    %v746 = vpop.f32.mrb[0].mxu0
    %v747 = vadd.f32 %v653, %v746
    %v748 = vpop.f32.mrb[0].mxu0
    %v749 = vadd.f32 %v655, %v748
    %v750 = vpop.f32.mrb[0].mxu0
    %v751 = vadd.f32 %v657, %v750
    %v752 = vpop.f32.mrb[0].mxu0
    %v753 = vadd.f32 %v659, %v752
    %754 = vdwg.mxu0
    %755 = vmatprep.subr.bf16.mxu0 %v430
    %756 = vmatpush1.bf16.msra.mxu0 %v429
    %757 = vmatprep.subr.bf16.mxu0 %v434
    %758 = vmatpush1.bf16.msra.mxu0 %v433
    %759 = vmatprep.subr.bf16.mxu0 %v438
    %760 = vmatpush1.bf16.msra.mxu0 %v437
    %761 = vmatprep.subr.bf16.mxu0 %v442
    %762 = vmatpush1.bf16.msra.mxu0 %v441
    %763 = vmatprep.subr.bf16.mxu0 0
    %764 = vmatpush1.bf16.msra.mxu0 0
    %765 = vmatprep.subr.bf16.mxu0 0
    %766 = vmatpush1.bf16.msra.mxu0 0
    %767 = vmatprep.subr.bf16.mxu0 0
    %768 = vmatpush1.bf16.msra.mxu0 0
    %769 = vmatprep.subr.bf16.mxu0 0
    %770 = vmatpush1.bf16.msra.mxu0 0
    %771 = vmatprep.subr.bf16.mxu0 0
    %772 = vmatpush1.bf16.msra.mxu0 0
    %773 = vmatprep.subr.bf16.mxu0 0
    %774 = vmatpush1.bf16.msra.mxu0 0
    %775 = vmatprep.subr.bf16.mxu0 0
    %776 = vmatpush1.bf16.msra.mxu0 0
    %777 = vmatprep.subr.bf16.mxu0 0
    %778 = vmatpush1.bf16.msra.mxu0 0
    %779 = vmatprep.subr.bf16.mxu0 0
    %780 = vmatpush1.bf16.msra.mxu0 0
    %781 = vmatprep.subr.bf16.mxu0 0
    %782 = vmatpush1.bf16.msra.mxu0 0
    %783 = vmatprep.subr.bf16.mxu0 0
    %784 = vmatpush1.bf16.msra.mxu0 0
    %785 = vmatprep.subr.bf16.mxu0 0
    %786 = vmatpush1.bf16.msra.mxu0 0
    %787 = vmatprep.mubr.bf16.mxu0 0
    %788 = vmatmul.mubr.bf16.gmra.mrb[0].mxu0 %v710
    %v789 = vpop.f32.mrb[0].mxu0
    %v790 = vadd.f32 %v696, %v789
    %v791 = vpop.f32.mrb[0].mxu0
    %v792 = vadd.f32 %v698, %v791
    %v793 = vpop.f32.mrb[0].mxu0
    %v794 = vadd.f32 %v700, %v793
    %v795 = vpop.f32.mrb[0].mxu0
    %v796 = vadd.f32 %v702, %v795
    %797 = vdwg.mxu0
    %v798 = vadd.f32 %v747, %v553
    %v799 = vadd.f32 %v749, %v557
    %v800 = vadd.f32 %v790, %v561
    %v801 = vadd.f32 %v792, %v565
    %v802 = vadd.f32 %v751, %v553
    %v803 = vadd.f32 %v753, %v557
    %v804 = vadd.f32 %v794, %v561
    %v805 = vadd.f32 %v796, %v565
    %v806 = vmul.f32 %v798, 0.5
    %v807 = vmul.f32 %v802, 0.5
    %v808 = vtanh.pop %v806
    %v809 = vtanh.pop %v807
    %v810 = vmul.f32 %v808, 0.5
    %v811 = vmul.f32 %v809, 0.5
    %v812 = vadd.f32 %v810, 0.5
    %v813 = vadd.f32 %v811, 0.5
    %v814 = vmul.f32 %v799, 0.5
    %v815 = vmul.f32 %v803, 0.5
    %v816 = vtanh.pop %v814
    %v817 = vtanh.pop %v815
    %v818 = vmul.f32 %v816, 0.5
    %v819 = vmul.f32 %v817, 0.5
    %v820 = vadd.f32 %v818, 0.5
    %v821 = vadd.f32 %v819, 0.5
    %v822 = vtanh.pop %v800
    %v823 = vtanh.pop %v804
    %v824 = vmul.f32 %v801, 0.5
    %v825 = vmul.f32 %v805, 0.5
    %v826 = vtanh.pop %v824
    %v827 = vtanh.pop %v825
    %v828 = vmul.f32 %v826, 0.5
    %v829 = vmul.f32 %v827, 0.5
    %v830 = vadd.f32 %v828, 0.5
    %v831 = vadd.f32 %v829, 0.5
    %v832 = vmul.f32 %v820, %v608
    %v833 = vmul.f32 %v821, %v609
    %v834 = vmul.f32 %v812, %v822
    %v835 = vmul.f32 %v813, %v823
    %v836 = vadd.f32 %v832, %v834
    %v837 = vadd.f32 %v833, %v835
    %v838 = vtanh.pop %v836
    %v839 = vtanh.pop %v837
    %v840 = vmul.f32 %v830, %v838
    %v841 = vmul.f32 %v831, %v839
    %s842 = scalar_lea.vmem %s59, 40
    %v843 = vld [vmem:[%s842] sm:$0xf]
    %v844 = vld [vmem:[%s842 + $0x4] sm:$0xf]
    %v845 = vpack.c.bf16 %v841, %v840
    %846 = vmatprep.subr.bf16.mxu0 %v225
    %847 = vmatpush1.bf16.msra.mxu0 %v224
    %848 = vmatprep.subr.bf16.mxu0 %v229
    %849 = vmatpush1.bf16.msra.mxu0 %v228
    %850 = vmatprep.subr.bf16.mxu0 %v233
    %851 = vmatpush1.bf16.msra.mxu0 %v232
    %852 = vmatprep.subr.bf16.mxu0 %v237
    %853 = vmatpush1.bf16.msra.mxu0 %v236
    %854 = vmatprep.subr.bf16.mxu0 %v241
    %855 = vmatpush1.bf16.msra.mxu0 %v240
    %856 = vmatprep.subr.bf16.mxu0 %v245
    %857 = vmatpush1.bf16.msra.mxu0 %v244
    %858 = vmatprep.subr.bf16.mxu0 %v249
    %859 = vmatpush1.bf16.msra.mxu0 %v248
    %860 = vmatprep.subr.bf16.mxu0 %v253
    %861 = vmatpush1.bf16.msra.mxu0 %v252
    %862 = vmatprep.subr.bf16.mxu0 0
    %863 = vmatpush1.bf16.msra.mxu0 0
    %864 = vmatprep.subr.bf16.mxu0 0
    %865 = vmatpush1.bf16.msra.mxu0 0
    %866 = vmatprep.subr.bf16.mxu0 0
    %867 = vmatpush1.bf16.msra.mxu0 0
    %868 = vmatprep.subr.bf16.mxu0 0
    %869 = vmatpush1.bf16.msra.mxu0 0
    %870 = vmatprep.subr.bf16.mxu0 0
    %871 = vmatpush1.bf16.msra.mxu0 0
    %872 = vmatprep.subr.bf16.mxu0 0
    %873 = vmatpush1.bf16.msra.mxu0 0
    %874 = vmatprep.subr.bf16.mxu0 0
    %875 = vmatpush1.bf16.msra.mxu0 0
    %876 = vmatprep.subr.bf16.mxu0 0
    %877 = vmatpush1.bf16.msra.mxu0 0
    %878 = vmatprep.mubr.bf16.mxu0 0
    %879 = vmatmul.mubr.bf16.gmra.mrb[0].mxu0 %v845
    %v880 = vpop.f32.mrb[0].mxu0
    %v881 = vadd.f32 0.0, %v880
    %v882 = vpop.f32.mrb[0].mxu0
    %v883 = vadd.f32 0.0, %v882
    %v884 = vpop.f32.mrb[0].mxu0
    %v885 = vadd.f32 0.0, %v884
    %v886 = vpop.f32.mrb[0].mxu0
    %v887 = vadd.f32 0.0, %v886
    %888 = vdwg.mxu0
    %889 = vmatprep.subr.bf16.mxu0 %v227
    %890 = vmatpush1.bf16.msra.mxu0 %v226
    %891 = vmatprep.subr.bf16.mxu0 %v231
    %892 = vmatpush1.bf16.msra.mxu0 %v230
    %893 = vmatprep.subr.bf16.mxu0 %v235
    %894 = vmatpush1.bf16.msra.mxu0 %v234
    %895 = vmatprep.subr.bf16.mxu0 %v239
    %896 = vmatpush1.bf16.msra.mxu0 %v238
    %897 = vmatprep.subr.bf16.mxu0 %v243
    %898 = vmatpush1.bf16.msra.mxu0 %v242
    %899 = vmatprep.subr.bf16.mxu0 %v247
    %900 = vmatpush1.bf16.msra.mxu0 %v246
    %901 = vmatprep.subr.bf16.mxu0 %v251
    %902 = vmatpush1.bf16.msra.mxu0 %v250
    %903 = vmatprep.subr.bf16.mxu0 %v255
    %904 = vmatpush1.bf16.msra.mxu0 %v254
    %905 = vmatprep.subr.bf16.mxu0 0
    %906 = vmatpush1.bf16.msra.mxu0 0
    %907 = vmatprep.subr.bf16.mxu0 0
    %908 = vmatpush1.bf16.msra.mxu0 0
    %909 = vmatprep.subr.bf16.mxu0 0
    %910 = vmatpush1.bf16.msra.mxu0 0
    %911 = vmatprep.subr.bf16.mxu0 0
    %912 = vmatpush1.bf16.msra.mxu0 0
    %913 = vmatprep.subr.bf16.mxu0 0
    %914 = vmatpush1.bf16.msra.mxu0 0
    %915 = vmatprep.subr.bf16.mxu0 0
    %916 = vmatpush1.bf16.msra.mxu0 0
    %917 = vmatprep.subr.bf16.mxu0 0
    %918 = vmatpush1.bf16.msra.mxu0 0
    %919 = vmatprep.subr.bf16.mxu0 0
    %920 = vmatpush1.bf16.msra.mxu0 0
    %921 = vmatprep.mubr.bf16.mxu0 0
    %922 = vmatmul.mubr.bf16.gmra.mrb[0].mxu0 %v845
    %v923 = vpop.f32.mrb[0].mxu0
    %v924 = vadd.f32 0.0, %v923
    %v925 = vpop.f32.mrb[0].mxu0
    %v926 = vadd.f32 0.0, %v925
    %v927 = vpop.f32.mrb[0].mxu0
    %v928 = vadd.f32 0.0, %v927
    %v929 = vpop.f32.mrb[0].mxu0
    %v930 = vadd.f32 0.0, %v929
    %931 = vdwg.mxu0
    %v934 = vunpack.c.l.b16 %v843
    %v935 = vunpack.c.l.b16 %v844
    %v936 = vpack.c.b16 %v935, %v934
    %v938 = vsel %vm459, %v936, 0
    %940 = vmatprep.subr.bf16.mxu0 %v428
    %941 = vmatpush1.bf16.msra.mxu0 %v427
    %942 = vmatprep.subr.bf16.mxu0 %v432
    %943 = vmatpush1.bf16.msra.mxu0 %v431
    %944 = vmatprep.subr.bf16.mxu0 %v436
    %945 = vmatpush1.bf16.msra.mxu0 %v435
    %946 = vmatprep.subr.bf16.mxu0 %v440
    %947 = vmatpush1.bf16.msra.mxu0 %v439
    %948 = vmatprep.subr.bf16.mxu0 0
    %949 = vmatpush1.bf16.msra.mxu0 0
    %950 = vmatprep.subr.bf16.mxu0 0
    %951 = vmatpush1.bf16.msra.mxu0 0
    %952 = vmatprep.subr.bf16.mxu0 0
    %953 = vmatpush1.bf16.msra.mxu0 0
    %954 = vmatprep.subr.bf16.mxu0 0
    %955 = vmatpush1.bf16.msra.mxu0 0
    %956 = vmatprep.subr.bf16.mxu0 0
    %957 = vmatpush1.bf16.msra.mxu0 0
    %958 = vmatprep.subr.bf16.mxu0 0
    %959 = vmatpush1.bf16.msra.mxu0 0
    %960 = vmatprep.subr.bf16.mxu0 0
    %961 = vmatpush1.bf16.msra.mxu0 0
    %962 = vmatprep.subr.bf16.mxu0 0
    %963 = vmatpush1.bf16.msra.mxu0 0
    %964 = vmatprep.subr.bf16.mxu0 0
    %965 = vmatpush1.bf16.msra.mxu0 0
    %966 = vmatprep.subr.bf16.mxu0 0
    %967 = vmatpush1.bf16.msra.mxu0 0
    %968 = vmatprep.subr.bf16.mxu0 0
    %969 = vmatpush1.bf16.msra.mxu0 0
    %970 = vmatprep.subr.bf16.mxu0 0
    %971 = vmatpush1.bf16.msra.mxu0 0
    %972 = vmatprep.mubr.bf16.mxu0 0
    %973 = vmatmul.mubr.bf16.gmra.mrb[0].mxu0 %v938
    %v974 = vpop.f32.mrb[0].mxu0
    %v975 = vadd.f32 %v881, %v974
    %v976 = vpop.f32.mrb[0].mxu0
    %v977 = vadd.f32 %v883, %v976
    %v978 = vpop.f32.mrb[0].mxu0
    %v979 = vadd.f32 %v885, %v978
    %v980 = vpop.f32.mrb[0].mxu0
    %v981 = vadd.f32 %v887, %v980
    %982 = vdwg.mxu0
    %983 = vmatprep.subr.bf16.mxu0 %v430
    %984 = vmatpush1.bf16.msra.mxu0 %v429
    %985 = vmatprep.subr.bf16.mxu0 %v434
    %986 = vmatpush1.bf16.msra.mxu0 %v433
    %987 = vmatprep.subr.bf16.mxu0 %v438
    %988 = vmatpush1.bf16.msra.mxu0 %v437
    %989 = vmatprep.subr.bf16.mxu0 %v442
    %990 = vmatpush1.bf16.msra.mxu0 %v441
    %991 = vmatprep.subr.bf16.mxu0 0
    %992 = vmatpush1.bf16.msra.mxu0 0
    %993 = vmatprep.subr.bf16.mxu0 0
    %994 = vmatpush1.bf16.msra.mxu0 0
    %995 = vmatprep.subr.bf16.mxu0 0
    %996 = vmatpush1.bf16.msra.mxu0 0
    %997 = vmatprep.subr.bf16.mxu0 0
    %998 = vmatpush1.bf16.msra.mxu0 0
    %999 = vmatprep.subr.bf16.mxu0 0
    %1000 = vmatpush1.bf16.msra.mxu0 0
    %1001 = vmatprep.subr.bf16.mxu0 0
    %1002 = vmatpush1.bf16.msra.mxu0 0
    %1003 = vmatprep.subr.bf16.mxu0 0
    %1004 = vmatpush1.bf16.msra.mxu0 0
    %1005 = vmatprep.subr.bf16.mxu0 0
    %1006 = vmatpush1.bf16.msra.mxu0 0
    %1007 = vmatprep.subr.bf16.mxu0 0
    %1008 = vmatpush1.bf16.msra.mxu0 0
    %1009 = vmatprep.subr.bf16.mxu0 0
    %1010 = vmatpush1.bf16.msra.mxu0 0
    %1011 = vmatprep.subr.bf16.mxu0 0
    %1012 = vmatpush1.bf16.msra.mxu0 0
    %1013 = vmatprep.subr.bf16.mxu0 0
    %1014 = vmatpush1.bf16.msra.mxu0 0
    %1015 = vmatprep.mubr.bf16.mxu0 0
    %1016 = vmatmul.mubr.bf16.gmra.mrb[0].mxu0 %v938
    %v1017 = vpop.f32.mrb[0].mxu0
    %v1018 = vadd.f32 %v924, %v1017
    %v1019 = vpop.f32.mrb[0].mxu0
    %v1020 = vadd.f32 %v926, %v1019
    %v1021 = vpop.f32.mrb[0].mxu0
    %v1022 = vadd.f32 %v928, %v1021
    %v1023 = vpop.f32.mrb[0].mxu0
    %v1024 = vadd.f32 %v930, %v1023
    %1025 = vdwg.mxu0
    %v1026 = vadd.f32 %v975, %v553
    %v1027 = vadd.f32 %v977, %v557
    %v1028 = vadd.f32 %v1018, %v561
    %v1029 = vadd.f32 %v1020, %v565
    %v1030 = vadd.f32 %v979, %v553
    %v1031 = vadd.f32 %v981, %v557
    %v1032 = vadd.f32 %v1022, %v561
    %v1033 = vadd.f32 %v1024, %v565
    %v1034 = vmul.f32 %v1026, 0.5
    %v1035 = vmul.f32 %v1030, 0.5
    %v1036 = vtanh.pop %v1034
    %v1037 = vtanh.pop %v1035
    %v1038 = vmul.f32 %v1036, 0.5
    %v1039 = vmul.f32 %v1037, 0.5
    %v1040 = vadd.f32 %v1038, 0.5
    %v1041 = vadd.f32 %v1039, 0.5
    %v1042 = vmul.f32 %v1027, 0.5
    %v1043 = vmul.f32 %v1031, 0.5
    %v1044 = vtanh.pop %v1042
    %v1045 = vtanh.pop %v1043
    %v1046 = vmul.f32 %v1044, 0.5
    %v1047 = vmul.f32 %v1045, 0.5
    %v1048 = vadd.f32 %v1046, 0.5
    %v1049 = vadd.f32 %v1047, 0.5
    %v1050 = vtanh.pop %v1028
    %v1051 = vtanh.pop %v1032
    %v1052 = vmul.f32 %v1029, 0.5
    %v1053 = vmul.f32 %v1033, 0.5
    %v1054 = vtanh.pop %v1052
    %v1055 = vtanh.pop %v1053
    %v1056 = vmul.f32 %v1054, 0.5
    %v1057 = vmul.f32 %v1055, 0.5
    %v1058 = vadd.f32 %v1056, 0.5
    %v1059 = vadd.f32 %v1057, 0.5
    %v1060 = vmul.f32 %v1048, %v836
    %v1061 = vmul.f32 %v1049, %v837
    %v1062 = vmul.f32 %v1040, %v1050
    %v1063 = vmul.f32 %v1041, %v1051
    %v1064 = vadd.f32 %v1060, %v1062
    %v1065 = vadd.f32 %v1061, %v1063
    %v1066 = vtanh.pop %v1064
    %v1067 = vtanh.pop %v1065
    %v1068 = vmul.f32 %v1058, %v1066
    %v1069 = vmul.f32 %v1059, %v1067
    %s1070 = scalar_lea.vmem %s59, 32
    %v1071 = vld [vmem:[%s1070] sm:$0xf]
    %v1072 = vld [vmem:[%s1070 + $0x4] sm:$0xf]
    %v1073 = vpack.c.bf16 %v1069, %v1068
    %1074 = vmatprep.subr.bf16.mxu0 %v225
    %1075 = vmatpush1.bf16.msra.mxu0 %v224
    %1076 = vmatprep.subr.bf16.mxu0 %v229
    %1077 = vmatpush1.bf16.msra.mxu0 %v228
    %1078 = vmatprep.subr.bf16.mxu0 %v233
    %1079 = vmatpush1.bf16.msra.mxu0 %v232
    %1080 = vmatprep.subr.bf16.mxu0 %v237
    %1081 = vmatpush1.bf16.msra.mxu0 %v236
    %1082 = vmatprep.subr.bf16.mxu0 %v241
    %1083 = vmatpush1.bf16.msra.mxu0 %v240
    %1084 = vmatprep.subr.bf16.mxu0 %v245
    %1085 = vmatpush1.bf16.msra.mxu0 %v244
    %1086 = vmatprep.subr.bf16.mxu0 %v249
    %1087 = vmatpush1.bf16.msra.mxu0 %v248
    %1088 = vmatprep.subr.bf16.mxu0 %v253
    %1089 = vmatpush1.bf16.msra.mxu0 %v252
    %1090 = vmatprep.subr.bf16.mxu0 0
    %1091 = vmatpush1.bf16.msra.mxu0 0
    %1092 = vmatprep.subr.bf16.mxu0 0
    %1093 = vmatpush1.bf16.msra.mxu0 0
    %1094 = vmatprep.subr.bf16.mxu0 0
    %1095 = vmatpush1.bf16.msra.mxu0 0
    %1096 = vmatprep.subr.bf16.mxu0 0
    %1097 = vmatpush1.bf16.msra.mxu0 0
    %1098 = vmatprep.subr.bf16.mxu0 0
    %1099 = vmatpush1.bf16.msra.mxu0 0
    %1100 = vmatprep.subr.bf16.mxu0 0
    %1101 = vmatpush1.bf16.msra.mxu0 0
    %1102 = vmatprep.subr.bf16.mxu0 0
    %1103 = vmatpush1.bf16.msra.mxu0 0
    %1104 = vmatprep.subr.bf16.mxu0 0
    %1105 = vmatpush1.bf16.msra.mxu0 0
    %1106 = vmatprep.mubr.bf16.mxu0 0
    %1107 = vmatmul.mubr.bf16.gmra.mrb[0].mxu0 %v1073
    %v1108 = vpop.f32.mrb[0].mxu0
    %v1109 = vadd.f32 0.0, %v1108
    %v1110 = vpop.f32.mrb[0].mxu0
    %v1111 = vadd.f32 0.0, %v1110
    %v1112 = vpop.f32.mrb[0].mxu0
    %v1113 = vadd.f32 0.0, %v1112
    %v1114 = vpop.f32.mrb[0].mxu0
    %v1115 = vadd.f32 0.0, %v1114
    %1116 = vdwg.mxu0
    %1117 = vmatprep.subr.bf16.mxu0 %v227
    %1118 = vmatpush1.bf16.msra.mxu0 %v226
    %1119 = vmatprep.subr.bf16.mxu0 %v231
    %1120 = vmatpush1.bf16.msra.mxu0 %v230
    %1121 = vmatprep.subr.bf16.mxu0 %v235
    %1122 = vmatpush1.bf16.msra.mxu0 %v234
    %1123 = vmatprep.subr.bf16.mxu0 %v239
    %1124 = vmatpush1.bf16.msra.mxu0 %v238
    %1125 = vmatprep.subr.bf16.mxu0 %v243
    %1126 = vmatpush1.bf16.msra.mxu0 %v242
    %1127 = vmatprep.subr.bf16.mxu0 %v247
    %1128 = vmatpush1.bf16.msra.mxu0 %v246
    %1129 = vmatprep.subr.bf16.mxu0 %v251
    %1130 = vmatpush1.bf16.msra.mxu0 %v250
    %1131 = vmatprep.subr.bf16.mxu0 %v255
    %1132 = vmatpush1.bf16.msra.mxu0 %v254
    %1133 = vmatprep.subr.bf16.mxu0 0
    %1134 = vmatpush1.bf16.msra.mxu0 0
    %1135 = vmatprep.subr.bf16.mxu0 0
    %1136 = vmatpush1.bf16.msra.mxu0 0
    %1137 = vmatprep.subr.bf16.mxu0 0
    %1138 = vmatpush1.bf16.msra.mxu0 0
    %1139 = vmatprep.subr.bf16.mxu0 0
    %1140 = vmatpush1.bf16.msra.mxu0 0
    %1141 = vmatprep.subr.bf16.mxu0 0
    %1142 = vmatpush1.bf16.msra.mxu0 0
    %1143 = vmatprep.subr.bf16.mxu0 0
    %1144 = vmatpush1.bf16.msra.mxu0 0
    %1145 = vmatprep.subr.bf16.mxu0 0
    %1146 = vmatpush1.bf16.msra.mxu0 0
    %1147 = vmatprep.subr.bf16.mxu0 0
    %1148 = vmatpush1.bf16.msra.mxu0 0
    %1149 = vmatprep.mubr.bf16.mxu0 0
    %1150 = vmatmul.mubr.bf16.gmra.mrb[0].mxu0 %v1073
    %v1151 = vpop.f32.mrb[0].mxu0
    %v1152 = vadd.f32 0.0, %v1151
    %v1153 = vpop.f32.mrb[0].mxu0
    %v1154 = vadd.f32 0.0, %v1153
    %v1155 = vpop.f32.mrb[0].mxu0
    %v1156 = vadd.f32 0.0, %v1155
    %v1157 = vpop.f32.mrb[0].mxu0
    %v1158 = vadd.f32 0.0, %v1157
    %1159 = vdwg.mxu0
    %v1162 = vunpack.c.l.b16 %v1071
    %v1163 = vunpack.c.l.b16 %v1072
    %v1164 = vpack.c.b16 %v1163, %v1162
    %v1166 = vsel %vm459, %v1164, 0
    %1168 = vmatprep.subr.bf16.mxu0 %v428
    %1169 = vmatpush1.bf16.msra.mxu0 %v427
    %1170 = vmatprep.subr.bf16.mxu0 %v432
    %1171 = vmatpush1.bf16.msra.mxu0 %v431
    %1172 = vmatprep.subr.bf16.mxu0 %v436
    %1173 = vmatpush1.bf16.msra.mxu0 %v435
    %1174 = vmatprep.subr.bf16.mxu0 %v440
    %1175 = vmatpush1.bf16.msra.mxu0 %v439
    %1176 = vmatprep.subr.bf16.mxu0 0
    %1177 = vmatpush1.bf16.msra.mxu0 0
    %1178 = vmatprep.subr.bf16.mxu0 0
    %1179 = vmatpush1.bf16.msra.mxu0 0
    %1180 = vmatprep.subr.bf16.mxu0 0
    %1181 = vmatpush1.bf16.msra.mxu0 0
    %1182 = vmatprep.subr.bf16.mxu0 0
    %1183 = vmatpush1.bf16.msra.mxu0 0
    %1184 = vmatprep.subr.bf16.mxu0 0
    %1185 = vmatpush1.bf16.msra.mxu0 0
    %1186 = vmatprep.subr.bf16.mxu0 0
    %1187 = vmatpush1.bf16.msra.mxu0 0
    %1188 = vmatprep.subr.bf16.mxu0 0
    %1189 = vmatpush1.bf16.msra.mxu0 0
    %1190 = vmatprep.subr.bf16.mxu0 0
    %1191 = vmatpush1.bf16.msra.mxu0 0
    %1192 = vmatprep.subr.bf16.mxu0 0
    %1193 = vmatpush1.bf16.msra.mxu0 0
    %1194 = vmatprep.subr.bf16.mxu0 0
    %1195 = vmatpush1.bf16.msra.mxu0 0
    %1196 = vmatprep.subr.bf16.mxu0 0
    %1197 = vmatpush1.bf16.msra.mxu0 0
    %1198 = vmatprep.subr.bf16.mxu0 0
    %1199 = vmatpush1.bf16.msra.mxu0 0
    %1200 = vmatprep.mubr.bf16.mxu0 0
    %1201 = vmatmul.mubr.bf16.gmra.mrb[0].mxu0 %v1166
    %v1202 = vpop.f32.mrb[0].mxu0
    %v1203 = vadd.f32 %v1109, %v1202
    %v1204 = vpop.f32.mrb[0].mxu0
    %v1205 = vadd.f32 %v1111, %v1204
    %v1206 = vpop.f32.mrb[0].mxu0
    %v1207 = vadd.f32 %v1113, %v1206
    %v1208 = vpop.f32.mrb[0].mxu0
    %v1209 = vadd.f32 %v1115, %v1208
    %1210 = vdwg.mxu0
    %1211 = vmatprep.subr.bf16.mxu0 %v430
    %1212 = vmatpush1.bf16.msra.mxu0 %v429
    %1213 = vmatprep.subr.bf16.mxu0 %v434
    %1214 = vmatpush1.bf16.msra.mxu0 %v433
    %1215 = vmatprep.subr.bf16.mxu0 %v438
    %1216 = vmatpush1.bf16.msra.mxu0 %v437
    %1217 = vmatprep.subr.bf16.mxu0 %v442
    %1218 = vmatpush1.bf16.msra.mxu0 %v441
    %1219 = vmatprep.subr.bf16.mxu0 0
    %1220 = vmatpush1.bf16.msra.mxu0 0
    %1221 = vmatprep.subr.bf16.mxu0 0
    %1222 = vmatpush1.bf16.msra.mxu0 0
    %1223 = vmatprep.subr.bf16.mxu0 0
    %1224 = vmatpush1.bf16.msra.mxu0 0
    %1225 = vmatprep.subr.bf16.mxu0 0
    %1226 = vmatpush1.bf16.msra.mxu0 0
    %1227 = vmatprep.subr.bf16.mxu0 0
    %1228 = vmatpush1.bf16.msra.mxu0 0
    %1229 = vmatprep.subr.bf16.mxu0 0
    %1230 = vmatpush1.bf16.msra.mxu0 0
    %1231 = vmatprep.subr.bf16.mxu0 0
    %1232 = vmatpush1.bf16.msra.mxu0 0
    %1233 = vmatprep.subr.bf16.mxu0 0
    %1234 = vmatpush1.bf16.msra.mxu0 0
    %1235 = vmatprep.subr.bf16.mxu0 0
    %1236 = vmatpush1.bf16.msra.mxu0 0
    %1237 = vmatprep.subr.bf16.mxu0 0
    %1238 = vmatpush1.bf16.msra.mxu0 0
    %1239 = vmatprep.subr.bf16.mxu0 0
    %1240 = vmatpush1.bf16.msra.mxu0 0
    %1241 = vmatprep.subr.bf16.mxu0 0
    %1242 = vmatpush1.bf16.msra.mxu0 0
    %1243 = vmatprep.mubr.bf16.mxu0 0
    %1244 = vmatmul.mubr.bf16.gmra.mrb[0].mxu0 %v1166
    %v1245 = vpop.f32.mrb[0].mxu0
    %v1246 = vadd.f32 %v1152, %v1245
    %v1247 = vpop.f32.mrb[0].mxu0
    %v1248 = vadd.f32 %v1154, %v1247
    %v1249 = vpop.f32.mrb[0].mxu0
    %v1250 = vadd.f32 %v1156, %v1249
    %v1251 = vpop.f32.mrb[0].mxu0
    %v1252 = vadd.f32 %v1158, %v1251
    %1253 = vdwg.mxu0
    %v1254 = vadd.f32 %v1203, %v553
    %v1255 = vadd.f32 %v1205, %v557
    %v1256 = vadd.f32 %v1246, %v561
    %v1257 = vadd.f32 %v1248, %v565
    %v1258 = vadd.f32 %v1207, %v553
    %v1259 = vadd.f32 %v1209, %v557
    %v1260 = vadd.f32 %v1250, %v561
    %v1261 = vadd.f32 %v1252, %v565
    %v1262 = vmul.f32 %v1254, 0.5
    %v1263 = vmul.f32 %v1258, 0.5
    %v1264 = vtanh.pop %v1262
    %v1265 = vtanh.pop %v1263
    %v1266 = vmul.f32 %v1264, 0.5
    %v1267 = vmul.f32 %v1265, 0.5
    %v1268 = vadd.f32 %v1266, 0.5
    %v1269 = vadd.f32 %v1267, 0.5
    %v1270 = vmul.f32 %v1255, 0.5
    %v1271 = vmul.f32 %v1259, 0.5
    %v1272 = vtanh.pop %v1270
    %v1273 = vtanh.pop %v1271
    %v1274 = vmul.f32 %v1272, 0.5
    %v1275 = vmul.f32 %v1273, 0.5
    %v1276 = vadd.f32 %v1274, 0.5
    %v1277 = vadd.f32 %v1275, 0.5
    %v1278 = vtanh.pop %v1256
    %v1279 = vtanh.pop %v1260
    %v1280 = vmul.f32 %v1257, 0.5
    %v1281 = vmul.f32 %v1261, 0.5
    %v1282 = vtanh.pop %v1280
    %v1283 = vtanh.pop %v1281
    %v1284 = vmul.f32 %v1282, 0.5
    %v1285 = vmul.f32 %v1283, 0.5
    %v1286 = vadd.f32 %v1284, 0.5
    %v1287 = vadd.f32 %v1285, 0.5
    %v1288 = vmul.f32 %v1276, %v1064
    %v1289 = vmul.f32 %v1277, %v1065
    %v1290 = vmul.f32 %v1268, %v1278
    %v1291 = vmul.f32 %v1269, %v1279
    %v1292 = vadd.f32 %v1288, %v1290
    %v1293 = vadd.f32 %v1289, %v1291
    %v1294 = vtanh.pop %v1292
    %v1295 = vtanh.pop %v1293
    %v1296 = vmul.f32 %v1286, %v1294
    %v1297 = vmul.f32 %v1287, %v1295
    %s1298 = scalar_lea.vmem %s59, 24
    %v1299 = vld [vmem:[%s1298] sm:$0xf]
    %v1300 = vld [vmem:[%s1298 + $0x4] sm:$0xf]
    %v1301 = vpack.c.bf16 %v1297, %v1296
    %1302 = vmatprep.subr.bf16.mxu0 %v225
    %1303 = vmatpush1.bf16.msra.mxu0 %v224
    %1304 = vmatprep.subr.bf16.mxu0 %v229
    %1305 = vmatpush1.bf16.msra.mxu0 %v228
    %1306 = vmatprep.subr.bf16.mxu0 %v233
    %1307 = vmatpush1.bf16.msra.mxu0 %v232
    %1308 = vmatprep.subr.bf16.mxu0 %v237
    %1309 = vmatpush1.bf16.msra.mxu0 %v236
    %1310 = vmatprep.subr.bf16.mxu0 %v241
    %1311 = vmatpush1.bf16.msra.mxu0 %v240
    %1312 = vmatprep.subr.bf16.mxu0 %v245
    %1313 = vmatpush1.bf16.msra.mxu0 %v244
    %1314 = vmatprep.subr.bf16.mxu0 %v249
    %1315 = vmatpush1.bf16.msra.mxu0 %v248
    %1316 = vmatprep.subr.bf16.mxu0 %v253
    %1317 = vmatpush1.bf16.msra.mxu0 %v252
    %1318 = vmatprep.subr.bf16.mxu0 0
    %1319 = vmatpush1.bf16.msra.mxu0 0
    %1320 = vmatprep.subr.bf16.mxu0 0
    %1321 = vmatpush1.bf16.msra.mxu0 0
    %1322 = vmatprep.subr.bf16.mxu0 0
    %1323 = vmatpush1.bf16.msra.mxu0 0
    %1324 = vmatprep.subr.bf16.mxu0 0
    %1325 = vmatpush1.bf16.msra.mxu0 0
    %1326 = vmatprep.subr.bf16.mxu0 0
    %1327 = vmatpush1.bf16.msra.mxu0 0
    %1328 = vmatprep.subr.bf16.mxu0 0
    %1329 = vmatpush1.bf16.msra.mxu0 0
    %1330 = vmatprep.subr.bf16.mxu0 0
    %1331 = vmatpush1.bf16.msra.mxu0 0
    %1332 = vmatprep.subr.bf16.mxu0 0
    %1333 = vmatpush1.bf16.msra.mxu0 0
    %1334 = vmatprep.mubr.bf16.mxu0 0
    %1335 = vmatmul.mubr.bf16.gmra.mrb[0].mxu0 %v1301
    %v1336 = vpop.f32.mrb[0].mxu0
    %v1337 = vadd.f32 0.0, %v1336
    %v1338 = vpop.f32.mrb[0].mxu0
    %v1339 = vadd.f32 0.0, %v1338
    %v1340 = vpop.f32.mrb[0].mxu0
    %v1341 = vadd.f32 0.0, %v1340
    %v1342 = vpop.f32.mrb[0].mxu0
    %v1343 = vadd.f32 0.0, %v1342
    %1344 = vdwg.mxu0
    %1345 = vmatprep.subr.bf16.mxu0 %v227
    %1346 = vmatpush1.bf16.msra.mxu0 %v226
    %1347 = vmatprep.subr.bf16.mxu0 %v231
    %1348 = vmatpush1.bf16.msra.mxu0 %v230
    %1349 = vmatprep.subr.bf16.mxu0 %v235
    %1350 = vmatpush1.bf16.msra.mxu0 %v234
    %1351 = vmatprep.subr.bf16.mxu0 %v239
    %1352 = vmatpush1.bf16.msra.mxu0 %v238
    %1353 = vmatprep.subr.bf16.mxu0 %v243
    %1354 = vmatpush1.bf16.msra.mxu0 %v242
    %1355 = vmatprep.subr.bf16.mxu0 %v247
    %1356 = vmatpush1.bf16.msra.mxu0 %v246
    %1357 = vmatprep.subr.bf16.mxu0 %v251
    %1358 = vmatpush1.bf16.msra.mxu0 %v250
    %1359 = vmatprep.subr.bf16.mxu0 %v255
    %1360 = vmatpush1.bf16.msra.mxu0 %v254
    %1361 = vmatprep.subr.bf16.mxu0 0
    %1362 = vmatpush1.bf16.msra.mxu0 0
    %1363 = vmatprep.subr.bf16.mxu0 0
    %1364 = vmatpush1.bf16.msra.mxu0 0
    %1365 = vmatprep.subr.bf16.mxu0 0
    %1366 = vmatpush1.bf16.msra.mxu0 0
    %1367 = vmatprep.subr.bf16.mxu0 0
    %1368 = vmatpush1.bf16.msra.mxu0 0
    %1369 = vmatprep.subr.bf16.mxu0 0
    %1370 = vmatpush1.bf16.msra.mxu0 0
    %1371 = vmatprep.subr.bf16.mxu0 0
    %1372 = vmatpush1.bf16.msra.mxu0 0
    %1373 = vmatprep.subr.bf16.mxu0 0
    %1374 = vmatpush1.bf16.msra.mxu0 0
    %1375 = vmatprep.subr.bf16.mxu0 0
    %1376 = vmatpush1.bf16.msra.mxu0 0
    %1377 = vmatprep.mubr.bf16.mxu0 0
    %1378 = vmatmul.mubr.bf16.gmra.mrb[0].mxu0 %v1301
    %v1379 = vpop.f32.mrb[0].mxu0
    %v1380 = vadd.f32 0.0, %v1379
    %v1381 = vpop.f32.mrb[0].mxu0
    %v1382 = vadd.f32 0.0, %v1381
    %v1383 = vpop.f32.mrb[0].mxu0
    %v1384 = vadd.f32 0.0, %v1383
    %v1385 = vpop.f32.mrb[0].mxu0
    %v1386 = vadd.f32 0.0, %v1385
    %1387 = vdwg.mxu0
    %v1390 = vunpack.c.l.b16 %v1299
    %v1391 = vunpack.c.l.b16 %v1300
    %v1392 = vpack.c.b16 %v1391, %v1390
    %v1394 = vsel %vm459, %v1392, 0
    %1396 = vmatprep.subr.bf16.mxu0 %v428
    %1397 = vmatpush1.bf16.msra.mxu0 %v427
    %1398 = vmatprep.subr.bf16.mxu0 %v432
    %1399 = vmatpush1.bf16.msra.mxu0 %v431
    %1400 = vmatprep.subr.bf16.mxu0 %v436
    %1401 = vmatpush1.bf16.msra.mxu0 %v435
    %1402 = vmatprep.subr.bf16.mxu0 %v440
    %1403 = vmatpush1.bf16.msra.mxu0 %v439
    %1404 = vmatprep.subr.bf16.mxu0 0
    %1405 = vmatpush1.bf16.msra.mxu0 0
    %1406 = vmatprep.subr.bf16.mxu0 0
    %1407 = vmatpush1.bf16.msra.mxu0 0
    %1408 = vmatprep.subr.bf16.mxu0 0
    %1409 = vmatpush1.bf16.msra.mxu0 0
    %1410 = vmatprep.subr.bf16.mxu0 0
    %1411 = vmatpush1.bf16.msra.mxu0 0
    %1412 = vmatprep.subr.bf16.mxu0 0
    %1413 = vmatpush1.bf16.msra.mxu0 0
    %1414 = vmatprep.subr.bf16.mxu0 0
    %1415 = vmatpush1.bf16.msra.mxu0 0
    %1416 = vmatprep.subr.bf16.mxu0 0
    %1417 = vmatpush1.bf16.msra.mxu0 0
    %1418 = vmatprep.subr.bf16.mxu0 0
    %1419 = vmatpush1.bf16.msra.mxu0 0
    %1420 = vmatprep.subr.bf16.mxu0 0
    %1421 = vmatpush1.bf16.msra.mxu0 0
    %1422 = vmatprep.subr.bf16.mxu0 0
    %1423 = vmatpush1.bf16.msra.mxu0 0
    %1424 = vmatprep.subr.bf16.mxu0 0
    %1425 = vmatpush1.bf16.msra.mxu0 0
    %1426 = vmatprep.subr.bf16.mxu0 0
    %1427 = vmatpush1.bf16.msra.mxu0 0
    %1428 = vmatprep.mubr.bf16.mxu0 0
    %1429 = vmatmul.mubr.bf16.gmra.mrb[0].mxu0 %v1394
    %v1430 = vpop.f32.mrb[0].mxu0
    %v1431 = vadd.f32 %v1337, %v1430
    %v1432 = vpop.f32.mrb[0].mxu0
    %v1433 = vadd.f32 %v1339, %v1432
    %v1434 = vpop.f32.mrb[0].mxu0
    %v1435 = vadd.f32 %v1341, %v1434
    %v1436 = vpop.f32.mrb[0].mxu0
    %v1437 = vadd.f32 %v1343, %v1436
    %1438 = vdwg.mxu0
    %1439 = vmatprep.subr.bf16.mxu0 %v430
    %1440 = vmatpush1.bf16.msra.mxu0 %v429
    %1441 = vmatprep.subr.bf16.mxu0 %v434
    %1442 = vmatpush1.bf16.msra.mxu0 %v433
    %1443 = vmatprep.subr.bf16.mxu0 %v438
    %1444 = vmatpush1.bf16.msra.mxu0 %v437
    %1445 = vmatprep.subr.bf16.mxu0 %v442
    %1446 = vmatpush1.bf16.msra.mxu0 %v441
    %1447 = vmatprep.subr.bf16.mxu0 0
    %1448 = vmatpush1.bf16.msra.mxu0 0
    %1449 = vmatprep.subr.bf16.mxu0 0
    %1450 = vmatpush1.bf16.msra.mxu0 0
    %1451 = vmatprep.subr.bf16.mxu0 0
    %1452 = vmatpush1.bf16.msra.mxu0 0
    %1453 = vmatprep.subr.bf16.mxu0 0
    %1454 = vmatpush1.bf16.msra.mxu0 0
    %1455 = vmatprep.subr.bf16.mxu0 0
    %1456 = vmatpush1.bf16.msra.mxu0 0
    %1457 = vmatprep.subr.bf16.mxu0 0
    %1458 = vmatpush1.bf16.msra.mxu0 0
    %1459 = vmatprep.subr.bf16.mxu0 0
    %1460 = vmatpush1.bf16.msra.mxu0 0
    %1461 = vmatprep.subr.bf16.mxu0 0
    %1462 = vmatpush1.bf16.msra.mxu0 0
    %1463 = vmatprep.subr.bf16.mxu0 0
    %1464 = vmatpush1.bf16.msra.mxu0 0
    %1465 = vmatprep.subr.bf16.mxu0 0
    %1466 = vmatpush1.bf16.msra.mxu0 0
    %1467 = vmatprep.subr.bf16.mxu0 0
    %1468 = vmatpush1.bf16.msra.mxu0 0
    %1469 = vmatprep.subr.bf16.mxu0 0
    %1470 = vmatpush1.bf16.msra.mxu0 0
    %1471 = vmatprep.mubr.bf16.mxu0 0
    %1472 = vmatmul.mubr.bf16.gmra.mrb[0].mxu0 %v1394
    %v1473 = vpop.f32.mrb[0].mxu0
    %v1474 = vadd.f32 %v1380, %v1473
    %v1475 = vpop.f32.mrb[0].mxu0
    %v1476 = vadd.f32 %v1382, %v1475
    %v1477 = vpop.f32.mrb[0].mxu0
    %v1478 = vadd.f32 %v1384, %v1477
    %v1479 = vpop.f32.mrb[0].mxu0
    %v1480 = vadd.f32 %v1386, %v1479
    %1481 = vdwg.mxu0
    %v1482 = vadd.f32 %v1431, %v553
    %v1483 = vadd.f32 %v1433, %v557
    %v1484 = vadd.f32 %v1474, %v561
    %v1485 = vadd.f32 %v1476, %v565
    %v1486 = vadd.f32 %v1435, %v553
    %v1487 = vadd.f32 %v1437, %v557
    %v1488 = vadd.f32 %v1478, %v561
    %v1489 = vadd.f32 %v1480, %v565
    %v1490 = vmul.f32 %v1482, 0.5
    %v1491 = vmul.f32 %v1486, 0.5
    %v1492 = vtanh.pop %v1490
    %v1493 = vtanh.pop %v1491
    %v1494 = vmul.f32 %v1492, 0.5
    %v1495 = vmul.f32 %v1493, 0.5
    %v1496 = vadd.f32 %v1494, 0.5
    %v1497 = vadd.f32 %v1495, 0.5
    %v1498 = vmul.f32 %v1483, 0.5
    %v1499 = vmul.f32 %v1487, 0.5
    %v1500 = vtanh.pop %v1498
    %v1501 = vtanh.pop %v1499
    %v1502 = vmul.f32 %v1500, 0.5
    %v1503 = vmul.f32 %v1501, 0.5
    %v1504 = vadd.f32 %v1502, 0.5
    %v1505 = vadd.f32 %v1503, 0.5
    %v1506 = vtanh.pop %v1484
    %v1507 = vtanh.pop %v1488
    %v1508 = vmul.f32 %v1485, 0.5
    %v1509 = vmul.f32 %v1489, 0.5
    %v1510 = vtanh.pop %v1508
    %v1511 = vtanh.pop %v1509
    %v1512 = vmul.f32 %v1510, 0.5
    %v1513 = vmul.f32 %v1511, 0.5
    %v1514 = vadd.f32 %v1512, 0.5
    %v1515 = vadd.f32 %v1513, 0.5
    %v1516 = vmul.f32 %v1504, %v1292
    %v1517 = vmul.f32 %v1505, %v1293
    %v1518 = vmul.f32 %v1496, %v1506
    %v1519 = vmul.f32 %v1497, %v1507
    %v1520 = vadd.f32 %v1516, %v1518
    %v1521 = vadd.f32 %v1517, %v1519
    %v1522 = vtanh.pop %v1520
    %v1523 = vtanh.pop %v1521
    %v1524 = vmul.f32 %v1514, %v1522
    %v1525 = vmul.f32 %v1515, %v1523
    %s1526 = scalar_lea.vmem %s59, 16
    %v1527 = vld [vmem:[%s1526] sm:$0xf]
    %v1528 = vld [vmem:[%s1526 + $0x4] sm:$0xf]
    %v1529 = vpack.c.bf16 %v1525, %v1524
    %1530 = vmatprep.subr.bf16.mxu0 %v225
    %1531 = vmatpush1.bf16.msra.mxu0 %v224
    %1532 = vmatprep.subr.bf16.mxu0 %v229
    %1533 = vmatpush1.bf16.msra.mxu0 %v228
    %1534 = vmatprep.subr.bf16.mxu0 %v233
    %1535 = vmatpush1.bf16.msra.mxu0 %v232
    %1536 = vmatprep.subr.bf16.mxu0 %v237
    %1537 = vmatpush1.bf16.msra.mxu0 %v236
    %1538 = vmatprep.subr.bf16.mxu0 %v241
    %1539 = vmatpush1.bf16.msra.mxu0 %v240
    %1540 = vmatprep.subr.bf16.mxu0 %v245
    %1541 = vmatpush1.bf16.msra.mxu0 %v244
    %1542 = vmatprep.subr.bf16.mxu0 %v249
    %1543 = vmatpush1.bf16.msra.mxu0 %v248
    %1544 = vmatprep.subr.bf16.mxu0 %v253
    %1545 = vmatpush1.bf16.msra.mxu0 %v252
    %1546 = vmatprep.subr.bf16.mxu0 0
    %1547 = vmatpush1.bf16.msra.mxu0 0
    %1548 = vmatprep.subr.bf16.mxu0 0
    %1549 = vmatpush1.bf16.msra.mxu0 0
    %1550 = vmatprep.subr.bf16.mxu0 0
    %1551 = vmatpush1.bf16.msra.mxu0 0
    %1552 = vmatprep.subr.bf16.mxu0 0
    %1553 = vmatpush1.bf16.msra.mxu0 0
    %1554 = vmatprep.subr.bf16.mxu0 0
    %1555 = vmatpush1.bf16.msra.mxu0 0
    %1556 = vmatprep.subr.bf16.mxu0 0
    %1557 = vmatpush1.bf16.msra.mxu0 0
    %1558 = vmatprep.subr.bf16.mxu0 0
    %1559 = vmatpush1.bf16.msra.mxu0 0
    %1560 = vmatprep.subr.bf16.mxu0 0
    %1561 = vmatpush1.bf16.msra.mxu0 0
    %1562 = vmatprep.mubr.bf16.mxu0 0
    %1563 = vmatmul.mubr.bf16.gmra.mrb[0].mxu0 %v1529
    %v1564 = vpop.f32.mrb[0].mxu0
    %v1565 = vadd.f32 0.0, %v1564
    %v1566 = vpop.f32.mrb[0].mxu0
    %v1567 = vadd.f32 0.0, %v1566
    %v1568 = vpop.f32.mrb[0].mxu0
    %v1569 = vadd.f32 0.0, %v1568
    %v1570 = vpop.f32.mrb[0].mxu0
    %v1571 = vadd.f32 0.0, %v1570
    %1572 = vdwg.mxu0
    %1573 = vmatprep.subr.bf16.mxu0 %v227
    %1574 = vmatpush1.bf16.msra.mxu0 %v226
    %1575 = vmatprep.subr.bf16.mxu0 %v231
    %1576 = vmatpush1.bf16.msra.mxu0 %v230
    %1577 = vmatprep.subr.bf16.mxu0 %v235
    %1578 = vmatpush1.bf16.msra.mxu0 %v234
    %1579 = vmatprep.subr.bf16.mxu0 %v239
    %1580 = vmatpush1.bf16.msra.mxu0 %v238
    %1581 = vmatprep.subr.bf16.mxu0 %v243
    %1582 = vmatpush1.bf16.msra.mxu0 %v242
    %1583 = vmatprep.subr.bf16.mxu0 %v247
    %1584 = vmatpush1.bf16.msra.mxu0 %v246
    %1585 = vmatprep.subr.bf16.mxu0 %v251
    %1586 = vmatpush1.bf16.msra.mxu0 %v250
    %1587 = vmatprep.subr.bf16.mxu0 %v255
    %1588 = vmatpush1.bf16.msra.mxu0 %v254
    %1589 = vmatprep.subr.bf16.mxu0 0
    %1590 = vmatpush1.bf16.msra.mxu0 0
    %1591 = vmatprep.subr.bf16.mxu0 0
    %1592 = vmatpush1.bf16.msra.mxu0 0
    %1593 = vmatprep.subr.bf16.mxu0 0
    %1594 = vmatpush1.bf16.msra.mxu0 0
    %1595 = vmatprep.subr.bf16.mxu0 0
    %1596 = vmatpush1.bf16.msra.mxu0 0
    %1597 = vmatprep.subr.bf16.mxu0 0
    %1598 = vmatpush1.bf16.msra.mxu0 0
    %1599 = vmatprep.subr.bf16.mxu0 0
    %1600 = vmatpush1.bf16.msra.mxu0 0
    %1601 = vmatprep.subr.bf16.mxu0 0
    %1602 = vmatpush1.bf16.msra.mxu0 0
    %1603 = vmatprep.subr.bf16.mxu0 0
    %1604 = vmatpush1.bf16.msra.mxu0 0
    %1605 = vmatprep.mubr.bf16.mxu0 0
    %1606 = vmatmul.mubr.bf16.gmra.mrb[0].mxu0 %v1529
    %v1607 = vpop.f32.mrb[0].mxu0
    %v1608 = vadd.f32 0.0, %v1607
    %v1609 = vpop.f32.mrb[0].mxu0
    %v1610 = vadd.f32 0.0, %v1609
    %v1611 = vpop.f32.mrb[0].mxu0
    %v1612 = vadd.f32 0.0, %v1611
    %v1613 = vpop.f32.mrb[0].mxu0
    %v1614 = vadd.f32 0.0, %v1613
    %1615 = vdwg.mxu0
    %v1618 = vunpack.c.l.b16 %v1527
    %v1619 = vunpack.c.l.b16 %v1528
    %v1620 = vpack.c.b16 %v1619, %v1618
    %v1622 = vsel %vm459, %v1620, 0
    %1624 = vmatprep.subr.bf16.mxu0 %v428
    %1625 = vmatpush1.bf16.msra.mxu0 %v427
    %1626 = vmatprep.subr.bf16.mxu0 %v432
    %1627 = vmatpush1.bf16.msra.mxu0 %v431
    %1628 = vmatprep.subr.bf16.mxu0 %v436
    %1629 = vmatpush1.bf16.msra.mxu0 %v435
    %1630 = vmatprep.subr.bf16.mxu0 %v440
    %1631 = vmatpush1.bf16.msra.mxu0 %v439
    %1632 = vmatprep.subr.bf16.mxu0 0
    %1633 = vmatpush1.bf16.msra.mxu0 0
    %1634 = vmatprep.subr.bf16.mxu0 0
    %1635 = vmatpush1.bf16.msra.mxu0 0
    %1636 = vmatprep.subr.bf16.mxu0 0
    %1637 = vmatpush1.bf16.msra.mxu0 0
    %1638 = vmatprep.subr.bf16.mxu0 0
    %1639 = vmatpush1.bf16.msra.mxu0 0
    %1640 = vmatprep.subr.bf16.mxu0 0
    %1641 = vmatpush1.bf16.msra.mxu0 0
    %1642 = vmatprep.subr.bf16.mxu0 0
    %1643 = vmatpush1.bf16.msra.mxu0 0
    %1644 = vmatprep.subr.bf16.mxu0 0
    %1645 = vmatpush1.bf16.msra.mxu0 0
    %1646 = vmatprep.subr.bf16.mxu0 0
    %1647 = vmatpush1.bf16.msra.mxu0 0
    %1648 = vmatprep.subr.bf16.mxu0 0
    %1649 = vmatpush1.bf16.msra.mxu0 0
    %1650 = vmatprep.subr.bf16.mxu0 0
    %1651 = vmatpush1.bf16.msra.mxu0 0
    %1652 = vmatprep.subr.bf16.mxu0 0
    %1653 = vmatpush1.bf16.msra.mxu0 0
    %1654 = vmatprep.subr.bf16.mxu0 0
    %1655 = vmatpush1.bf16.msra.mxu0 0
    %1656 = vmatprep.mubr.bf16.mxu0 0
    %1657 = vmatmul.mubr.bf16.gmra.mrb[0].mxu0 %v1622
    %v1658 = vpop.f32.mrb[0].mxu0
    %v1659 = vadd.f32 %v1565, %v1658
    %v1660 = vpop.f32.mrb[0].mxu0
    %v1661 = vadd.f32 %v1567, %v1660
    %v1662 = vpop.f32.mrb[0].mxu0
    %v1663 = vadd.f32 %v1569, %v1662
    %v1664 = vpop.f32.mrb[0].mxu0
    %v1665 = vadd.f32 %v1571, %v1664
    %1666 = vdwg.mxu0
    %1667 = vmatprep.subr.bf16.mxu0 %v430
    %1668 = vmatpush1.bf16.msra.mxu0 %v429
    %1669 = vmatprep.subr.bf16.mxu0 %v434
    %1670 = vmatpush1.bf16.msra.mxu0 %v433
    %1671 = vmatprep.subr.bf16.mxu0 %v438
    %1672 = vmatpush1.bf16.msra.mxu0 %v437
    %1673 = vmatprep.subr.bf16.mxu0 %v442
    %1674 = vmatpush1.bf16.msra.mxu0 %v441
    %1675 = vmatprep.subr.bf16.mxu0 0
    %1676 = vmatpush1.bf16.msra.mxu0 0
    %1677 = vmatprep.subr.bf16.mxu0 0
    %1678 = vmatpush1.bf16.msra.mxu0 0
    %1679 = vmatprep.subr.bf16.mxu0 0
    %1680 = vmatpush1.bf16.msra.mxu0 0
    %1681 = vmatprep.subr.bf16.mxu0 0
    %1682 = vmatpush1.bf16.msra.mxu0 0
    %1683 = vmatprep.subr.bf16.mxu0 0
    %1684 = vmatpush1.bf16.msra.mxu0 0
    %1685 = vmatprep.subr.bf16.mxu0 0
    %1686 = vmatpush1.bf16.msra.mxu0 0
    %1687 = vmatprep.subr.bf16.mxu0 0
    %1688 = vmatpush1.bf16.msra.mxu0 0
    %1689 = vmatprep.subr.bf16.mxu0 0
    %1690 = vmatpush1.bf16.msra.mxu0 0
    %1691 = vmatprep.subr.bf16.mxu0 0
    %1692 = vmatpush1.bf16.msra.mxu0 0
    %1693 = vmatprep.subr.bf16.mxu0 0
    %1694 = vmatpush1.bf16.msra.mxu0 0
    %1695 = vmatprep.subr.bf16.mxu0 0
    %1696 = vmatpush1.bf16.msra.mxu0 0
    %1697 = vmatprep.subr.bf16.mxu0 0
    %1698 = vmatpush1.bf16.msra.mxu0 0
    %1699 = vmatprep.mubr.bf16.mxu0 0
    %1700 = vmatmul.mubr.bf16.gmra.mrb[0].mxu0 %v1622
    %v1701 = vpop.f32.mrb[0].mxu0
    %v1702 = vadd.f32 %v1608, %v1701
    %v1703 = vpop.f32.mrb[0].mxu0
    %v1704 = vadd.f32 %v1610, %v1703
    %v1705 = vpop.f32.mrb[0].mxu0
    %v1706 = vadd.f32 %v1612, %v1705
    %v1707 = vpop.f32.mrb[0].mxu0
    %v1708 = vadd.f32 %v1614, %v1707
    %1709 = vdwg.mxu0
    %v1710 = vadd.f32 %v1659, %v553
    %v1711 = vadd.f32 %v1661, %v557
    %v1712 = vadd.f32 %v1702, %v561
    %v1713 = vadd.f32 %v1704, %v565
    %v1714 = vadd.f32 %v1663, %v553
    %v1715 = vadd.f32 %v1665, %v557
    %v1716 = vadd.f32 %v1706, %v561
    %v1717 = vadd.f32 %v1708, %v565
    %v1718 = vmul.f32 %v1710, 0.5
    %v1719 = vmul.f32 %v1714, 0.5
    %v1720 = vtanh.pop %v1718
    %v1721 = vtanh.pop %v1719
    %v1722 = vmul.f32 %v1720, 0.5
    %v1723 = vmul.f32 %v1721, 0.5
    %v1724 = vadd.f32 %v1722, 0.5
    %v1725 = vadd.f32 %v1723, 0.5
    %v1726 = vmul.f32 %v1711, 0.5
    %v1727 = vmul.f32 %v1715, 0.5
    %v1728 = vtanh.pop %v1726
    %v1729 = vtanh.pop %v1727
    %v1730 = vmul.f32 %v1728, 0.5
    %v1731 = vmul.f32 %v1729, 0.5
    %v1732 = vadd.f32 %v1730, 0.5
    %v1733 = vadd.f32 %v1731, 0.5
    %v1734 = vtanh.pop %v1712
    %v1735 = vtanh.pop %v1716
    %v1736 = vmul.f32 %v1713, 0.5
    %v1737 = vmul.f32 %v1717, 0.5
    %v1738 = vtanh.pop %v1736
    %v1739 = vtanh.pop %v1737
    %v1740 = vmul.f32 %v1738, 0.5
    %v1741 = vmul.f32 %v1739, 0.5
    %v1742 = vadd.f32 %v1740, 0.5
    %v1743 = vadd.f32 %v1741, 0.5
    %v1744 = vmul.f32 %v1732, %v1520
    %v1745 = vmul.f32 %v1733, %v1521
    %v1746 = vmul.f32 %v1724, %v1734
    %v1747 = vmul.f32 %v1725, %v1735
    %v1748 = vadd.f32 %v1744, %v1746
    %v1749 = vadd.f32 %v1745, %v1747
    %v1750 = vtanh.pop %v1748
    %v1751 = vtanh.pop %v1749
    %v1752 = vmul.f32 %v1742, %v1750
    %v1753 = vmul.f32 %v1743, %v1751
    %s1754 = scalar_lea.vmem %s59, 8
    %v1755 = vld [vmem:[%s1754] sm:$0xf]
    %v1756 = vld [vmem:[%s1754 + $0x4] sm:$0xf]
    %v1757 = vpack.c.bf16 %v1753, %v1752
    %1758 = vmatprep.subr.bf16.mxu0 %v225
    %1759 = vmatpush1.bf16.msra.mxu0 %v224
    %1760 = vmatprep.subr.bf16.mxu0 %v229
    %1761 = vmatpush1.bf16.msra.mxu0 %v228
    %1762 = vmatprep.subr.bf16.mxu0 %v233
    %1763 = vmatpush1.bf16.msra.mxu0 %v232
    %1764 = vmatprep.subr.bf16.mxu0 %v237
    %1765 = vmatpush1.bf16.msra.mxu0 %v236
    %1766 = vmatprep.subr.bf16.mxu0 %v241
    %1767 = vmatpush1.bf16.msra.mxu0 %v240
    %1768 = vmatprep.subr.bf16.mxu0 %v245
    %1769 = vmatpush1.bf16.msra.mxu0 %v244
    %1770 = vmatprep.subr.bf16.mxu0 %v249
    %1771 = vmatpush1.bf16.msra.mxu0 %v248
    %1772 = vmatprep.subr.bf16.mxu0 %v253
    %1773 = vmatpush1.bf16.msra.mxu0 %v252
    %1774 = vmatprep.subr.bf16.mxu0 0
    %1775 = vmatpush1.bf16.msra.mxu0 0
    %1776 = vmatprep.subr.bf16.mxu0 0
    %1777 = vmatpush1.bf16.msra.mxu0 0
    %1778 = vmatprep.subr.bf16.mxu0 0
    %1779 = vmatpush1.bf16.msra.mxu0 0
    %1780 = vmatprep.subr.bf16.mxu0 0
    %1781 = vmatpush1.bf16.msra.mxu0 0
    %1782 = vmatprep.subr.bf16.mxu0 0
    %1783 = vmatpush1.bf16.msra.mxu0 0
    %1784 = vmatprep.subr.bf16.mxu0 0
    %1785 = vmatpush1.bf16.msra.mxu0 0
    %1786 = vmatprep.subr.bf16.mxu0 0
    %1787 = vmatpush1.bf16.msra.mxu0 0
    %1788 = vmatprep.subr.bf16.mxu0 0
    %1789 = vmatpush1.bf16.msra.mxu0 0
    %1790 = vmatprep.mubr.bf16.mxu0 0
    %1791 = vmatmul.mubr.bf16.gmra.mrb[0].mxu0 %v1757
    %v1792 = vpop.f32.mrb[0].mxu0
    %v1793 = vadd.f32 0.0, %v1792
    %v1794 = vpop.f32.mrb[0].mxu0
    %v1795 = vadd.f32 0.0, %v1794
    %v1796 = vpop.f32.mrb[0].mxu0
    %v1797 = vadd.f32 0.0, %v1796
    %v1798 = vpop.f32.mrb[0].mxu0
    %v1799 = vadd.f32 0.0, %v1798
    %1800 = vdwg.mxu0
    %1801 = vmatprep.subr.bf16.mxu0 %v227
    %1802 = vmatpush1.bf16.msra.mxu0 %v226
    %1803 = vmatprep.subr.bf16.mxu0 %v231
    %1804 = vmatpush1.bf16.msra.mxu0 %v230
    %1805 = vmatprep.subr.bf16.mxu0 %v235
    %1806 = vmatpush1.bf16.msra.mxu0 %v234
    %1807 = vmatprep.subr.bf16.mxu0 %v239
    %1808 = vmatpush1.bf16.msra.mxu0 %v238
    %1809 = vmatprep.subr.bf16.mxu0 %v243
    %1810 = vmatpush1.bf16.msra.mxu0 %v242
    %1811 = vmatprep.subr.bf16.mxu0 %v247
    %1812 = vmatpush1.bf16.msra.mxu0 %v246
    %1813 = vmatprep.subr.bf16.mxu0 %v251
    %1814 = vmatpush1.bf16.msra.mxu0 %v250
    %1815 = vmatprep.subr.bf16.mxu0 %v255
    %1816 = vmatpush1.bf16.msra.mxu0 %v254
    %1817 = vmatprep.subr.bf16.mxu0 0
    %1818 = vmatpush1.bf16.msra.mxu0 0
    %1819 = vmatprep.subr.bf16.mxu0 0
    %1820 = vmatpush1.bf16.msra.mxu0 0
    %1821 = vmatprep.subr.bf16.mxu0 0
    %1822 = vmatpush1.bf16.msra.mxu0 0
    %1823 = vmatprep.subr.bf16.mxu0 0
    %1824 = vmatpush1.bf16.msra.mxu0 0
    %1825 = vmatprep.subr.bf16.mxu0 0
    %1826 = vmatpush1.bf16.msra.mxu0 0
    %1827 = vmatprep.subr.bf16.mxu0 0
    %1828 = vmatpush1.bf16.msra.mxu0 0
    %1829 = vmatprep.subr.bf16.mxu0 0
    %1830 = vmatpush1.bf16.msra.mxu0 0
    %1831 = vmatprep.subr.bf16.mxu0 0
    %1832 = vmatpush1.bf16.msra.mxu0 0
    %1833 = vmatprep.mubr.bf16.mxu0 0
    %1834 = vmatmul.mubr.bf16.gmra.mrb[0].mxu0 %v1757
    %v1835 = vpop.f32.mrb[0].mxu0
    %v1836 = vadd.f32 0.0, %v1835
    %v1837 = vpop.f32.mrb[0].mxu0
    %v1838 = vadd.f32 0.0, %v1837
    %v1839 = vpop.f32.mrb[0].mxu0
    %v1840 = vadd.f32 0.0, %v1839
    %v1841 = vpop.f32.mrb[0].mxu0
    %v1842 = vadd.f32 0.0, %v1841
    %1843 = vdwg.mxu0
    %v1846 = vunpack.c.l.b16 %v1755
    %v1847 = vunpack.c.l.b16 %v1756
    %v1848 = vpack.c.b16 %v1847, %v1846
    %v1850 = vsel %vm459, %v1848, 0
    %1852 = vmatprep.subr.bf16.mxu0 %v428
    %1853 = vmatpush1.bf16.msra.mxu0 %v427
    %1854 = vmatprep.subr.bf16.mxu0 %v432
    %1855 = vmatpush1.bf16.msra.mxu0 %v431
    %1856 = vmatprep.subr.bf16.mxu0 %v436
    %1857 = vmatpush1.bf16.msra.mxu0 %v435
    %1858 = vmatprep.subr.bf16.mxu0 %v440
    %1859 = vmatpush1.bf16.msra.mxu0 %v439
    %1860 = vmatprep.subr.bf16.mxu0 0
    %1861 = vmatpush1.bf16.msra.mxu0 0
    %1862 = vmatprep.subr.bf16.mxu0 0
    %1863 = vmatpush1.bf16.msra.mxu0 0
    %1864 = vmatprep.subr.bf16.mxu0 0
    %1865 = vmatpush1.bf16.msra.mxu0 0
    %1866 = vmatprep.subr.bf16.mxu0 0
    %1867 = vmatpush1.bf16.msra.mxu0 0
    %1868 = vmatprep.subr.bf16.mxu0 0
    %1869 = vmatpush1.bf16.msra.mxu0 0
    %1870 = vmatprep.subr.bf16.mxu0 0
    %1871 = vmatpush1.bf16.msra.mxu0 0
    %1872 = vmatprep.subr.bf16.mxu0 0
    %1873 = vmatpush1.bf16.msra.mxu0 0
    %1874 = vmatprep.subr.bf16.mxu0 0
    %1875 = vmatpush1.bf16.msra.mxu0 0
    %1876 = vmatprep.subr.bf16.mxu0 0
    %1877 = vmatpush1.bf16.msra.mxu0 0
    %1878 = vmatprep.subr.bf16.mxu0 0
    %1879 = vmatpush1.bf16.msra.mxu0 0
    %1880 = vmatprep.subr.bf16.mxu0 0
    %1881 = vmatpush1.bf16.msra.mxu0 0
    %1882 = vmatprep.subr.bf16.mxu0 0
    %1883 = vmatpush1.bf16.msra.mxu0 0
    %1884 = vmatprep.mubr.bf16.mxu0 0
    %1885 = vmatmul.mubr.bf16.gmra.mrb[0].mxu0 %v1850
    %v1886 = vpop.f32.mrb[0].mxu0
    %v1887 = vadd.f32 %v1793, %v1886
    %v1888 = vpop.f32.mrb[0].mxu0
    %v1889 = vadd.f32 %v1795, %v1888
    %v1890 = vpop.f32.mrb[0].mxu0
    %v1891 = vadd.f32 %v1797, %v1890
    %v1892 = vpop.f32.mrb[0].mxu0
    %v1893 = vadd.f32 %v1799, %v1892
    %1894 = vdwg.mxu0
    %1895 = vmatprep.subr.bf16.mxu0 %v430
    %1896 = vmatpush1.bf16.msra.mxu0 %v429
    %1897 = vmatprep.subr.bf16.mxu0 %v434
    %1898 = vmatpush1.bf16.msra.mxu0 %v433
    %1899 = vmatprep.subr.bf16.mxu0 %v438
    %1900 = vmatpush1.bf16.msra.mxu0 %v437
    %1901 = vmatprep.subr.bf16.mxu0 %v442
    %1902 = vmatpush1.bf16.msra.mxu0 %v441
    %1903 = vmatprep.subr.bf16.mxu0 0
    %1904 = vmatpush1.bf16.msra.mxu0 0
    %1905 = vmatprep.subr.bf16.mxu0 0
    %1906 = vmatpush1.bf16.msra.mxu0 0
    %1907 = vmatprep.subr.bf16.mxu0 0
    %1908 = vmatpush1.bf16.msra.mxu0 0
    %1909 = vmatprep.subr.bf16.mxu0 0
    %1910 = vmatpush1.bf16.msra.mxu0 0
    %1911 = vmatprep.subr.bf16.mxu0 0
    %1912 = vmatpush1.bf16.msra.mxu0 0
    %1913 = vmatprep.subr.bf16.mxu0 0
    %1914 = vmatpush1.bf16.msra.mxu0 0
    %1915 = vmatprep.subr.bf16.mxu0 0
    %1916 = vmatpush1.bf16.msra.mxu0 0
    %1917 = vmatprep.subr.bf16.mxu0 0
    %1918 = vmatpush1.bf16.msra.mxu0 0
    %1919 = vmatprep.subr.bf16.mxu0 0
    %1920 = vmatpush1.bf16.msra.mxu0 0
    %1921 = vmatprep.subr.bf16.mxu0 0
    %1922 = vmatpush1.bf16.msra.mxu0 0
    %1923 = vmatprep.subr.bf16.mxu0 0
    %1924 = vmatpush1.bf16.msra.mxu0 0
    %1925 = vmatprep.subr.bf16.mxu0 0
    %1926 = vmatpush1.bf16.msra.mxu0 0
    %1927 = vmatprep.mubr.bf16.mxu0 0
    %1928 = vmatmul.mubr.bf16.gmra.mrb[0].mxu0 %v1850
    %v1929 = vpop.f32.mrb[0].mxu0
    %v1930 = vadd.f32 %v1836, %v1929
    %v1931 = vpop.f32.mrb[0].mxu0
    %v1932 = vadd.f32 %v1838, %v1931
    %v1933 = vpop.f32.mrb[0].mxu0
    %v1934 = vadd.f32 %v1840, %v1933
    %v1935 = vpop.f32.mrb[0].mxu0
    %v1936 = vadd.f32 %v1842, %v1935
    %1937 = vdwg.mxu0
    %v1938 = vadd.f32 %v1887, %v553
    %v1939 = vadd.f32 %v1889, %v557
    %v1940 = vadd.f32 %v1930, %v561
    %v1941 = vadd.f32 %v1932, %v565
    %v1942 = vadd.f32 %v1891, %v553
    %v1943 = vadd.f32 %v1893, %v557
    %v1944 = vadd.f32 %v1934, %v561
    %v1945 = vadd.f32 %v1936, %v565
    %v1946 = vmul.f32 %v1938, 0.5
    %v1947 = vmul.f32 %v1942, 0.5
    %v1948 = vtanh.pop %v1946
    %v1949 = vtanh.pop %v1947
    %v1950 = vmul.f32 %v1948, 0.5
    %v1951 = vmul.f32 %v1949, 0.5
    %v1952 = vadd.f32 %v1950, 0.5
    %v1953 = vadd.f32 %v1951, 0.5
    %v1954 = vmul.f32 %v1939, 0.5
    %v1955 = vmul.f32 %v1943, 0.5
    %v1956 = vtanh.pop %v1954
    %v1957 = vtanh.pop %v1955
    %v1958 = vmul.f32 %v1956, 0.5
    %v1959 = vmul.f32 %v1957, 0.5
    %v1960 = vadd.f32 %v1958, 0.5
    %v1961 = vadd.f32 %v1959, 0.5
    %v1962 = vtanh.pop %v1940
    %v1963 = vtanh.pop %v1944
    %v1964 = vmul.f32 %v1941, 0.5
    %v1965 = vmul.f32 %v1945, 0.5
    %v1966 = vtanh.pop %v1964
    %v1967 = vtanh.pop %v1965
    %v1968 = vmul.f32 %v1966, 0.5
    %v1969 = vmul.f32 %v1967, 0.5
    %v1970 = vadd.f32 %v1968, 0.5
    %v1971 = vadd.f32 %v1969, 0.5
    %v1972 = vmul.f32 %v1960, %v1748
    %v1973 = vmul.f32 %v1961, %v1749
    %v1974 = vmul.f32 %v1952, %v1962
    %v1975 = vmul.f32 %v1953, %v1963
    %v1976 = vadd.f32 %v1972, %v1974
    %v1977 = vadd.f32 %v1973, %v1975
    %v1978 = vtanh.pop %v1976
    %v1979 = vtanh.pop %v1977
    %v1980 = vmul.f32 %v1970, %v1978
    %v1981 = vmul.f32 %v1971, %v1979
    %v1982 = vld [vmem:[%s59] sm:$0xf]
    %v1983 = vld [vmem:[%s59 + $0x4] sm:$0xf]
    %v1984 = vpack.c.bf16 %v1981, %v1980
    %1985 = vmatprep.subr.bf16.mxu0 %v225
    %1986 = vmatpush1.bf16.msra.mxu0 %v224
    %1987 = vmatprep.subr.bf16.mxu0 %v229
    %1988 = vmatpush1.bf16.msra.mxu0 %v228
    %1989 = vmatprep.subr.bf16.mxu0 %v233
    %1990 = vmatpush1.bf16.msra.mxu0 %v232
    %1991 = vmatprep.subr.bf16.mxu0 %v237
    %1992 = vmatpush1.bf16.msra.mxu0 %v236
    %1993 = vmatprep.subr.bf16.mxu0 %v241
    %1994 = vmatpush1.bf16.msra.mxu0 %v240
    %1995 = vmatprep.subr.bf16.mxu0 %v245
    %1996 = vmatpush1.bf16.msra.mxu0 %v244
    %1997 = vmatprep.subr.bf16.mxu0 %v249
    %1998 = vmatpush1.bf16.msra.mxu0 %v248
    %1999 = vmatprep.subr.bf16.mxu0 %v253
    %2000 = vmatpush1.bf16.msra.mxu0 %v252
    %2001 = vmatprep.subr.bf16.mxu0 0
    %2002 = vmatpush1.bf16.msra.mxu0 0
    %2003 = vmatprep.subr.bf16.mxu0 0
    %2004 = vmatpush1.bf16.msra.mxu0 0
    %2005 = vmatprep.subr.bf16.mxu0 0
    %2006 = vmatpush1.bf16.msra.mxu0 0
    %2007 = vmatprep.subr.bf16.mxu0 0
    %2008 = vmatpush1.bf16.msra.mxu0 0
    %2009 = vmatprep.subr.bf16.mxu0 0
    %2010 = vmatpush1.bf16.msra.mxu0 0
    %2011 = vmatprep.subr.bf16.mxu0 0
    %2012 = vmatpush1.bf16.msra.mxu0 0
    %2013 = vmatprep.subr.bf16.mxu0 0
    %2014 = vmatpush1.bf16.msra.mxu0 0
    %2015 = vmatprep.subr.bf16.mxu0 0
    %2016 = vmatpush1.bf16.msra.mxu0 0
    %2017 = vmatprep.mubr.bf16.mxu0 0
    %2018 = vmatmul.mubr.bf16.gmra.mrb[0].mxu0 %v1984
    %v2019 = vpop.f32.mrb[0].mxu0
    %v2020 = vadd.f32 0.0, %v2019
    %v2021 = vpop.f32.mrb[0].mxu0
    %v2022 = vadd.f32 0.0, %v2021
    %v2023 = vpop.f32.mrb[0].mxu0
    %v2024 = vadd.f32 0.0, %v2023
    %v2025 = vpop.f32.mrb[0].mxu0
    %v2026 = vadd.f32 0.0, %v2025
    %2027 = vdwg.mxu0
    %2028 = vmatprep.subr.bf16.mxu0 %v227
    %2029 = vmatpush1.bf16.msra.mxu0 %v226
    %2030 = vmatprep.subr.bf16.mxu0 %v231
    %2031 = vmatpush1.bf16.msra.mxu0 %v230
    %2032 = vmatprep.subr.bf16.mxu0 %v235
    %2033 = vmatpush1.bf16.msra.mxu0 %v234
    %2034 = vmatprep.subr.bf16.mxu0 %v239
    %2035 = vmatpush1.bf16.msra.mxu0 %v238
    %2036 = vmatprep.subr.bf16.mxu0 %v243
    %2037 = vmatpush1.bf16.msra.mxu0 %v242
    %2038 = vmatprep.subr.bf16.mxu0 %v247
    %2039 = vmatpush1.bf16.msra.mxu0 %v246
    %2040 = vmatprep.subr.bf16.mxu0 %v251
    %2041 = vmatpush1.bf16.msra.mxu0 %v250
    %2042 = vmatprep.subr.bf16.mxu0 %v255
    %2043 = vmatpush1.bf16.msra.mxu0 %v254
    %2044 = vmatprep.subr.bf16.mxu0 0
    %2045 = vmatpush1.bf16.msra.mxu0 0
    %2046 = vmatprep.subr.bf16.mxu0 0
    %2047 = vmatpush1.bf16.msra.mxu0 0
    %2048 = vmatprep.subr.bf16.mxu0 0
    %2049 = vmatpush1.bf16.msra.mxu0 0
    %2050 = vmatprep.subr.bf16.mxu0 0
    %2051 = vmatpush1.bf16.msra.mxu0 0
    %2052 = vmatprep.subr.bf16.mxu0 0
    %2053 = vmatpush1.bf16.msra.mxu0 0
    %2054 = vmatprep.subr.bf16.mxu0 0
    %2055 = vmatpush1.bf16.msra.mxu0 0
    %2056 = vmatprep.subr.bf16.mxu0 0
    %2057 = vmatpush1.bf16.msra.mxu0 0
    %2058 = vmatprep.subr.bf16.mxu0 0
    %2059 = vmatpush1.bf16.msra.mxu0 0
    %2060 = vmatprep.mubr.bf16.mxu0 0
    %2061 = vmatmul.mubr.bf16.gmra.mrb[0].mxu0 %v1984
    %v2062 = vpop.f32.mrb[0].mxu0
    %v2063 = vadd.f32 0.0, %v2062
    %v2064 = vpop.f32.mrb[0].mxu0
    %v2065 = vadd.f32 0.0, %v2064
    %v2066 = vpop.f32.mrb[0].mxu0
    %v2067 = vadd.f32 0.0, %v2066
    %v2068 = vpop.f32.mrb[0].mxu0
    %v2069 = vadd.f32 0.0, %v2068
    %2070 = vdwg.mxu0
    %v2073 = vunpack.c.l.b16 %v1982
    %v2074 = vunpack.c.l.b16 %v1983
    %v2075 = vpack.c.b16 %v2074, %v2073
    %v2077 = vsel %vm459, %v2075, 0
    %2079 = vmatprep.subr.bf16.mxu0 %v428
    %2080 = vmatpush1.bf16.msra.mxu0 %v427
    %2081 = vmatprep.subr.bf16.mxu0 %v432
    %2082 = vmatpush1.bf16.msra.mxu0 %v431
    %2083 = vmatprep.subr.bf16.mxu0 %v436
    %2084 = vmatpush1.bf16.msra.mxu0 %v435
    %2085 = vmatprep.subr.bf16.mxu0 %v440
    %2086 = vmatpush1.bf16.msra.mxu0 %v439
    %2087 = vmatprep.subr.bf16.mxu0 0
    %2088 = vmatpush1.bf16.msra.mxu0 0
    %2089 = vmatprep.subr.bf16.mxu0 0
    %2090 = vmatpush1.bf16.msra.mxu0 0
    %2091 = vmatprep.subr.bf16.mxu0 0
    %2092 = vmatpush1.bf16.msra.mxu0 0
    %2093 = vmatprep.subr.bf16.mxu0 0
    %2094 = vmatpush1.bf16.msra.mxu0 0
    %2095 = vmatprep.subr.bf16.mxu0 0
    %2096 = vmatpush1.bf16.msra.mxu0 0
    %2097 = vmatprep.subr.bf16.mxu0 0
    %2098 = vmatpush1.bf16.msra.mxu0 0
    %2099 = vmatprep.subr.bf16.mxu0 0
    %2100 = vmatpush1.bf16.msra.mxu0 0
    %2101 = vmatprep.subr.bf16.mxu0 0
    %2102 = vmatpush1.bf16.msra.mxu0 0
    %2103 = vmatprep.subr.bf16.mxu0 0
    %2104 = vmatpush1.bf16.msra.mxu0 0
    %2105 = vmatprep.subr.bf16.mxu0 0
    %2106 = vmatpush1.bf16.msra.mxu0 0
    %2107 = vmatprep.subr.bf16.mxu0 0
    %2108 = vmatpush1.bf16.msra.mxu0 0
    %2109 = vmatprep.subr.bf16.mxu0 0
    %2110 = vmatpush1.bf16.msra.mxu0 0
    %2111 = vmatprep.mubr.bf16.mxu0 0
    %2112 = vmatmul.mubr.bf16.gmra.mrb[0].mxu0 %v2077
    %v2113 = vpop.f32.mrb[0].mxu0
    %v2114 = vadd.f32 %v2020, %v2113
    %v2115 = vpop.f32.mrb[0].mxu0
    %v2116 = vadd.f32 %v2022, %v2115
    %v2117 = vpop.f32.mrb[0].mxu0
    %v2118 = vadd.f32 %v2024, %v2117
    %v2119 = vpop.f32.mrb[0].mxu0
    %v2120 = vadd.f32 %v2026, %v2119
    %2121 = vdwg.mxu0
    %2122 = vmatprep.subr.bf16.mxu0 %v430
    %2123 = vmatpush1.bf16.msra.mxu0 %v429
    %2124 = vmatprep.subr.bf16.mxu0 %v434
    %2125 = vmatpush1.bf16.msra.mxu0 %v433
    %2126 = vmatprep.subr.bf16.mxu0 %v438
    %2127 = vmatpush1.bf16.msra.mxu0 %v437
    %2128 = vmatprep.subr.bf16.mxu0 %v442
    %2129 = vmatpush1.bf16.msra.mxu0 %v441
    %2130 = vmatprep.subr.bf16.mxu0 0
    %2131 = vmatpush1.bf16.msra.mxu0 0
    %2132 = vmatprep.subr.bf16.mxu0 0
    %2133 = vmatpush1.bf16.msra.mxu0 0
    %2134 = vmatprep.subr.bf16.mxu0 0
    %2135 = vmatpush1.bf16.msra.mxu0 0
    %2136 = vmatprep.subr.bf16.mxu0 0
    %2137 = vmatpush1.bf16.msra.mxu0 0
    %2138 = vmatprep.subr.bf16.mxu0 0
    %2139 = vmatpush1.bf16.msra.mxu0 0
    %2140 = vmatprep.subr.bf16.mxu0 0
    %2141 = vmatpush1.bf16.msra.mxu0 0
    %2142 = vmatprep.subr.bf16.mxu0 0
    %2143 = vmatpush1.bf16.msra.mxu0 0
    %2144 = vmatprep.subr.bf16.mxu0 0
    %2145 = vmatpush1.bf16.msra.mxu0 0
    %2146 = vmatprep.subr.bf16.mxu0 0
    %2147 = vmatpush1.bf16.msra.mxu0 0
    %2148 = vmatprep.subr.bf16.mxu0 0
    %2149 = vmatpush1.bf16.msra.mxu0 0
    %2150 = vmatprep.subr.bf16.mxu0 0
    %2151 = vmatpush1.bf16.msra.mxu0 0
    %2152 = vmatprep.subr.bf16.mxu0 0
    %2153 = vmatpush1.bf16.msra.mxu0 0
    %2154 = vmatprep.mubr.bf16.mxu0 0
    %2155 = vmatmul.mubr.bf16.gmra.mrb[0].mxu0 %v2077
    %v2156 = vpop.f32.mrb[0].mxu0
    %v2157 = vadd.f32 %v2063, %v2156
    %v2158 = vpop.f32.mrb[0].mxu0
    %v2159 = vadd.f32 %v2065, %v2158
    %v2160 = vpop.f32.mrb[0].mxu0
    %v2161 = vadd.f32 %v2067, %v2160
    %v2162 = vpop.f32.mrb[0].mxu0
    %v2163 = vadd.f32 %v2069, %v2162
    %2164 = vdwg.mxu0
    %v2165 = vadd.f32 %v2114, %v553
    %v2166 = vadd.f32 %v2116, %v557
    %v2167 = vadd.f32 %v2157, %v561
    %v2168 = vadd.f32 %v2159, %v565
    %v2169 = vadd.f32 %v2118, %v553
    %v2170 = vadd.f32 %v2120, %v557
    %v2171 = vadd.f32 %v2161, %v561
    %v2172 = vadd.f32 %v2163, %v565
    %v2173 = vmul.f32 %v2165, 0.5
    %v2174 = vmul.f32 %v2169, 0.5
    %v2175 = vtanh.pop %v2173
    %v2176 = vtanh.pop %v2174
    %v2177 = vmul.f32 %v2175, 0.5
    %v2178 = vmul.f32 %v2176, 0.5
    %v2179 = vadd.f32 %v2177, 0.5
    %v2180 = vadd.f32 %v2178, 0.5
    %v2181 = vmul.f32 %v2166, 0.5
    %v2182 = vmul.f32 %v2170, 0.5
    %v2183 = vtanh.pop %v2181
    %v2184 = vtanh.pop %v2182
    %v2185 = vmul.f32 %v2183, 0.5
    %v2186 = vmul.f32 %v2184, 0.5
    %v2187 = vadd.f32 %v2185, 0.5
    %v2188 = vadd.f32 %v2186, 0.5
    %v2189 = vtanh.pop %v2167
    %v2190 = vtanh.pop %v2171
    %v2191 = vmul.f32 %v2168, 0.5
    %v2192 = vmul.f32 %v2172, 0.5
    %v2193 = vtanh.pop %v2191
    %v2194 = vtanh.pop %v2192
    %v2195 = vmul.f32 %v2193, 0.5
    %v2196 = vmul.f32 %v2194, 0.5
    %v2197 = vadd.f32 %v2195, 0.5
    %v2198 = vadd.f32 %v2196, 0.5
    %v2199 = vmul.f32 %v2187, %v1976
    %v2200 = vmul.f32 %v2188, %v1977
    %v2201 = vmul.f32 %v2179, %v2189
    %v2202 = vmul.f32 %v2180, %v2190
    %v2203 = vadd.f32 %v2199, %v2201
    %v2204 = vadd.f32 %v2200, %v2202
    %v2205 = vtanh.pop %v2203
    %v2206 = vtanh.pop %v2204
    %v2207 = vmul.f32 %v2197, %v2205
    %v2208 = vmul.f32 %v2198, %v2206
    %2209 = vst [vmem:[#allocation2] sm:$0xff] %v2207
    %2210 = vst [vmem:[#allocation2 + $0x8] sm:$0xff] %v2208
    %2211 = vst [vmem:[#allocation3] sm:$0xff] %v2203
    %2212 = vst [vmem:[#allocation3 + $0x8] sm:$0xff] %v2204
    // Predicated region
    $region34: #{language_lstm_forward.1} parent=1 // pred_check
      %p2213 = pneg %p63
    $region35: #{language_lstm_forward.1} parent=1 // pred_check_branch
      %2215 = sbr.rel (%p2213) target = $region37
    $region36: #{language_lstm_forward.1} parent=1 // pred_region
      %v2216 = vld [vmem:[#allocation2] sm:$0xff]
      %v2217 = vld [vmem:[#allocation2 + $0x8] sm:$0xff]
      %v2218 = vpack.c.bf16 %v2217, %v2216
      %v2219 = vld [vmem:[%s4] sm:$0xf]
      %v2220 = vld [vmem:[%s4 + $0x4] sm:$0xf]
      %v2221 = vld [vmem:[%s4 + $0x8] sm:$0xf]
      %v2222 = vld [vmem:[%s4 + $0xc] sm:$0xf]
      %v2223 = vld [vmem:[%s4 + $0x10] sm:$0xf]
      %v2224 = vld [vmem:[%s4 + $0x14] sm:$0xf]
      %v2225 = vld [vmem:[%s4 + $0x18] sm:$0xf]
      %v2226 = vld [vmem:[%s4 + $0x1c] sm:$0xf]
      %v2227 = vld [vmem:[%s4 + $0x20] sm:$0xf]
      %v2228 = vld [vmem:[%s4 + $0x24] sm:$0xf]
      %v2229 = vld [vmem:[%s4 + $0x28] sm:$0xf]
      %v2230 = vld [vmem:[%s4 + $0x2c] sm:$0xf]
      %v2231 = vld [vmem:[%s4 + $0x30] sm:$0xf]
      %v2232 = vld [vmem:[%s4 + $0x34] sm:$0xf]
      %v2233 = vld [vmem:[%s4 + $0x38] sm:$0xf]
      %v2234 = vld [vmem:[%s4 + $0x3c] sm:$0xf]
      %v2235 = vld [vmem:[%s5] sm:$0x1]
      %v2237 = vlaneseq
      %v2238 = vshrl.u32 %v2237, 7
      %v2239 = vsub.s32 0, %v2238
      %v2240 = vrot.slane %v2235, %v2239
      %v2258 = vunpack.c.l.b16 %v2219
      %v2259 = vunpack.c.l.b16 %v2220
      %v2260 = vunpack.c.l.b16 %v2221
      %v2261 = vunpack.c.l.b16 %v2222
      %v2262 = vunpack.c.l.b16 %v2223
      %v2263 = vunpack.c.l.b16 %v2224
      %v2264 = vunpack.c.l.b16 %v2225
      %v2265 = vunpack.c.l.b16 %v2226
      %v2266 = vunpack.c.l.b16 %v2227
      %v2267 = vunpack.c.l.b16 %v2228
      %v2268 = vunpack.c.l.b16 %v2229
      %v2269 = vunpack.c.l.b16 %v2230
      %v2270 = vunpack.c.l.b16 %v2231
      %v2271 = vunpack.c.l.b16 %v2232
      %v2272 = vunpack.c.l.b16 %v2233
      %v2273 = vunpack.c.l.b16 %v2234
      %v2274 = vpack.c.b16 %v2259, %v2258
      %v2275 = vpack.c.b16 %v2261, %v2260
      %v2276 = vpack.c.b16 %v2263, %v2262
      %v2277 = vpack.c.b16 %v2265, %v2264
      %v2278 = vpack.c.b16 %v2267, %v2266
      %v2279 = vpack.c.b16 %v2269, %v2268
      %v2280 = vpack.c.b16 %v2271, %v2270
      %v2281 = vpack.c.b16 %v2273, %v2272
      %2290 = vmatprep.subr.bf16.mxu0 0
      %2291 = vmatpush1.bf16.msra.mxu0 %v2274
      %2292 = vmatprep.subr.bf16.mxu0 0
      %2293 = vmatpush1.bf16.msra.mxu0 %v2275
      %2294 = vmatprep.subr.bf16.mxu0 0
      %2295 = vmatpush1.bf16.msra.mxu0 %v2276
      %2296 = vmatprep.subr.bf16.mxu0 0
      %2297 = vmatpush1.bf16.msra.mxu0 %v2277
      %2298 = vmatprep.subr.bf16.mxu0 0
      %2299 = vmatpush1.bf16.msra.mxu0 %v2278
      %2300 = vmatprep.subr.bf16.mxu0 0
      %2301 = vmatpush1.bf16.msra.mxu0 %v2279
      %2302 = vmatprep.subr.bf16.mxu0 0
      %2303 = vmatpush1.bf16.msra.mxu0 %v2280
      %2304 = vmatprep.subr.bf16.mxu0 0
      %2305 = vmatpush1.bf16.msra.mxu0 %v2281
      %2306 = vmatprep.subr.bf16.mxu0 0
      %2307 = vmatpush1.bf16.msra.mxu0 0
      %2308 = vmatprep.subr.bf16.mxu0 0
      %2309 = vmatpush1.bf16.msra.mxu0 0
      %2310 = vmatprep.subr.bf16.mxu0 0
      %2311 = vmatpush1.bf16.msra.mxu0 0
      %2312 = vmatprep.subr.bf16.mxu0 0
      %2313 = vmatpush1.bf16.msra.mxu0 0
      %2314 = vmatprep.subr.bf16.mxu0 0
      %2315 = vmatpush1.bf16.msra.mxu0 0
      %2316 = vmatprep.subr.bf16.mxu0 0
      %2317 = vmatpush1.bf16.msra.mxu0 0
      %2318 = vmatprep.subr.bf16.mxu0 0
      %2319 = vmatpush1.bf16.msra.mxu0 0
      %2320 = vmatprep.subr.bf16.mxu0 0
      %2321 = vmatpush1.bf16.msra.mxu0 0
      %2322 = vmatprep.mubr.bf16.mxu0 0
      %2323 = vmatmul.mubr.bf16.gmra.mrb[0].mxu0 %v2218
      %v2324 = vpop.f32.mrb[0].mxu0
      %v2325 = vadd.f32 %v2240, %v2324
      %v2326 = vpop.f32.mrb[0].mxu0
      %v2327 = vpop.f32.mrb[0].mxu0
      %v2328 = vadd.f32 %v2240, %v2327
      %v2329 = vpop.f32.mrb[0].mxu0
      %2330 = vdwg.mxu0
      %vm2331 = vcmask 39936
      %2332 = vst.msk [vmem:[%s6] sm:$0xff] %vm2331, %v2325
      %2333 = vst.msk [vmem:[%s6 + $0x8] sm:$0xff] %vm2331, %v2328
    $region37: #{language_lstm_forward.1} parent=1 // pred_fallthru
      _
    // Predicated region
    $region38: #{language_lstm_forward.1} parent=1 // pred_check
      _
    $region39: #{language_lstm_forward.1} parent=1 // pred_check_branch
      %2335 = sbr.rel (0) target = $region41
    $region40: #{language_lstm_forward.1} parent=1 // pred_region
      _
    $region41: #{language_lstm_forward.1} parent=1 // pred_fallthru
      _
    // Predicated region
    $region42: #{language_lstm_forward.1} parent=1 // pred_check
      _
    $region43: #{language_lstm_forward.1} parent=1 // pred_check_branch
      %2337 = sbr.rel (0) target = $region45
    $region44: #{language_lstm_forward.1} parent=1 // pred_region
      _
    $region45: #{language_lstm_forward.1} parent=1 // pred_fallthru
      _
    %2338 = vsyncpa [#allocation5], 1

</llo_original>
